<compile_context>
chip_gen: v6e
topology: v6e:2x2x1
jax: 0.10.0
libtpu: 0.0.40
codegen_flags: <defaults>
</compile_context>

<pallas_src>
import functools

import jax
import jax.numpy as jnp
import numpy as np
from jax import lax
from jax.experimental import pallas as pl
from jax.experimental.pallas import tpu as pltpu


def _round_robin_pairs(m):
    """(m_pad-1) rounds of floor(m_pad/2) disjoint (p, q) pairs (p < q)."""
    m_pad = m + (m % 2)
    h = m_pad // 2
    players = list(range(m_pad))
    rounds = []
    for _ in range(max(m_pad - 1, 1)):
        pairs = []
        for i in range(h):
            a, b = players[i], players[m_pad - 1 - i]
            pairs.append((min(a, b), max(a, b)))
        rounds.append(pairs)
        players = [players[0]] + [players[-1]] + players[1:-1]
    return rounds


def _svd_kernel(a_ref, spair_ref, bmask_ref, localj_ref, rfold_ref, out_ref,
                g_ref, v_ref, *, n, m, M, n_rounds, n_sweeps, eps=1e-12):
    f32 = jnp.float32
    ii = lax.broadcasted_iota(jnp.int32, (M, M), 0)
    jj = lax.broadcasted_iota(jnp.int32, (M, M), 1)
    eye = (ii == jj).astype(f32)

    # ---- init: block-diagonal Gram matrix and V = I ------------------------
    a0 = a_ref[...].astype(f32)                                # (n, M) packed
    gfull = lax.dot_general(a0, a0, (((0,), (0,)), ((), ())),
                            preferred_element_type=f32)        # A_packed^T A_packed
    g_ref[...] = gfull * bmask_ref[...]                        # kill cross-matrix blocks
    v_ref[...] = eye

    # ---- parallel Jacobi sweeps (block-diagonal, VPU pivots, 3 wide matmuls)
    if n_sweeps > 0 and n_rounds > 0:

        @pl.loop(0, n_sweeps)
        def _sweep(_):
            for r in range(n_rounds):                          # static unroll
                spair = spair_ref[r]                           # +1 at (p,q), -1 at (q,p)
                apair = jnp.abs(spair)
                g = g_ref[...]
                ge = g * eye
                dcol = jnp.sum(ge, axis=1, keepdims=True)      # (M,1) diag
                drow = jnp.sum(ge, axis=0, keepdims=True)      # (1,M) diag
                # signed off-diagonal pivot and partner diagonal, per column
                offd = jnp.sum(g * spair, axis=0, keepdims=True)       # (1,M)
                dpart = jnp.sum(apair * dcol, axis=0, keepdims=True)   # (1,M)

                rot = jnp.abs(offd) > eps
                offd_safe = jnp.where(rot, offd, 1.0)
                tau = (drow - dpart) / (2.0 * offd_safe)       # == (aqq-app)/(2 apq)
                t = jnp.where(tau >= 0.0, 1.0, -1.0) / (
                    jnp.abs(tau) + jnp.sqrt(1.0 + tau * tau))
                cosv = lax.rsqrt(1.0 + t * t)
                sinv = t * cosv
                cosv = jnp.where(rot, cosv, 1.0)
                sinv = jnp.where(rot, sinv, 0.0)

                # composite rotation for all disjoint pairs of every matrix
                jrot = eye * cosv + spair * sinv               # (M, M), VPU only

                gj = jnp.dot(g, jrot, preferred_element_type=f32)
                g_ref[...] = lax.dot_general(                   # J^T (G J)
                    jrot, gj, (((0,), (0,)), ((), ())),
                    preferred_element_type=f32)
                v_ref[...] = jnp.dot(v_ref[...], jrot,
                                     preferred_element_type=f32)

    # ---- epilogue: per-block descending sort, S, U; lane-dense slab --------
    g = g_ref[...]
    v = v_ref[...]
    bmask = bmask_ref[...]
    ge = g * eye
    ev_col = jnp.sum(ge, axis=1, keepdims=True)                # (M,1)
    ev_row = jnp.sum(ge, axis=0, keepdims=True)                # (1,M)
    beats_b = (ev_row > ev_col) | ((ev_row == ev_col) & (jj < ii))
    beats = bmask * beats_b.astype(f32)
    rank = jnp.sum(beats, axis=1, keepdims=True)               # (M,1) local rank
    perm = bmask * (localj_ref[...] == rank).astype(f32)       # block permutation

    v_sorted = jnp.dot(v, perm, preferred_element_type=f32)    # (M, M)
    ev_sorted = jnp.sum(ev_col * perm, axis=0, keepdims=True)  # (1, M)
    s_row = jnp.sqrt(jnp.maximum(ev_sorted, 0.0))              # (1, M)

    a = a_ref[...].astype(f32)                                 # (n, M)
    u = jnp.dot(a, v_sorted, preferred_element_type=f32)       # (n, M): A_b V_b packed
    inv_s = jnp.where(
        s_row > eps,
        pl.reciprocal(jnp.maximum(s_row, eps), approx=True), 0.0)
    u = u * inv_s

    # fold block rows of V into the shared (m, M) slab layout
    v_slab = jnp.dot(rfold_ref[...], v_sorted, preferred_element_type=f32)

    out_ref[:n, :] = u.astype(out_ref.dtype)
    out_ref[n:n + m, :] = v_slab.astype(out_ref.dtype)
    out_ref[n + m:n + m + 1, :] = s_row.astype(out_ref.dtype)


def svd(x, some=True, compute_uv=True, n_sweeps=10, b_tile=None):
    """Pallas equivalent of torch.svd: returns (U, S, V) with A = U diag(S) V^T."""
    squeeze = (x.ndim == 2)
    if squeeze:
        x = x[None]
    bs, n, m = x.shape
    k = min(n, m)
    dtype = x.dtype

    rounds = _round_robin_pairs(m)
    n_rounds = len(rounds)

    # ---- generation-aware batch-tile policy --------------------------------
    kind = ""
    try:
        kind = jax.devices()[0].device_kind.lower()
    except Exception:
        pass
    is_v7 = "v7" in kind
    target_lanes = 256 if ("v6" in kind or is_v7) else 128

    if b_tile is None:
        b_tile = max(1, min(bs, target_lanes // max(m, 1)))
        # Only v7x has 2 TensorCores: want >=2 grid steps there.  On v5e/v6e
        # the grid is a serial loop, so keep the tile as large as possible.
        if is_v7 and bs >= 2:
            b_tile = min(b_tile, max(1, (bs + 1) // 2))
    b_tile = max(1, min(int(b_tile), bs))

    def vmem_bytes(bt):
        mp = bt * m
        spair_b = n_rounds * mp * mp * 4
        const_b = (mp * mp + mp + m * mp) * 4
        io_b = (n * mp + (n + m + 1) * mp) * 4
        scratch_b = 2 * mp * mp * 4
        return 2 * (spair_b + const_b + io_b) + scratch_b      # 2x: double buffering

    budget = 10 * 1024 * 1024                                  # safe for 16 MiB scoped (v5e)
    while b_tile > 1 and vmem_bytes(b_tile) > budget:
        b_tile //= 2

    P = b_tile
    M = P * m
    T = -(-bs // P)
    bs_pad = T * P

    xp = x
    if bs_pad != bs:
        xp = jnp.concatenate([x, jnp.zeros((bs_pad - bs, n, m), dtype)], axis=0)
    # lane-dense packing: (T, P, n, m) -> (T, n, P*m)
    xp = xp.reshape(T, P, n, m).transpose(0, 2, 1, 3).reshape(T, n, M)

    # ---- host constants -----------------------------------------------------
    spair = np.zeros((n_rounds, M, M), np.float32)
    has_pairs = False
    for r, pairs in enumerate(rounds):
        for (p, q) in pairs:
            if q < m:                     # pairs touching the odd-m pad are inert
                has_pairs = True
                for b in range(P):
                    spair[r, b * m + p, b * m + q] = 1.0
                    spair[r, b * m + q, b * m + p] = -1.0
    n_sweeps_eff = int(n_sweeps) if has_pairs else 0
    bmask = np.kron(np.eye(P, dtype=np.float32), np.ones((m, m), np.float32))
    localj = np.tile(np.arange(m, dtype=np.float32), P)[None, :]          # (1, M)
    rfold = np.tile(np.eye(m, dtype=np.float32), (1, P))                  # (m, M)

    vmem_limit = int(min(max(2 * vmem_bytes(P), 24 * 1024 * 1024),
                         48 * 1024 * 1024))

    grid_spec = pltpu.PrefetchScalarGridSpec(
        num_scalar_prefetch=0,
        grid=(T,),
        in_specs=[
            pl.BlockSpec((None, n, M), lambda i: (i, 0, 0)),
            pl.BlockSpec((n_rounds, M, M), lambda i: (0, 0, 0)),
            pl.BlockSpec((M, M), lambda i: (0, 0)),
            pl.BlockSpec((1, M), lambda i: (0, 0)),
            pl.BlockSpec((m, M), lambda i: (0, 0)),
        ],
        out_specs=pl.BlockSpec((None, n + m + 1, M), lambda i: (i, 0, 0)),
        scratch_shapes=[pltpu.VMEM((M, M), jnp.float32),    # G (block-diag)
                        pltpu.VMEM((M, M), jnp.float32)],   # V (block-diag)
    )

    out = pl.pallas_call(
        functools.partial(_svd_kernel, n=n, m=m, M=M,
                          n_rounds=n_rounds, n_sweeps=n_sweeps_eff),
        grid_spec=grid_spec,
        out_shape=jax.ShapeDtypeStruct((T, n + m + 1, M), dtype),
        compiler_params=pltpu.CompilerParams(
            dimension_semantics=("parallel",),
            vmem_limit_bytes=vmem_limit),
    )(xp, jnp.asarray(spair), jnp.asarray(bmask), jnp.asarray(localj),
      jnp.asarray(rfold))

    # ---- unpack the lane-dense slab back to per-matrix factors -------------
    u = (out[:, :n, :].reshape(T, n, P, m).transpose(0, 2, 1, 3)
         .reshape(bs_pad, n, m)[:bs, :, :k])
    v = (out[:, n:n + m, :].reshape(T, m, P, m).transpose(0, 2, 1, 3)
         .reshape(bs_pad, m, m)[:bs, :, :k])
    s = out[:, n + m, :].reshape(bs_pad, m)[:bs, :k]

    if not compute_uv:
        # torch.svd(compute_uv=False): zero-filled square U / V, S still returned.
        u = jnp.zeros((bs, n, n), dtype)
        v = jnp.zeros((bs, m, m), dtype)
    elif not some:
        # TODO(synk): some=False needs orthonormal completion of U/V to full
        # square bases; reduced (min(n,m)-column) factors are returned instead.
        pass

    if squeeze:
        u, s, v = u[0], s[0], v[0]
    return u, s, v


if __name__ == "__main__":
    key = jax.random.PRNGKey(0)
    bs, n, m = 8, 16, 8
    x = jax.random.normal(key, (bs, n, m), dtype=jnp.float32)

    U, S, V = svd(x)
    jax.block_until_ready((U, S, V))

    # Sanity: reconstruction A ~= U diag(S) V^T, descending S, orthonormal cols.
    recon = jnp.einsum("bik,bk,bjk->bij", U, S, V)
    err = float(jnp.max(jnp.abs(recon - x)))
    assert err < 1e-2, f"reconstruction error too large: {err}"
    assert bool(jnp.all(S[:, :-1] >= S[:, 1:] - 1e-4)), "S not sorted descending"
    eye_k = jnp.eye(U.shape[-1], dtype=jnp.float32)
    utu_err = float(jnp.max(jnp.abs(jnp.einsum("bik,bil->bkl", U, U) - eye_k)))
    vtv_err = float(jnp.max(jnp.abs(jnp.einsum("bik,bil->bkl", V, V) - eye_k)))
    assert utu_err < 1e-2, f"U not orthonormal: {utu_err}"
    assert vtv_err < 1e-2, f"V not orthonormal: {vtv_err}"
    print("KERNEL_OK")
</pallas_src>

<mosaic_0001>
module attributes {stable_mosaic.version = 11 : i64} {
  func.func @_svd_kernel(%arg0: i32, %arg1: memref<1x16x64xf32, #tpu.memory_space<vmem>>, %arg2: memref<7x64x64xf32, #tpu.memory_space<vmem>>, %arg3: memref<64x64xf32, #tpu.memory_space<vmem>>, %arg4: memref<1x64xf32, #tpu.memory_space<vmem>>, %arg5: memref<8x64xf32, #tpu.memory_space<vmem>>, %arg6: memref<1x25x64xf32, #tpu.memory_space<vmem>>, %arg7: memref<64x64xf32, #tpu.memory_space<vmem>>, %arg8: memref<64x64xf32, #tpu.memory_space<vmem>>) attributes {dimension_semantics = [#tpu.dimension_semantics<parallel>], iteration_bounds = array<i64: 1>, scalar_prefetch = 0 : i64, scratch_operands = 2 : i64, tpu.core_type = #tpu.core_type<tc>, window_params = [{transform_indices = @transform_0, window_bounds = array<i64: 1, 16, 64>}, {pipeline_mode = #tpu.pipeline_mode<synchronous>, transform_indices = @transform_1, window_bounds = array<i64: 7, 64, 64>}, {pipeline_mode = #tpu.pipeline_mode<synchronous>, transform_indices = @transform_2, window_bounds = array<i64: 64, 64>}, {pipeline_mode = #tpu.pipeline_mode<synchronous>, transform_indices = @transform_3, window_bounds = array<i64: 1, 64>}, {pipeline_mode = #tpu.pipeline_mode<synchronous>, transform_indices = @transform_4, window_bounds = array<i64: 8, 64>}, {transform_indices = @transform_5, window_bounds = array<i64: 1, 25, 64>}]} {
    %0 = tpu.iota {dimensions = array<i32: 0>} : vector<64x64xi32>
    %1 = tpu.iota {dimensions = array<i32: 1>} : vector<64x64xi32>
    %2 = arith.cmpi eq, %0, %1 : vector<64x64xi32>
    %3 = arith.extui %2 : vector<64x64xi1> to vector<64x64xi32>
    %4 = arith.sitofp %3 : vector<64x64xi32> to vector<64x64xf32>
    %c0 = arith.constant 0 : index
    %c0_0 = arith.constant 0 : index
    %c0_1 = arith.constant 0 : index
    %5 = vector.load %arg1[%c0, %c0_0, %c0_1] : memref<1x16x64xf32, #tpu.memory_space<vmem>>, vector<1x16x64xf32>
    %6 = vector.shape_cast %5 : vector<1x16x64xf32> to vector<16x64xf32>
    %cst = arith.constant dense<0.000000e+00> : vector<64x64xf32>
    %7 = tpu.matmul %6, %6, %cst {dimension_numbers = #tpu.dot_dimension_numbers<[0], [0], [1], [1], [0, 1, 1, 1], [], []>} : vector<16x64xf32>, vector<16x64xf32>, vector<64x64xf32> -> vector<64x64xf32>
    %c0_2 = arith.constant 0 : index
    %c0_3 = arith.constant 0 : index
    %8 = vector.load %arg3[%c0_2, %c0_3] : memref<64x64xf32, #tpu.memory_space<vmem>>, vector<64x64xf32>
    %9 = arith.mulf %7, %8 : vector<64x64xf32>
    %c0_4 = arith.constant 0 : index
    %c0_5 = arith.constant 0 : index
    %10 = vector.load %arg7[%c0_4, %c0_5] : memref<64x64xf32, #tpu.memory_space<vmem>>, vector<64x64xf32>
    tpu.vector_store %arg7[%c0_4, %c0_5], %9 {strides = array<i32>} : memref<64x64xf32, #tpu.memory_space<vmem>>, vector<64x64xf32>,
    %c0_6 = arith.constant 0 : index
    %c0_7 = arith.constant 0 : index
    %11 = vector.load %arg8[%c0_6, %c0_7] : memref<64x64xf32, #tpu.memory_space<vmem>>, vector<64x64xf32>
    tpu.vector_store %arg8[%c0_6, %c0_7], %4 {strides = array<i32>} : memref<64x64xf32, #tpu.memory_space<vmem>>, vector<64x64xf32>,
    %c0_i32 = arith.constant 0 : i32
    %c10_i32 = arith.constant 10 : i32
    %12 = arith.addi %c0_i32, %c10_i32 : i32
    %c1_i32 = arith.constant 1 : i32
    scf.for %arg9 = %c0_i32 to %12 step %c1_i32  : i32 {
      %c0_39 = arith.constant 0 : index
      %c0_40 = arith.constant 0 : index
      %c0_41 = arith.constant 0 : index
      %73 = vector.load %arg2[%c0_39, %c0_40, %c0_41] : memref<7x64x64xf32, #tpu.memory_space<vmem>>, vector<1x64x64xf32>
      %74 = vector.shape_cast %73 : vector<1x64x64xf32> to vector<64x64xf32>
      %75 = math.absf %74 : vector<64x64xf32>
      %c0_42 = arith.constant 0 : index
      %c0_43 = arith.constant 0 : index
      %76 = vector.load %arg7[%c0_42, %c0_43] : memref<64x64xf32, #tpu.memory_space<vmem>>, vector<64x64xf32>
      %77 = arith.mulf %76, %4 : vector<64x64xf32>
      %cst_44 = arith.constant dense<0.000000e+00> : vector<64xf32>
      %78 = vector.multi_reduction <add>, %77, %cst_44 [1] : vector<64x64xf32> to vector<64xf32>
      %79 = vector.shape_cast %78 : vector<64xf32> to vector<64x1xf32>
      %cst_45 = arith.constant dense<0.000000e+00> : vector<64xf32>
      %80 = vector.multi_reduction <add>, %77, %cst_45 [0] : vector<64x64xf32> to vector<64xf32>
      %81 = vector.shape_cast %80 : vector<64xf32> to vector<1x64xf32>
      %82 = arith.mulf %76, %74 : vector<64x64xf32>
      %cst_46 = arith.constant dense<0.000000e+00> : vector<64xf32>
      %83 = vector.multi_reduction <add>, %82, %cst_46 [0] : vector<64x64xf32> to vector<64xf32>
      %84 = vector.shape_cast %83 : vector<64xf32> to vector<1x64xf32>
      %85 = vector.broadcast %79 : vector<64x1xf32> to vector<64x64xf32>
      %86 = arith.mulf %75, %85 : vector<64x64xf32>
      %cst_47 = arith.constant dense<0.000000e+00> : vector<64xf32>
      %87 = vector.multi_reduction <add>, %86, %cst_47 [0] : vector<64x64xf32> to vector<64xf32>
      %88 = vector.shape_cast %87 : vector<64xf32> to vector<1x64xf32>
      %89 = math.absf %84 : vector<1x64xf32>
      %cst_48 = arith.constant 9.99999996E-13 : f32
      %90 = vector.broadcast %cst_48 : f32 to vector<1x64xf32>
      %91 = arith.cmpf ogt, %89, %90 : vector<1x64xf32>
      %cst_49 = arith.constant 1.000000e+00 : f32
      %92 = vector.broadcast %cst_49 : f32 to vector<1x64xf32>
      %93 = arith.select %91, %84, %92 : vector<1x64xi1>, vector<1x64xf32>
      %94 = arith.subf %81, %88 : vector<1x64xf32>
      %cst_50 = arith.constant 2.000000e+00 : f32
      %95 = vector.broadcast %cst_50 : f32 to vector<1x64xf32>
      %96 = arith.mulf %95, %93 : vector<1x64xf32>
      %97 = arith.divf %94, %96 : vector<1x64xf32>
      %cst_51 = arith.constant 0.000000e+00 : f32
      %98 = vector.broadcast %cst_51 : f32 to vector<1x64xf32>
      %99 = arith.cmpf oge, %97, %98 : vector<1x64xf32>
      %cst_52 = arith.constant 1.000000e+00 : f32
      %cst_53 = arith.constant -1.000000e+00 : f32
      %100 = vector.broadcast %cst_52 : f32 to vector<1x64xf32>
      %101 = vector.broadcast %cst_53 : f32 to vector<1x64xf32>
      %102 = arith.select %99, %100, %101 : vector<1x64xi1>, vector<1x64xf32>
      %103 = math.absf %97 : vector<1x64xf32>
      %104 = arith.mulf %97, %97 : vector<1x64xf32>
      %cst_54 = arith.constant 1.000000e+00 : f32
      %105 = vector.broadcast %cst_54 : f32 to vector<1x64xf32>
      %106 = arith.addf %105, %104 : vector<1x64xf32>
      %107 = math.sqrt %106 : vector<1x64xf32>
      %108 = arith.addf %103, %107 : vector<1x64xf32>
      %109 = arith.divf %102, %108 : vector<1x64xf32>
      %110 = arith.mulf %109, %109 : vector<1x64xf32>
      %cst_55 = arith.constant 1.000000e+00 : f32
      %111 = vector.broadcast %cst_55 : f32 to vector<1x64xf32>
      %112 = arith.addf %111, %110 : vector<1x64xf32>
      %113 = math.rsqrt %112 : vector<1x64xf32>
      %114 = arith.mulf %109, %113 : vector<1x64xf32>
      %cst_56 = arith.constant 1.000000e+00 : f32
      %115 = vector.broadcast %cst_56 : f32 to vector<1x64xf32>
      %116 = arith.select %91, %113, %115 : vector<1x64xi1>, vector<1x64xf32>
      %cst_57 = arith.constant 0.000000e+00 : f32
      %117 = vector.broadcast %cst_57 : f32 to vector<1x64xf32>
      %118 = arith.select %91, %114, %117 : vector<1x64xi1>, vector<1x64xf32>
      %119 = vector.broadcast %116 : vector<1x64xf32> to vector<64x64xf32>
      %120 = arith.mulf %4, %119 : vector<64x64xf32>
      %121 = vector.broadcast %118 : vector<1x64xf32> to vector<64x64xf32>
      %122 = arith.mulf %74, %121 : vector<64x64xf32>
      %123 = arith.addf %120, %122 : vector<64x64xf32>
      %cst_58 = arith.constant dense<0.000000e+00> : vector<64x64xf32>
      %124 = tpu.matmul %76, %123, %cst_58 {dimension_numbers = #tpu.dot_dimension_numbers<[1], [0], [0], [1], [0, 0, 1, 1], [], []>} : vector<64x64xf32>, vector<64x64xf32>, vector<64x64xf32> -> vector<64x64xf32>
      %cst_59 = arith.constant dense<0.000000e+00> : vector<64x64xf32>
      %125 = tpu.matmul %123, %124, %cst_59 {dimension_numbers = #tpu.dot_dimension_numbers<[0], [0], [1], [1], [0, 1, 1, 1], [], []>} : vector<64x64xf32>, vector<64x64xf32>, vector<64x64xf32> -> vector<64x64xf32>
      %c0_60 = arith.constant 0 : index
      %c0_61 = arith.constant 0 : index
      %126 = vector.load %arg7[%c0_60, %c0_61] : memref<64x64xf32, #tpu.memory_space<vmem>>, vector<64x64xf32>
      tpu.vector_store %arg7[%c0_60, %c0_61], %125 {strides = array<i32>} : memref<64x64xf32, #tpu.memory_space<vmem>>, vector<64x64xf32>,
      %c0_62 = arith.constant 0 : index
      %c0_63 = arith.constant 0 : index
      %127 = vector.load %arg8[%c0_62, %c0_63] : memref<64x64xf32, #tpu.memory_space<vmem>>, vector<64x64xf32>
      %cst_64 = arith.constant dense<0.000000e+00> : vector<64x64xf32>
      %128 = tpu.matmul %127, %123, %cst_64 {dimension_numbers = #tpu.dot_dimension_numbers<[1], [0], [0], [1], [0, 0, 1, 1], [], []>} : vector<64x64xf32>, vector<64x64xf32>, vector<64x64xf32> -> vector<64x64xf32>
      %c0_65 = arith.constant 0 : index
      %c0_66 = arith.constant 0 : index
      %129 = vector.load %arg8[%c0_65, %c0_66] : memref<64x64xf32, #tpu.memory_space<vmem>>, vector<64x64xf32>
      tpu.vector_store %arg8[%c0_65, %c0_66], %128 {strides = array<i32>} : memref<64x64xf32, #tpu.memory_space<vmem>>, vector<64x64xf32>,
      %c1 = arith.constant 1 : index
      %c0_67 = arith.constant 0 : index
      %c0_68 = arith.constant 0 : index
      %130 = vector.load %arg2[%c1, %c0_67, %c0_68] : memref<7x64x64xf32, #tpu.memory_space<vmem>>, vector<1x64x64xf32>
      %131 = vector.shape_cast %130 : vector<1x64x64xf32> to vector<64x64xf32>
      %132 = math.absf %131 : vector<64x64xf32>
      %c0_69 = arith.constant 0 : index
      %c0_70 = arith.constant 0 : index
      %133 = vector.load %arg7[%c0_69, %c0_70] : memref<64x64xf32, #tpu.memory_space<vmem>>, vector<64x64xf32>
      %134 = arith.mulf %133, %4 : vector<64x64xf32>
      %cst_71 = arith.constant dense<0.000000e+00> : vector<64xf32>
      %135 = vector.multi_reduction <add>, %134, %cst_71 [1] : vector<64x64xf32> to vector<64xf32>
      %136 = vector.shape_cast %135 : vector<64xf32> to vector<64x1xf32>
      %cst_72 = arith.constant dense<0.000000e+00> : vector<64xf32>
      %137 = vector.multi_reduction <add>, %134, %cst_72 [0] : vector<64x64xf32> to vector<64xf32>
      %138 = vector.shape_cast %137 : vector<64xf32> to vector<1x64xf32>
      %139 = arith.mulf %133, %131 : vector<64x64xf32>
      %cst_73 = arith.constant dense<0.000000e+00> : vector<64xf32>
      %140 = vector.multi_reduction <add>, %139, %cst_73 [0] : vector<64x64xf32> to vector<64xf32>
      %141 = vector.shape_cast %140 : vector<64xf32> to vector<1x64xf32>
      %142 = vector.broadcast %136 : vector<64x1xf32> to vector<64x64xf32>
      %143 = arith.mulf %132, %142 : vector<64x64xf32>
      %cst_74 = arith.constant dense<0.000000e+00> : vector<64xf32>
      %144 = vector.multi_reduction <add>, %143, %cst_74 [0] : vector<64x64xf32> to vector<64xf32>
      %145 = vector.shape_cast %144 : vector<64xf32> to vector<1x64xf32>
      %146 = math.absf %141 : vector<1x64xf32>
      %cst_75 = arith.constant 9.99999996E-13 : f32
      %147 = vector.broadcast %cst_75 : f32 to vector<1x64xf32>
      %148 = arith.cmpf ogt, %146, %147 : vector<1x64xf32>
      %cst_76 = arith.constant 1.000000e+00 : f32
      %149 = vector.broadcast %cst_76 : f32 to vector<1x64xf32>
      %150 = arith.select %148, %141, %149 : vector<1x64xi1>, vector<1x64xf32>
      %151 = arith.subf %138, %145 : vector<1x64xf32>
      %cst_77 = arith.constant 2.000000e+00 : f32
      %152 = vector.broadcast %cst_77 : f32 to vector<1x64xf32>
      %153 = arith.mulf %152, %150 : vector<1x64xf32>
      %154 = arith.divf %151, %153 : vector<1x64xf32>
      %cst_78 = arith.constant 0.000000e+00 : f32
      %155 = vector.broadcast %cst_78 : f32 to vector<1x64xf32>
      %156 = arith.cmpf oge, %154, %155 : vector<1x64xf32>
      %cst_79 = arith.constant 1.000000e+00 : f32
      %cst_80 = arith.constant -1.000000e+00 : f32
      %157 = vector.broadcast %cst_79 : f32 to vector<1x64xf32>
      %158 = vector.broadcast %cst_80 : f32 to vector<1x64xf32>
      %159 = arith.select %156, %157, %158 : vector<1x64xi1>, vector<1x64xf32>
      %160 = math.absf %154 : vector<1x64xf32>
      %161 = arith.mulf %154, %154 : vector<1x64xf32>
      %cst_81 = arith.constant 1.000000e+00 : f32
      %162 = vector.broadcast %cst_81 : f32 to vector<1x64xf32>
      %163 = arith.addf %162, %161 : vector<1x64xf32>
      %164 = math.sqrt %163 : vector<1x64xf32>
      %165 = arith.addf %160, %164 : vector<1x64xf32>
      %166 = arith.divf %159, %165 : vector<1x64xf32>
      %167 = arith.mulf %166, %166 : vector<1x64xf32>
      %cst_82 = arith.constant 1.000000e+00 : f32
      %168 = vector.broadcast %cst_82 : f32 to vector<1x64xf32>
      %169 = arith.addf %168, %167 : vector<1x64xf32>
      %170 = math.rsqrt %169 : vector<1x64xf32>
      %171 = arith.mulf %166, %170 : vector<1x64xf32>
      %cst_83 = arith.constant 1.000000e+00 : f32
      %172 = vector.broadcast %cst_83 : f32 to vector<1x64xf32>
      %173 = arith.select %148, %170, %172 : vector<1x64xi1>, vector<1x64xf32>
      %cst_84 = arith.constant 0.000000e+00 : f32
      %174 = vector.broadcast %cst_84 : f32 to vector<1x64xf32>
      %175 = arith.select %148, %171, %174 : vector<1x64xi1>, vector<1x64xf32>
      %176 = vector.broadcast %173 : vector<1x64xf32> to vector<64x64xf32>
      %177 = arith.mulf %4, %176 : vector<64x64xf32>
      %178 = vector.broadcast %175 : vector<1x64xf32> to vector<64x64xf32>
      %179 = arith.mulf %131, %178 : vector<64x64xf32>
      %180 = arith.addf %177, %179 : vector<64x64xf32>
      %cst_85 = arith.constant dense<0.000000e+00> : vector<64x64xf32>
      %181 = tpu.matmul %133, %180, %cst_85 {dimension_numbers = #tpu.dot_dimension_numbers<[1], [0], [0], [1], [0, 0, 1, 1], [], []>} : vector<64x64xf32>, vector<64x64xf32>, vector<64x64xf32> -> vector<64x64xf32>
      %cst_86 = arith.constant dense<0.000000e+00> : vector<64x64xf32>
      %182 = tpu.matmul %180, %181, %cst_86 {dimension_numbers = #tpu.dot_dimension_numbers<[0], [0], [1], [1], [0, 1, 1, 1], [], []>} : vector<64x64xf32>, vector<64x64xf32>, vector<64x64xf32> -> vector<64x64xf32>
      %c0_87 = arith.constant 0 : index
      %c0_88 = arith.constant 0 : index
      %183 = vector.load %arg7[%c0_87, %c0_88] : memref<64x64xf32, #tpu.memory_space<vmem>>, vector<64x64xf32>
      tpu.vector_store %arg7[%c0_87, %c0_88], %182 {strides = array<i32>} : memref<64x64xf32, #tpu.memory_space<vmem>>, vector<64x64xf32>,
      %c0_89 = arith.constant 0 : index
      %c0_90 = arith.constant 0 : index
      %184 = vector.load %arg8[%c0_89, %c0_90] : memref<64x64xf32, #tpu.memory_space<vmem>>, vector<64x64xf32>
      %cst_91 = arith.constant dense<0.000000e+00> : vector<64x64xf32>
      %185 = tpu.matmul %184, %180, %cst_91 {dimension_numbers = #tpu.dot_dimension_numbers<[1], [0], [0], [1], [0, 0, 1, 1], [], []>} : vector<64x64xf32>, vector<64x64xf32>, vector<64x64xf32> -> vector<64x64xf32>
      %c0_92 = arith.constant 0 : index
      %c0_93 = arith.constant 0 : index
      %186 = vector.load %arg8[%c0_92, %c0_93] : memref<64x64xf32, #tpu.memory_space<vmem>>, vector<64x64xf32>
      tpu.vector_store %arg8[%c0_92, %c0_93], %185 {strides = array<i32>} : memref<64x64xf32, #tpu.memory_space<vmem>>, vector<64x64xf32>,
      %c2 = arith.constant 2 : index
      %c0_94 = arith.constant 0 : index
      %c0_95 = arith.constant 0 : index
      %187 = vector.load %arg2[%c2, %c0_94, %c0_95] : memref<7x64x64xf32, #tpu.memory_space<vmem>>, vector<1x64x64xf32>
      %188 = vector.shape_cast %187 : vector<1x64x64xf32> to vector<64x64xf32>
      %189 = math.absf %188 : vector<64x64xf32>
      %c0_96 = arith.constant 0 : index
      %c0_97 = arith.constant 0 : index
      %190 = vector.load %arg7[%c0_96, %c0_97] : memref<64x64xf32, #tpu.memory_space<vmem>>, vector<64x64xf32>
      %191 = arith.mulf %190, %4 : vector<64x64xf32>
      %cst_98 = arith.constant dense<0.000000e+00> : vector<64xf32>
      %192 = vector.multi_reduction <add>, %191, %cst_98 [1] : vector<64x64xf32> to vector<64xf32>
      %193 = vector.shape_cast %192 : vector<64xf32> to vector<64x1xf32>
      %cst_99 = arith.constant dense<0.000000e+00> : vector<64xf32>
      %194 = vector.multi_reduction <add>, %191, %cst_99 [0] : vector<64x64xf32> to vector<64xf32>
      %195 = vector.shape_cast %194 : vector<64xf32> to vector<1x64xf32>
      %196 = arith.mulf %190, %188 : vector<64x64xf32>
      %cst_100 = arith.constant dense<0.000000e+00> : vector<64xf32>
      %197 = vector.multi_reduction <add>, %196, %cst_100 [0] : vector<64x64xf32> to vector<64xf32>
      %198 = vector.shape_cast %197 : vector<64xf32> to vector<1x64xf32>
      %199 = vector.broadcast %193 : vector<64x1xf32> to vector<64x64xf32>
      %200 = arith.mulf %189, %199 : vector<64x64xf32>
      %cst_101 = arith.constant dense<0.000000e+00> : vector<64xf32>
      %201 = vector.multi_reduction <add>, %200, %cst_101 [0] : vector<64x64xf32> to vector<64xf32>
      %202 = vector.shape_cast %201 : vector<64xf32> to vector<1x64xf32>
      %203 = math.absf %198 : vector<1x64xf32>
      %cst_102 = arith.constant 9.99999996E-13 : f32
      %204 = vector.broadcast %cst_102 : f32 to vector<1x64xf32>
      %205 = arith.cmpf ogt, %203, %204 : vector<1x64xf32>
      %cst_103 = arith.constant 1.000000e+00 : f32
      %206 = vector.broadcast %cst_103 : f32 to vector<1x64xf32>
      %207 = arith.select %205, %198, %206 : vector<1x64xi1>, vector<1x64xf32>
      %208 = arith.subf %195, %202 : vector<1x64xf32>
      %cst_104 = arith.constant 2.000000e+00 : f32
      %209 = vector.broadcast %cst_104 : f32 to vector<1x64xf32>
      %210 = arith.mulf %209, %207 : vector<1x64xf32>
      %211 = arith.divf %208, %210 : vector<1x64xf32>
      %cst_105 = arith.constant 0.000000e+00 : f32
      %212 = vector.broadcast %cst_105 : f32 to vector<1x64xf32>
      %213 = arith.cmpf oge, %211, %212 : vector<1x64xf32>
      %cst_106 = arith.constant 1.000000e+00 : f32
      %cst_107 = arith.constant -1.000000e+00 : f32
      %214 = vector.broadcast %cst_106 : f32 to vector<1x64xf32>
      %215 = vector.broadcast %cst_107 : f32 to vector<1x64xf32>
      %216 = arith.select %213, %214, %215 : vector<1x64xi1>, vector<1x64xf32>
      %217 = math.absf %211 : vector<1x64xf32>
      %218 = arith.mulf %211, %211 : vector<1x64xf32>
      %cst_108 = arith.constant 1.000000e+00 : f32
      %219 = vector.broadcast %cst_108 : f32 to vector<1x64xf32>
      %220 = arith.addf %219, %218 : vector<1x64xf32>
      %221 = math.sqrt %220 : vector<1x64xf32>
      %222 = arith.addf %217, %221 : vector<1x64xf32>
      %223 = arith.divf %216, %222 : vector<1x64xf32>
      %224 = arith.mulf %223, %223 : vector<1x64xf32>
      %cst_109 = arith.constant 1.000000e+00 : f32
      %225 = vector.broadcast %cst_109 : f32 to vector<1x64xf32>
      %226 = arith.addf %225, %224 : vector<1x64xf32>
      %227 = math.rsqrt %226 : vector<1x64xf32>
      %228 = arith.mulf %223, %227 : vector<1x64xf32>
      %cst_110 = arith.constant 1.000000e+00 : f32
      %229 = vector.broadcast %cst_110 : f32 to vector<1x64xf32>
      %230 = arith.select %205, %227, %229 : vector<1x64xi1>, vector<1x64xf32>
      %cst_111 = arith.constant 0.000000e+00 : f32
      %231 = vector.broadcast %cst_111 : f32 to vector<1x64xf32>
      %232 = arith.select %205, %228, %231 : vector<1x64xi1>, vector<1x64xf32>
      %233 = vector.broadcast %230 : vector<1x64xf32> to vector<64x64xf32>
      %234 = arith.mulf %4, %233 : vector<64x64xf32>
      %235 = vector.broadcast %232 : vector<1x64xf32> to vector<64x64xf32>
      %236 = arith.mulf %188, %235 : vector<64x64xf32>
      %237 = arith.addf %234, %236 : vector<64x64xf32>
      %cst_112 = arith.constant dense<0.000000e+00> : vector<64x64xf32>
      %238 = tpu.matmul %190, %237, %cst_112 {dimension_numbers = #tpu.dot_dimension_numbers<[1], [0], [0], [1], [0, 0, 1, 1], [], []>} : vector<64x64xf32>, vector<64x64xf32>, vector<64x64xf32> -> vector<64x64xf32>
      %cst_113 = arith.constant dense<0.000000e+00> : vector<64x64xf32>
      %239 = tpu.matmul %237, %238, %cst_113 {dimension_numbers = #tpu.dot_dimension_numbers<[0], [0], [1], [1], [0, 1, 1, 1], [], []>} : vector<64x64xf32>, vector<64x64xf32>, vector<64x64xf32> -> vector<64x64xf32>
      %c0_114 = arith.constant 0 : index
      %c0_115 = arith.constant 0 : index
      %240 = vector.load %arg7[%c0_114, %c0_115] : memref<64x64xf32, #tpu.memory_space<vmem>>, vector<64x64xf32>
      tpu.vector_store %arg7[%c0_114, %c0_115], %239 {strides = array<i32>} : memref<64x64xf32, #tpu.memory_space<vmem>>, vector<64x64xf32>,
      %c0_116 = arith.constant 0 : index
      %c0_117 = arith.constant 0 : index
      %241 = vector.load %arg8[%c0_116, %c0_117] : memref<64x64xf32, #tpu.memory_space<vmem>>, vector<64x64xf32>
      %cst_118 = arith.constant dense<0.000000e+00> : vector<64x64xf32>
      %242 = tpu.matmul %241, %237, %cst_118 {dimension_numbers = #tpu.dot_dimension_numbers<[1], [0], [0], [1], [0, 0, 1, 1], [], []>} : vector<64x64xf32>, vector<64x64xf32>, vector<64x64xf32> -> vector<64x64xf32>
      %c0_119 = arith.constant 0 : index
      %c0_120 = arith.constant 0 : index
      %243 = vector.load %arg8[%c0_119, %c0_120] : memref<64x64xf32, #tpu.memory_space<vmem>>, vector<64x64xf32>
      tpu.vector_store %arg8[%c0_119, %c0_120], %242 {strides = array<i32>} : memref<64x64xf32, #tpu.memory_space<vmem>>, vector<64x64xf32>,
      %c3 = arith.constant 3 : index
      %c0_121 = arith.constant 0 : index
      %c0_122 = arith.constant 0 : index
      %244 = vector.load %arg2[%c3, %c0_121, %c0_122] : memref<7x64x64xf32, #tpu.memory_space<vmem>>, vector<1x64x64xf32>
      %245 = vector.shape_cast %244 : vector<1x64x64xf32> to vector<64x64xf32>
      %246 = math.absf %245 : vector<64x64xf32>
      %c0_123 = arith.constant 0 : index
      %c0_124 = arith.constant 0 : index
      %247 = vector.load %arg7[%c0_123, %c0_124] : memref<64x64xf32, #tpu.memory_space<vmem>>, vector<64x64xf32>
      %248 = arith.mulf %247, %4 : vector<64x64xf32>
      %cst_125 = arith.constant dense<0.000000e+00> : vector<64xf32>
      %249 = vector.multi_reduction <add>, %248, %cst_125 [1] : vector<64x64xf32> to vector<64xf32>
      %250 = vector.shape_cast %249 : vector<64xf32> to vector<64x1xf32>
      %cst_126 = arith.constant dense<0.000000e+00> : vector<64xf32>
      %251 = vector.multi_reduction <add>, %248, %cst_126 [0] : vector<64x64xf32> to vector<64xf32>
      %252 = vector.shape_cast %251 : vector<64xf32> to vector<1x64xf32>
      %253 = arith.mulf %247, %245 : vector<64x64xf32>
      %cst_127 = arith.constant dense<0.000000e+00> : vector<64xf32>
      %254 = vector.multi_reduction <add>, %253, %cst_127 [0] : vector<64x64xf32> to vector<64xf32>
      %255 = vector.shape_cast %254 : vector<64xf32> to vector<1x64xf32>
      %256 = vector.broadcast %250 : vector<64x1xf32> to vector<64x64xf32>
      %257 = arith.mulf %246, %256 : vector<64x64xf32>
      %cst_128 = arith.constant dense<0.000000e+00> : vector<64xf32>
      %258 = vector.multi_reduction <add>, %257, %cst_128 [0] : vector<64x64xf32> to vector<64xf32>
      %259 = vector.shape_cast %258 : vector<64xf32> to vector<1x64xf32>
      %260 = math.absf %255 : vector<1x64xf32>
      %cst_129 = arith.constant 9.99999996E-13 : f32
      %261 = vector.broadcast %cst_129 : f32 to vector<1x64xf32>
      %262 = arith.cmpf ogt, %260, %261 : vector<1x64xf32>
      %cst_130 = arith.constant 1.000000e+00 : f32
      %263 = vector.broadcast %cst_130 : f32 to vector<1x64xf32>
      %264 = arith.select %262, %255, %263 : vector<1x64xi1>, vector<1x64xf32>
      %265 = arith.subf %252, %259 : vector<1x64xf32>
      %cst_131 = arith.constant 2.000000e+00 : f32
      %266 = vector.broadcast %cst_131 : f32 to vector<1x64xf32>
      %267 = arith.mulf %266, %264 : vector<1x64xf32>
      %268 = arith.divf %265, %267 : vector<1x64xf32>
      %cst_132 = arith.constant 0.000000e+00 : f32
      %269 = vector.broadcast %cst_132 : f32 to vector<1x64xf32>
      %270 = arith.cmpf oge, %268, %269 : vector<1x64xf32>
      %cst_133 = arith.constant 1.000000e+00 : f32
      %cst_134 = arith.constant -1.000000e+00 : f32
      %271 = vector.broadcast %cst_133 : f32 to vector<1x64xf32>
      %272 = vector.broadcast %cst_134 : f32 to vector<1x64xf32>
      %273 = arith.select %270, %271, %272 : vector<1x64xi1>, vector<1x64xf32>
      %274 = math.absf %268 : vector<1x64xf32>
      %275 = arith.mulf %268, %268 : vector<1x64xf32>
      %cst_135 = arith.constant 1.000000e+00 : f32
      %276 = vector.broadcast %cst_135 : f32 to vector<1x64xf32>
      %277 = arith.addf %276, %275 : vector<1x64xf32>
      %278 = math.sqrt %277 : vector<1x64xf32>
      %279 = arith.addf %274, %278 : vector<1x64xf32>
      %280 = arith.divf %273, %279 : vector<1x64xf32>
      %281 = arith.mulf %280, %280 : vector<1x64xf32>
      %cst_136 = arith.constant 1.000000e+00 : f32
      %282 = vector.broadcast %cst_136 : f32 to vector<1x64xf32>
      %283 = arith.addf %282, %281 : vector<1x64xf32>
      %284 = math.rsqrt %283 : vector<1x64xf32>
      %285 = arith.mulf %280, %284 : vector<1x64xf32>
      %cst_137 = arith.constant 1.000000e+00 : f32
      %286 = vector.broadcast %cst_137 : f32 to vector<1x64xf32>
      %287 = arith.select %262, %284, %286 : vector<1x64xi1>, vector<1x64xf32>
      %cst_138 = arith.constant 0.000000e+00 : f32
      %288 = vector.broadcast %cst_138 : f32 to vector<1x64xf32>
      %289 = arith.select %262, %285, %288 : vector<1x64xi1>, vector<1x64xf32>
      %290 = vector.broadcast %287 : vector<1x64xf32> to vector<64x64xf32>
      %291 = arith.mulf %4, %290 : vector<64x64xf32>
      %292 = vector.broadcast %289 : vector<1x64xf32> to vector<64x64xf32>
      %293 = arith.mulf %245, %292 : vector<64x64xf32>
      %294 = arith.addf %291, %293 : vector<64x64xf32>
      %cst_139 = arith.constant dense<0.000000e+00> : vector<64x64xf32>
      %295 = tpu.matmul %247, %294, %cst_139 {dimension_numbers = #tpu.dot_dimension_numbers<[1], [0], [0], [1], [0, 0, 1, 1], [], []>} : vector<64x64xf32>, vector<64x64xf32>, vector<64x64xf32> -> vector<64x64xf32>
      %cst_140 = arith.constant dense<0.000000e+00> : vector<64x64xf32>
      %296 = tpu.matmul %294, %295, %cst_140 {dimension_numbers = #tpu.dot_dimension_numbers<[0], [0], [1], [1], [0, 1, 1, 1], [], []>} : vector<64x64xf32>, vector<64x64xf32>, vector<64x64xf32> -> vector<64x64xf32>
      %c0_141 = arith.constant 0 : index
      %c0_142 = arith.constant 0 : index
      %297 = vector.load %arg7[%c0_141, %c0_142] : memref<64x64xf32, #tpu.memory_space<vmem>>, vector<64x64xf32>
      tpu.vector_store %arg7[%c0_141, %c0_142], %296 {strides = array<i32>} : memref<64x64xf32, #tpu.memory_space<vmem>>, vector<64x64xf32>,
      %c0_143 = arith.constant 0 : index
      %c0_144 = arith.constant 0 : index
      %298 = vector.load %arg8[%c0_143, %c0_144] : memref<64x64xf32, #tpu.memory_space<vmem>>, vector<64x64xf32>
      %cst_145 = arith.constant dense<0.000000e+00> : vector<64x64xf32>
      %299 = tpu.matmul %298, %294, %cst_145 {dimension_numbers = #tpu.dot_dimension_numbers<[1], [0], [0], [1], [0, 0, 1, 1], [], []>} : vector<64x64xf32>, vector<64x64xf32>, vector<64x64xf32> -> vector<64x64xf32>
      %c0_146 = arith.constant 0 : index
      %c0_147 = arith.constant 0 : index
      %300 = vector.load %arg8[%c0_146, %c0_147] : memref<64x64xf32, #tpu.memory_space<vmem>>, vector<64x64xf32>
      tpu.vector_store %arg8[%c0_146, %c0_147], %299 {strides = array<i32>} : memref<64x64xf32, #tpu.memory_space<vmem>>, vector<64x64xf32>,
      %c4 = arith.constant 4 : index
      %c0_148 = arith.constant 0 : index
      %c0_149 = arith.constant 0 : index
      %301 = vector.load %arg2[%c4, %c0_148, %c0_149] : memref<7x64x64xf32, #tpu.memory_space<vmem>>, vector<1x64x64xf32>
      %302 = vector.shape_cast %301 : vector<1x64x64xf32> to vector<64x64xf32>
      %303 = math.absf %302 : vector<64x64xf32>
      %c0_150 = arith.constant 0 : index
      %c0_151 = arith.constant 0 : index
      %304 = vector.load %arg7[%c0_150, %c0_151] : memref<64x64xf32, #tpu.memory_space<vmem>>, vector<64x64xf32>
      %305 = arith.mulf %304, %4 : vector<64x64xf32>
      %cst_152 = arith.constant dense<0.000000e+00> : vector<64xf32>
      %306 = vector.multi_reduction <add>, %305, %cst_152 [1] : vector<64x64xf32> to vector<64xf32>
      %307 = vector.shape_cast %306 : vector<64xf32> to vector<64x1xf32>
      %cst_153 = arith.constant dense<0.000000e+00> : vector<64xf32>
      %308 = vector.multi_reduction <add>, %305, %cst_153 [0] : vector<64x64xf32> to vector<64xf32>
      %309 = vector.shape_cast %308 : vector<64xf32> to vector<1x64xf32>
      %310 = arith.mulf %304, %302 : vector<64x64xf32>
      %cst_154 = arith.constant dense<0.000000e+00> : vector<64xf32>
      %311 = vector.multi_reduction <add>, %310, %cst_154 [0] : vector<64x64xf32> to vector<64xf32>
      %312 = vector.shape_cast %311 : vector<64xf32> to vector<1x64xf32>
      %313 = vector.broadcast %307 : vector<64x1xf32> to vector<64x64xf32>
      %314 = arith.mulf %303, %313 : vector<64x64xf32>
      %cst_155 = arith.constant dense<0.000000e+00> : vector<64xf32>
      %315 = vector.multi_reduction <add>, %314, %cst_155 [0] : vector<64x64xf32> to vector<64xf32>
      %316 = vector.shape_cast %315 : vector<64xf32> to vector<1x64xf32>
      %317 = math.absf %312 : vector<1x64xf32>
      %cst_156 = arith.constant 9.99999996E-13 : f32
      %318 = vector.broadcast %cst_156 : f32 to vector<1x64xf32>
      %319 = arith.cmpf ogt, %317, %318 : vector<1x64xf32>
      %cst_157 = arith.constant 1.000000e+00 : f32
      %320 = vector.broadcast %cst_157 : f32 to vector<1x64xf32>
      %321 = arith.select %319, %312, %320 : vector<1x64xi1>, vector<1x64xf32>
      %322 = arith.subf %309, %316 : vector<1x64xf32>
      %cst_158 = arith.constant 2.000000e+00 : f32
      %323 = vector.broadcast %cst_158 : f32 to vector<1x64xf32>
      %324 = arith.mulf %323, %321 : vector<1x64xf32>
      %325 = arith.divf %322, %324 : vector<1x64xf32>
      %cst_159 = arith.constant 0.000000e+00 : f32
      %326 = vector.broadcast %cst_159 : f32 to vector<1x64xf32>
      %327 = arith.cmpf oge, %325, %326 : vector<1x64xf32>
      %cst_160 = arith.constant 1.000000e+00 : f32
      %cst_161 = arith.constant -1.000000e+00 : f32
      %328 = vector.broadcast %cst_160 : f32 to vector<1x64xf32>
      %329 = vector.broadcast %cst_161 : f32 to vector<1x64xf32>
      %330 = arith.select %327, %328, %329 : vector<1x64xi1>, vector<1x64xf32>
      %331 = math.absf %325 : vector<1x64xf32>
      %332 = arith.mulf %325, %325 : vector<1x64xf32>
      %cst_162 = arith.constant 1.000000e+00 : f32
      %333 = vector.broadcast %cst_162 : f32 to vector<1x64xf32>
      %334 = arith.addf %333, %332 : vector<1x64xf32>
      %335 = math.sqrt %334 : vector<1x64xf32>
      %336 = arith.addf %331, %335 : vector<1x64xf32>
      %337 = arith.divf %330, %336 : vector<1x64xf32>
      %338 = arith.mulf %337, %337 : vector<1x64xf32>
      %cst_163 = arith.constant 1.000000e+00 : f32
      %339 = vector.broadcast %cst_163 : f32 to vector<1x64xf32>
      %340 = arith.addf %339, %338 : vector<1x64xf32>
      %341 = math.rsqrt %340 : vector<1x64xf32>
      %342 = arith.mulf %337, %341 : vector<1x64xf32>
      %cst_164 = arith.constant 1.000000e+00 : f32
      %343 = vector.broadcast %cst_164 : f32 to vector<1x64xf32>
      %344 = arith.select %319, %341, %343 : vector<1x64xi1>, vector<1x64xf32>
      %cst_165 = arith.constant 0.000000e+00 : f32
      %345 = vector.broadcast %cst_165 : f32 to vector<1x64xf32>
      %346 = arith.select %319, %342, %345 : vector<1x64xi1>, vector<1x64xf32>
      %347 = vector.broadcast %344 : vector<1x64xf32> to vector<64x64xf32>
      %348 = arith.mulf %4, %347 : vector<64x64xf32>
      %349 = vector.broadcast %346 : vector<1x64xf32> to vector<64x64xf32>
      %350 = arith.mulf %302, %349 : vector<64x64xf32>
      %351 = arith.addf %348, %350 : vector<64x64xf32>
      %cst_166 = arith.constant dense<0.000000e+00> : vector<64x64xf32>
      %352 = tpu.matmul %304, %351, %cst_166 {dimension_numbers = #tpu.dot_dimension_numbers<[1], [0], [0], [1], [0, 0, 1, 1], [], []>} : vector<64x64xf32>, vector<64x64xf32>, vector<64x64xf32> -> vector<64x64xf32>
      %cst_167 = arith.constant dense<0.000000e+00> : vector<64x64xf32>
      %353 = tpu.matmul %351, %352, %cst_167 {dimension_numbers = #tpu.dot_dimension_numbers<[0], [0], [1], [1], [0, 1, 1, 1], [], []>} : vector<64x64xf32>, vector<64x64xf32>, vector<64x64xf32> -> vector<64x64xf32>
      %c0_168 = arith.constant 0 : index
      %c0_169 = arith.constant 0 : index
      %354 = vector.load %arg7[%c0_168, %c0_169] : memref<64x64xf32, #tpu.memory_space<vmem>>, vector<64x64xf32>
      tpu.vector_store %arg7[%c0_168, %c0_169], %353 {strides = array<i32>} : memref<64x64xf32, #tpu.memory_space<vmem>>, vector<64x64xf32>,
      %c0_170 = arith.constant 0 : index
      %c0_171 = arith.constant 0 : index
      %355 = vector.load %arg8[%c0_170, %c0_171] : memref<64x64xf32, #tpu.memory_space<vmem>>, vector<64x64xf32>
      %cst_172 = arith.constant dense<0.000000e+00> : vector<64x64xf32>
      %356 = tpu.matmul %355, %351, %cst_172 {dimension_numbers = #tpu.dot_dimension_numbers<[1], [0], [0], [1], [0, 0, 1, 1], [], []>} : vector<64x64xf32>, vector<64x64xf32>, vector<64x64xf32> -> vector<64x64xf32>
      %c0_173 = arith.constant 0 : index
      %c0_174 = arith.constant 0 : index
      %357 = vector.load %arg8[%c0_173, %c0_174] : memref<64x64xf32, #tpu.memory_space<vmem>>, vector<64x64xf32>
      tpu.vector_store %arg8[%c0_173, %c0_174], %356 {strides = array<i32>} : memref<64x64xf32, #tpu.memory_space<vmem>>, vector<64x64xf32>,
      %c5 = arith.constant 5 : index
      %c0_175 = arith.constant 0 : index
      %c0_176 = arith.constant 0 : index
      %358 = vector.load %arg2[%c5, %c0_175, %c0_176] : memref<7x64x64xf32, #tpu.memory_space<vmem>>, vector<1x64x64xf32>
      %359 = vector.shape_cast %358 : vector<1x64x64xf32> to vector<64x64xf32>
      %360 = math.absf %359 : vector<64x64xf32>
      %c0_177 = arith.constant 0 : index
      %c0_178 = arith.constant 0 : index
      %361 = vector.load %arg7[%c0_177, %c0_178] : memref<64x64xf32, #tpu.memory_space<vmem>>, vector<64x64xf32>
      %362 = arith.mulf %361, %4 : vector<64x64xf32>
      %cst_179 = arith.constant dense<0.000000e+00> : vector<64xf32>
      %363 = vector.multi_reduction <add>, %362, %cst_179 [1] : vector<64x64xf32> to vector<64xf32>
      %364 = vector.shape_cast %363 : vector<64xf32> to vector<64x1xf32>
      %cst_180 = arith.constant dense<0.000000e+00> : vector<64xf32>
      %365 = vector.multi_reduction <add>, %362, %cst_180 [0] : vector<64x64xf32> to vector<64xf32>
      %366 = vector.shape_cast %365 : vector<64xf32> to vector<1x64xf32>
      %367 = arith.mulf %361, %359 : vector<64x64xf32>
      %cst_181 = arith.constant dense<0.000000e+00> : vector<64xf32>
      %368 = vector.multi_reduction <add>, %367, %cst_181 [0] : vector<64x64xf32> to vector<64xf32>
      %369 = vector.shape_cast %368 : vector<64xf32> to vector<1x64xf32>
      %370 = vector.broadcast %364 : vector<64x1xf32> to vector<64x64xf32>
      %371 = arith.mulf %360, %370 : vector<64x64xf32>
      %cst_182 = arith.constant dense<0.000000e+00> : vector<64xf32>
      %372 = vector.multi_reduction <add>, %371, %cst_182 [0] : vector<64x64xf32> to vector<64xf32>
      %373 = vector.shape_cast %372 : vector<64xf32> to vector<1x64xf32>
      %374 = math.absf %369 : vector<1x64xf32>
      %cst_183 = arith.constant 9.99999996E-13 : f32
      %375 = vector.broadcast %cst_183 : f32 to vector<1x64xf32>
      %376 = arith.cmpf ogt, %374, %375 : vector<1x64xf32>
      %cst_184 = arith.constant 1.000000e+00 : f32
      %377 = vector.broadcast %cst_184 : f32 to vector<1x64xf32>
      %378 = arith.select %376, %369, %377 : vector<1x64xi1>, vector<1x64xf32>
      %379 = arith.subf %366, %373 : vector<1x64xf32>
      %cst_185 = arith.constant 2.000000e+00 : f32
      %380 = vector.broadcast %cst_185 : f32 to vector<1x64xf32>
      %381 = arith.mulf %380, %378 : vector<1x64xf32>
      %382 = arith.divf %379, %381 : vector<1x64xf32>
      %cst_186 = arith.constant 0.000000e+00 : f32
      %383 = vector.broadcast %cst_186 : f32 to vector<1x64xf32>
      %384 = arith.cmpf oge, %382, %383 : vector<1x64xf32>
      %cst_187 = arith.constant 1.000000e+00 : f32
      %cst_188 = arith.constant -1.000000e+00 : f32
      %385 = vector.broadcast %cst_187 : f32 to vector<1x64xf32>
      %386 = vector.broadcast %cst_188 : f32 to vector<1x64xf32>
      %387 = arith.select %384, %385, %386 : vector<1x64xi1>, vector<1x64xf32>
      %388 = math.absf %382 : vector<1x64xf32>
      %389 = arith.mulf %382, %382 : vector<1x64xf32>
      %cst_189 = arith.constant 1.000000e+00 : f32
      %390 = vector.broadcast %cst_189 : f32 to vector<1x64xf32>
      %391 = arith.addf %390, %389 : vector<1x64xf32>
      %392 = math.sqrt %391 : vector<1x64xf32>
      %393 = arith.addf %388, %392 : vector<1x64xf32>
      %394 = arith.divf %387, %393 : vector<1x64xf32>
      %395 = arith.mulf %394, %394 : vector<1x64xf32>
      %cst_190 = arith.constant 1.000000e+00 : f32
      %396 = vector.broadcast %cst_190 : f32 to vector<1x64xf32>
      %397 = arith.addf %396, %395 : vector<1x64xf32>
      %398 = math.rsqrt %397 : vector<1x64xf32>
      %399 = arith.mulf %394, %398 : vector<1x64xf32>
      %cst_191 = arith.constant 1.000000e+00 : f32
      %400 = vector.broadcast %cst_191 : f32 to vector<1x64xf32>
      %401 = arith.select %376, %398, %400 : vector<1x64xi1>, vector<1x64xf32>
      %cst_192 = arith.constant 0.000000e+00 : f32
      %402 = vector.broadcast %cst_192 : f32 to vector<1x64xf32>
      %403 = arith.select %376, %399, %402 : vector<1x64xi1>, vector<1x64xf32>
      %404 = vector.broadcast %401 : vector<1x64xf32> to vector<64x64xf32>
      %405 = arith.mulf %4, %404 : vector<64x64xf32>
      %406 = vector.broadcast %403 : vector<1x64xf32> to vector<64x64xf32>
      %407 = arith.mulf %359, %406 : vector<64x64xf32>
      %408 = arith.addf %405, %407 : vector<64x64xf32>
      %cst_193 = arith.constant dense<0.000000e+00> : vector<64x64xf32>
      %409 = tpu.matmul %361, %408, %cst_193 {dimension_numbers = #tpu.dot_dimension_numbers<[1], [0], [0], [1], [0, 0, 1, 1], [], []>} : vector<64x64xf32>, vector<64x64xf32>, vector<64x64xf32> -> vector<64x64xf32>
      %cst_194 = arith.constant dense<0.000000e+00> : vector<64x64xf32>
      %410 = tpu.matmul %408, %409, %cst_194 {dimension_numbers = #tpu.dot_dimension_numbers<[0], [0], [1], [1], [0, 1, 1, 1], [], []>} : vector<64x64xf32>, vector<64x64xf32>, vector<64x64xf32> -> vector<64x64xf32>
      %c0_195 = arith.constant 0 : index
      %c0_196 = arith.constant 0 : index
      %411 = vector.load %arg7[%c0_195, %c0_196] : memref<64x64xf32, #tpu.memory_space<vmem>>, vector<64x64xf32>
      tpu.vector_store %arg7[%c0_195, %c0_196], %410 {strides = array<i32>} : memref<64x64xf32, #tpu.memory_space<vmem>>, vector<64x64xf32>,
      %c0_197 = arith.constant 0 : index
      %c0_198 = arith.constant 0 : index
      %412 = vector.load %arg8[%c0_197, %c0_198] : memref<64x64xf32, #tpu.memory_space<vmem>>, vector<64x64xf32>
      %cst_199 = arith.constant dense<0.000000e+00> : vector<64x64xf32>
      %413 = tpu.matmul %412, %408, %cst_199 {dimension_numbers = #tpu.dot_dimension_numbers<[1], [0], [0], [1], [0, 0, 1, 1], [], []>} : vector<64x64xf32>, vector<64x64xf32>, vector<64x64xf32> -> vector<64x64xf32>
      %c0_200 = arith.constant 0 : index
      %c0_201 = arith.constant 0 : index
      %414 = vector.load %arg8[%c0_200, %c0_201] : memref<64x64xf32, #tpu.memory_space<vmem>>, vector<64x64xf32>
      tpu.vector_store %arg8[%c0_200, %c0_201], %413 {strides = array<i32>} : memref<64x64xf32, #tpu.memory_space<vmem>>, vector<64x64xf32>,
      %c6 = arith.constant 6 : index
      %c0_202 = arith.constant 0 : index
      %c0_203 = arith.constant 0 : index
      %415 = vector.load %arg2[%c6, %c0_202, %c0_203] : memref<7x64x64xf32, #tpu.memory_space<vmem>>, vector<1x64x64xf32>
      %416 = vector.shape_cast %415 : vector<1x64x64xf32> to vector<64x64xf32>
      %417 = math.absf %416 : vector<64x64xf32>
      %c0_204 = arith.constant 0 : index
      %c0_205 = arith.constant 0 : index
      %418 = vector.load %arg7[%c0_204, %c0_205] : memref<64x64xf32, #tpu.memory_space<vmem>>, vector<64x64xf32>
      %419 = arith.mulf %418, %4 : vector<64x64xf32>
      %cst_206 = arith.constant dense<0.000000e+00> : vector<64xf32>
      %420 = vector.multi_reduction <add>, %419, %cst_206 [1] : vector<64x64xf32> to vector<64xf32>
      %421 = vector.shape_cast %420 : vector<64xf32> to vector<64x1xf32>
      %cst_207 = arith.constant dense<0.000000e+00> : vector<64xf32>
      %422 = vector.multi_reduction <add>, %419, %cst_207 [0] : vector<64x64xf32> to vector<64xf32>
      %423 = vector.shape_cast %422 : vector<64xf32> to vector<1x64xf32>
      %424 = arith.mulf %418, %416 : vector<64x64xf32>
      %cst_208 = arith.constant dense<0.000000e+00> : vector<64xf32>
      %425 = vector.multi_reduction <add>, %424, %cst_208 [0] : vector<64x64xf32> to vector<64xf32>
      %426 = vector.shape_cast %425 : vector<64xf32> to vector<1x64xf32>
      %427 = vector.broadcast %421 : vector<64x1xf32> to vector<64x64xf32>
      %428 = arith.mulf %417, %427 : vector<64x64xf32>
      %cst_209 = arith.constant dense<0.000000e+00> : vector<64xf32>
      %429 = vector.multi_reduction <add>, %428, %cst_209 [0] : vector<64x64xf32> to vector<64xf32>
      %430 = vector.shape_cast %429 : vector<64xf32> to vector<1x64xf32>
      %431 = math.absf %426 : vector<1x64xf32>
      %cst_210 = arith.constant 9.99999996E-13 : f32
      %432 = vector.broadcast %cst_210 : f32 to vector<1x64xf32>
      %433 = arith.cmpf ogt, %431, %432 : vector<1x64xf32>
      %cst_211 = arith.constant 1.000000e+00 : f32
      %434 = vector.broadcast %cst_211 : f32 to vector<1x64xf32>
      %435 = arith.select %433, %426, %434 : vector<1x64xi1>, vector<1x64xf32>
      %436 = arith.subf %423, %430 : vector<1x64xf32>
      %cst_212 = arith.constant 2.000000e+00 : f32
      %437 = vector.broadcast %cst_212 : f32 to vector<1x64xf32>
      %438 = arith.mulf %437, %435 : vector<1x64xf32>
      %439 = arith.divf %436, %438 : vector<1x64xf32>
      %cst_213 = arith.constant 0.000000e+00 : f32
      %440 = vector.broadcast %cst_213 : f32 to vector<1x64xf32>
      %441 = arith.cmpf oge, %439, %440 : vector<1x64xf32>
      %cst_214 = arith.constant 1.000000e+00 : f32
      %cst_215 = arith.constant -1.000000e+00 : f32
      %442 = vector.broadcast %cst_214 : f32 to vector<1x64xf32>
      %443 = vector.broadcast %cst_215 : f32 to vector<1x64xf32>
      %444 = arith.select %441, %442, %443 : vector<1x64xi1>, vector<1x64xf32>
      %445 = math.absf %439 : vector<1x64xf32>
      %446 = arith.mulf %439, %439 : vector<1x64xf32>
      %cst_216 = arith.constant 1.000000e+00 : f32
      %447 = vector.broadcast %cst_216 : f32 to vector<1x64xf32>
      %448 = arith.addf %447, %446 : vector<1x64xf32>
      %449 = math.sqrt %448 : vector<1x64xf32>
      %450 = arith.addf %445, %449 : vector<1x64xf32>
      %451 = arith.divf %444, %450 : vector<1x64xf32>
      %452 = arith.mulf %451, %451 : vector<1x64xf32>
      %cst_217 = arith.constant 1.000000e+00 : f32
      %453 = vector.broadcast %cst_217 : f32 to vector<1x64xf32>
      %454 = arith.addf %453, %452 : vector<1x64xf32>
      %455 = math.rsqrt %454 : vector<1x64xf32>
      %456 = arith.mulf %451, %455 : vector<1x64xf32>
      %cst_218 = arith.constant 1.000000e+00 : f32
      %457 = vector.broadcast %cst_218 : f32 to vector<1x64xf32>
      %458 = arith.select %433, %455, %457 : vector<1x64xi1>, vector<1x64xf32>
      %cst_219 = arith.constant 0.000000e+00 : f32
      %459 = vector.broadcast %cst_219 : f32 to vector<1x64xf32>
      %460 = arith.select %433, %456, %459 : vector<1x64xi1>, vector<1x64xf32>
      %461 = vector.broadcast %458 : vector<1x64xf32> to vector<64x64xf32>
      %462 = arith.mulf %4, %461 : vector<64x64xf32>
      %463 = vector.broadcast %460 : vector<1x64xf32> to vector<64x64xf32>
      %464 = arith.mulf %416, %463 : vector<64x64xf32>
      %465 = arith.addf %462, %464 : vector<64x64xf32>
      %cst_220 = arith.constant dense<0.000000e+00> : vector<64x64xf32>
      %466 = tpu.matmul %418, %465, %cst_220 {dimension_numbers = #tpu.dot_dimension_numbers<[1], [0], [0], [1], [0, 0, 1, 1], [], []>} : vector<64x64xf32>, vector<64x64xf32>, vector<64x64xf32> -> vector<64x64xf32>
      %cst_221 = arith.constant dense<0.000000e+00> : vector<64x64xf32>
      %467 = tpu.matmul %465, %466, %cst_221 {dimension_numbers = #tpu.dot_dimension_numbers<[0], [0], [1], [1], [0, 1, 1, 1], [], []>} : vector<64x64xf32>, vector<64x64xf32>, vector<64x64xf32> -> vector<64x64xf32>
      %c0_222 = arith.constant 0 : index
      %c0_223 = arith.constant 0 : index
      %468 = vector.load %arg7[%c0_222, %c0_223] : memref<64x64xf32, #tpu.memory_space<vmem>>, vector<64x64xf32>
      tpu.vector_store %arg7[%c0_222, %c0_223], %467 {strides = array<i32>} : memref<64x64xf32, #tpu.memory_space<vmem>>, vector<64x64xf32>,
      %c0_224 = arith.constant 0 : index
      %c0_225 = arith.constant 0 : index
      %469 = vector.load %arg8[%c0_224, %c0_225] : memref<64x64xf32, #tpu.memory_space<vmem>>, vector<64x64xf32>
      %cst_226 = arith.constant dense<0.000000e+00> : vector<64x64xf32>
      %470 = tpu.matmul %469, %465, %cst_226 {dimension_numbers = #tpu.dot_dimension_numbers<[1], [0], [0], [1], [0, 0, 1, 1], [], []>} : vector<64x64xf32>, vector<64x64xf32>, vector<64x64xf32> -> vector<64x64xf32>
      %c0_227 = arith.constant 0 : index
      %c0_228 = arith.constant 0 : index
      %471 = vector.load %arg8[%c0_227, %c0_228] : memref<64x64xf32, #tpu.memory_space<vmem>>, vector<64x64xf32>
      tpu.vector_store %arg8[%c0_227, %c0_228], %470 {strides = array<i32>} : memref<64x64xf32, #tpu.memory_space<vmem>>, vector<64x64xf32>,
    }
    %c0_8 = arith.constant 0 : index
    %c0_9 = arith.constant 0 : index
    %13 = vector.load %arg7[%c0_8, %c0_9] : memref<64x64xf32, #tpu.memory_space<vmem>>, vector<64x64xf32>
    %c0_10 = arith.constant 0 : index
    %c0_11 = arith.constant 0 : index
    %14 = vector.load %arg8[%c0_10, %c0_11] : memref<64x64xf32, #tpu.memory_space<vmem>>, vector<64x64xf32>
    %c0_12 = arith.constant 0 : index
    %c0_13 = arith.constant 0 : index
    %15 = vector.load %arg3[%c0_12, %c0_13] : memref<64x64xf32, #tpu.memory_space<vmem>>, vector<64x64xf32>
    %16 = arith.mulf %13, %4 : vector<64x64xf32>
    %cst_14 = arith.constant dense<0.000000e+00> : vector<64xf32>
    %17 = vector.multi_reduction <add>, %16, %cst_14 [1] : vector<64x64xf32> to vector<64xf32>
    %18 = vector.shape_cast %17 : vector<64xf32> to vector<64x1xf32>
    %cst_15 = arith.constant dense<0.000000e+00> : vector<64xf32>
    %19 = vector.multi_reduction <add>, %16, %cst_15 [0] : vector<64x64xf32> to vector<64xf32>
    %20 = vector.shape_cast %19 : vector<64xf32> to vector<1x64xf32>
    %21 = vector.broadcast %20 : vector<1x64xf32> to vector<64x64xf32>
    %22 = vector.broadcast %18 : vector<64x1xf32> to vector<64x64xf32>
    %23 = arith.cmpf ogt, %21, %22 : vector<64x64xf32>
    %24 = vector.broadcast %20 : vector<1x64xf32> to vector<64x64xf32>
    %25 = vector.broadcast %18 : vector<64x1xf32> to vector<64x64xf32>
    %26 = arith.cmpf oeq, %24, %25 : vector<64x64xf32>
    %27 = arith.cmpi slt, %1, %0 : vector<64x64xi32>
    %28 = arith.andi %26, %27 : vector<64x64xi1>
    %29 = arith.ori %23, %28 : vector<64x64xi1>
    %30 = arith.extui %29 : vector<64x64xi1> to vector<64x64xi32>
    %31 = arith.sitofp %30 : vector<64x64xi32> to vector<64x64xf32>
    %32 = arith.mulf %15, %31 : vector<64x64xf32>
    %cst_16 = arith.constant dense<0.000000e+00> : vector<64xf32>
    %33 = vector.multi_reduction <add>, %32, %cst_16 [1] : vector<64x64xf32> to vector<64xf32>
    %34 = vector.shape_cast %33 : vector<64xf32> to vector<64x1xf32>
    %c0_17 = arith.constant 0 : index
    %c0_18 = arith.constant 0 : index
    %35 = vector.load %arg4[%c0_17, %c0_18] : memref<1x64xf32, #tpu.memory_space<vmem>>, vector<1x64xf32>
    %36 = vector.broadcast %35 : vector<1x64xf32> to vector<64x64xf32>
    %37 = vector.broadcast %34 : vector<64x1xf32> to vector<64x64xf32>
    %38 = arith.cmpf oeq, %36, %37 : vector<64x64xf32>
    %39 = arith.extui %38 : vector<64x64xi1> to vector<64x64xi32>
    %40 = arith.sitofp %39 : vector<64x64xi32> to vector<64x64xf32>
    %41 = arith.mulf %15, %40 : vector<64x64xf32>
    %cst_19 = arith.constant dense<0.000000e+00> : vector<64x64xf32>
    %42 = tpu.matmul %14, %41, %cst_19 {dimension_numbers = #tpu.dot_dimension_numbers<[1], [0], [0], [1], [0, 0, 1, 1], [], []>} : vector<64x64xf32>, vector<64x64xf32>, vector<64x64xf32> -> vector<64x64xf32>
    %43 = vector.broadcast %18 : vector<64x1xf32> to vector<64x64xf32>
    %44 = arith.mulf %43, %41 : vector<64x64xf32>
    %cst_20 = arith.constant dense<0.000000e+00> : vector<64xf32>
    %45 = vector.multi_reduction <add>, %44, %cst_20 [0] : vector<64x64xf32> to vector<64xf32>
    %46 = vector.shape_cast %45 : vector<64xf32> to vector<1x64xf32>
    %cst_21 = arith.constant 0.000000e+00 : f32
    %47 = vector.broadcast %cst_21 : f32 to vector<1x64xf32>
    %48 = arith.maximumf %46, %47 : vector<1x64xf32>
    %49 = math.sqrt %48 : vector<1x64xf32>
    %c0_22 = arith.constant 0 : index
    %c0_23 = arith.constant 0 : index
    %c0_24 = arith.constant 0 : index
    %50 = vector.load %arg1[%c0_22, %c0_23, %c0_24] : memref<1x16x64xf32, #tpu.memory_space<vmem>>, vector<1x16x64xf32>
    %51 = vector.shape_cast %50 : vector<1x16x64xf32> to vector<16x64xf32>
    %cst_25 = arith.constant dense<0.000000e+00> : vector<16x64xf32>
    %52 = tpu.matmul %51, %42, %cst_25 {dimension_numbers = #tpu.dot_dimension_numbers<[1], [0], [0], [1], [0, 0, 1, 1], [], []>} : vector<16x64xf32>, vector<64x64xf32>, vector<16x64xf32> -> vector<16x64xf32>
    %cst_26 = arith.constant 9.99999996E-13 : f32
    %53 = vector.broadcast %cst_26 : f32 to vector<1x64xf32>
    %54 = arith.cmpf ogt, %49, %53 : vector<1x64xf32>
    %cst_27 = arith.constant 9.99999996E-13 : f32
    %55 = vector.broadcast %cst_27 : f32 to vector<1x64xf32>
    %56 = arith.maximumf %49, %55 : vector<1x64xf32>
    %57 = tpu.reciprocal %56 {approx = true} : vector<1x64xf32> -> vector<1x64xf32>
    %cst_28 = arith.constant 0.000000e+00 : f32
    %58 = vector.broadcast %cst_28 : f32 to vector<1x64xf32>
    %59 = arith.select %54, %57, %58 : vector<1x64xi1>, vector<1x64xf32>
    %60 = vector.broadcast %59 : vector<1x64xf32> to vector<16x64xf32>
    %61 = arith.mulf %52, %60 : vector<16x64xf32>
    %c0_29 = arith.constant 0 : index
    %c0_30 = arith.constant 0 : index
    %62 = vector.load %arg5[%c0_29, %c0_30] : memref<8x64xf32, #tpu.memory_space<vmem>>, vector<8x64xf32>
    %cst_31 = arith.constant dense<0.000000e+00> : vector<8x64xf32>
    %63 = tpu.matmul %62, %42, %cst_31 {dimension_numbers = #tpu.dot_dimension_numbers<[1], [0], [0], [1], [0, 0, 1, 1], [], []>} : vector<8x64xf32>, vector<64x64xf32>, vector<8x64xf32> -> vector<8x64xf32>
    %c0_32 = arith.constant 0 : index
    %c0_33 = arith.constant 0 : index
    %c0_34 = arith.constant 0 : index
    %64 = vector.load %arg6[%c0_32, %c0_33, %c0_34] : memref<1x25x64xf32, #tpu.memory_space<vmem>>, vector<1x16x64xf32>
    %65 = vector.shape_cast %64 : vector<1x16x64xf32> to vector<16x64xf32>
    %66 = vector.shape_cast %61 : vector<16x64xf32> to vector<1x16x64xf32>
    tpu.vector_store %arg6[%c0_32, %c0_33, %c0_34], %66 {strides = array<i32>} : memref<1x25x64xf32, #tpu.memory_space<vmem>>, vector<1x16x64xf32>,
    %c0_35 = arith.constant 0 : index
    %c16 = arith.constant 16 : index
    %c0_36 = arith.constant 0 : index
    %67 = vector.load %arg6[%c0_35, %c16, %c0_36] : memref<1x25x64xf32, #tpu.memory_space<vmem>>, vector<1x8x64xf32>
    %68 = vector.shape_cast %67 : vector<1x8x64xf32> to vector<8x64xf32>
    %69 = vector.shape_cast %63 : vector<8x64xf32> to vector<1x8x64xf32>
    tpu.vector_store %arg6[%c0_35, %c16, %c0_36], %69 {strides = array<i32>} : memref<1x25x64xf32, #tpu.memory_space<vmem>>, vector<1x8x64xf32>,
    %c0_37 = arith.constant 0 : index
    %c24 = arith.constant 24 : index
    %c0_38 = arith.constant 0 : index
    %70 = vector.load %arg6[%c0_37, %c24, %c0_38] : memref<1x25x64xf32, #tpu.memory_space<vmem>>, vector<1x1x64xf32>
    %71 = vector.shape_cast %70 : vector<1x1x64xf32> to vector<1x64xf32>
    %72 = vector.shape_cast %49 : vector<1x64xf32> to vector<1x1x64xf32>
    tpu.vector_store %arg6[%c0_37, %c24, %c0_38], %72 {strides = array<i32>} : memref<1x25x64xf32, #tpu.memory_space<vmem>>, vector<1x1x64xf32>,
    return
  }
  func.func @transform_0(%arg0: i32) -> (i32, i32, i32) {
    %c0_i32 = arith.constant 0 : i32
    %c0_i32_0 = arith.constant 0 : i32
    %c0_i32_1 = arith.constant 0 : i32
    return %arg0, %c0_i32, %c0_i32_0 : i32, i32, i32
  }
  func.func @transform_1(%arg0: i32) -> (i32, i32, i32) {
    %c0_i32 = arith.constant 0 : i32
    %c0_i32_0 = arith.constant 0 : i32
    %c0_i32_1 = arith.constant 0 : i32
    %c0_i32_2 = arith.constant 0 : i32
    return %c0_i32, %c0_i32_0, %c0_i32_1 : i32, i32, i32
  }
  func.func @transform_2(%arg0: i32) -> (i32, i32) {
    %c0_i32 = arith.constant 0 : i32
    %c0_i32_0 = arith.constant 0 : i32
    %c0_i32_1 = arith.constant 0 : i32
    return %c0_i32, %c0_i32_0 : i32, i32
  }
  func.func @transform_3(%arg0: i32) -> (i32, i32) {
    %c0_i32 = arith.constant 0 : i32
    %c0_i32_0 = arith.constant 0 : i32
    %c0_i32_1 = arith.constant 0 : i32
    return %c0_i32, %c0_i32_0 : i32, i32
  }
  func.func @transform_4(%arg0: i32) -> (i32, i32) {
    %c0_i32 = arith.constant 0 : i32
    %c0_i32_0 = arith.constant 0 : i32
    %c0_i32_1 = arith.constant 0 : i32
    return %c0_i32, %c0_i32_0 : i32, i32
  }
  func.func @transform_5(%arg0: i32) -> (i32, i32, i32) {
    %c0_i32 = arith.constant 0 : i32
    %c0_i32_0 = arith.constant 0 : i32
    %c0_i32_1 = arith.constant 0 : i32
    return %arg0, %c0_i32, %c0_i32_0 : i32, i32, i32
  }
}

</mosaic_0001>

<llo_original>
// kernel: tpu_custom_call.1
$region0: #{tpu_custom_call.1}
  #allocation0 [shape = 'u32[]', space=smem, size = 0x4, offset = 0x4, fixed_abs, tag = 'smem constant byte address 0x4 - core index']
  #allocation1 [shape = 'u32[144,128]{1,0:T(1,128)}', space=vmem, size = 0x12000, scoped, tag = 'internal scratch']
  #allocation2 [shape = 'f32[64,64]{1,0:T(8,128)}', space=vmem, size = 0x8000, scoped, tag = 'scratch operand']
  #allocation3 [shape = 'f32[64,64]{1,0:T(8,128)}', space=vmem, size = 0x8000, scoped, tag = 'scratch operand']
  %s0 = inlined_call_operand.hbm [shape: f32[1,16,64], index: 0, kind: input, shape index: {}]
  %s1 = inlined_call_operand.hbm [shape: f32[7,64,64], index: 1, kind: input, shape index: {}]
  %s2 = inlined_call_operand.hbm [shape: f32[64,64], index: 2, kind: input, shape index: {}]
  %s3 = inlined_call_operand.vmem [shape: f32[1,64], index: 3, kind: input, shape index: {}]
  %s4 = inlined_call_operand.hbm [shape: f32[8,64], index: 4, kind: input, shape index: {}]
  %s5 = inlined_call_operand.vmem [shape: f32[1,25,64], index: 5, kind: output, shape index: {}]
  %s6 = sld [smem:[#allocation0]]
  $region53: #{tpu_custom_call.1} parent=0
    _
  %s8 = ssub.s32 1, %s6
  %s9 = scalar_select 0, %s8, %s6
  $region1: #{tpu_custom_call.1} parent=0
    #allocation4 [shape = 'u8[8192]{0}', space=vmem, size = 0x2000, scoped, tag = 'input window, operand 0, single buffered']
    #allocation5 [shape = 's32[1]{0}', space=sflag, size = 0x4, scoped, tag = 'scoped memory for tpu_custom_call.1']
    #allocation6 [shape = 'u8[229376]{0}', space=vmem, size = 0x38000, scoped, tag = 'input window, operand 1, single buffered']
    #allocation7 [shape = 's32[1]{0}', space=sflag, size = 0x4, scoped, tag = 'scoped memory for tpu_custom_call.1']
    #allocation8 [shape = 'u8[32768]{0}', space=vmem, size = 0x8000, scoped, tag = 'input window, operand 2, single buffered']
    #allocation9 [shape = 'u8[4096]{0}', space=vmem, size = 0x1000, scoped, tag = 'input window, operand 4, single buffered']
    #allocation10 [shape = 's32[1]{0}', space=sflag, size = 0x4, scoped, tag = 'scoped memory for tpu_custom_call.1']
    %10 = vsyncpa [#allocation5], 0
    %11 = vsyncpa [#allocation7], 0
    %12 = vsyncpa [#allocation10], 0
    // Predicated region
    $region2: #{tpu_custom_call.1} parent=1 // pred_check
      _
    $region3: #{tpu_custom_call.1} parent=1 // pred_check_branch
      %14 = sbr.rel (0) target = $region5
    $region4: #{tpu_custom_call.1} parent=1 // pred_region
      %s16 = ssub.s32 256, 256
      %17 = vsyncadd [#allocation5], %s16
      %s18 = sshll.u32 [#allocation4], 4
      %s19 = int_to_ptr.vmem [resolvable:$true] %s18
      %24 = dma.hbm_to_vmem [thread:$0]  %s0, 256, %s19, [#allocation5], 128, 128, 8
    $region5: #{tpu_custom_call.1} parent=1 // pred_fallthru
      _
    // Predicated region
    $region6: #{tpu_custom_call.1} parent=1 // pred_check
      _
    $region7: #{tpu_custom_call.1} parent=1 // pred_check_branch
      %26 = sbr.rel (0) target = $region9
    $region8: #{tpu_custom_call.1} parent=1 // pred_region
      %s28 = ssub.s32 7168, 7168
      %29 = vsyncadd [#allocation7], %s28
      %s30 = sshll.u32 [#allocation6], 4
      %s31 = int_to_ptr.vmem [resolvable:$true] %s30
      %36 = dma.hbm_to_vmem [thread:$0]  %s1, 7168, %s31, [#allocation7], 128, 128, 8
    $region9: #{tpu_custom_call.1} parent=1 // pred_fallthru
      _
    // Predicated region
    $region10: #{tpu_custom_call.1} parent=1 // pred_check
      _
    $region11: #{tpu_custom_call.1} parent=1 // pred_check_branch
      %38 = sbr.rel (0) target = $region13
    $region12: #{tpu_custom_call.1} parent=1 // pred_region
      %s40 = ssub.s32 1024, 1024
      %41 = vsyncadd [#allocation7], %s40
      %s42 = sshll.u32 [#allocation8], 4
      %s43 = int_to_ptr.vmem [resolvable:$true] %s42
      %48 = dma.hbm_to_vmem [thread:$0]  %s2, 1024, %s43, [#allocation7], 128, 128, 8
    $region13: #{tpu_custom_call.1} parent=1 // pred_fallthru
      _
    // Predicated region
    $region14: #{tpu_custom_call.1} parent=1 // pred_check
      _
    $region15: #{tpu_custom_call.1} parent=1 // pred_check_branch
      %50 = sbr.rel (0) target = $region17
    $region16: #{tpu_custom_call.1} parent=1 // pred_region
      _
    $region17: #{tpu_custom_call.1} parent=1 // pred_fallthru
      _
    // Predicated region
    $region18: #{tpu_custom_call.1} parent=1 // pred_check
      _
    $region19: #{tpu_custom_call.1} parent=1 // pred_check_branch
      %52 = sbr.rel (0) target = $region21
    $region20: #{tpu_custom_call.1} parent=1 // pred_region
      %s54 = ssub.s32 128, 128
      %55 = vsyncadd [#allocation10], %s54
      %s57 = sshll.u32 [#allocation9], 4
      %s58 = int_to_ptr.vmem [resolvable:$true] %s57
      %60 = dma.hbm_to_vmem [thread:$0]  %s4, 128, %s58, [#allocation10]
    $region21: #{tpu_custom_call.1} parent=1 // pred_fallthru
      _
    // Predicated region
    $region22: #{tpu_custom_call.1} parent=1 // pred_check
      _
    $region23: #{tpu_custom_call.1} parent=1 // pred_check_branch
      %62 = sbr.rel (0) target = $region25
    $region24: #{tpu_custom_call.1} parent=1 // pred_region
      %63 = dma.done [#allocation5], 256
    $region25: #{tpu_custom_call.1} parent=1 // pred_fallthru
      _
    // Predicated region
    $region26: #{tpu_custom_call.1} parent=1 // pred_check
      _
    $region27: #{tpu_custom_call.1} parent=1 // pred_check_branch
      %65 = sbr.rel (0) target = $region29
    $region28: #{tpu_custom_call.1} parent=1 // pred_region
      %66 = dma.done [#allocation7], 7168
    $region29: #{tpu_custom_call.1} parent=1 // pred_fallthru
      _
    // Predicated region
    $region30: #{tpu_custom_call.1} parent=1 // pred_check
      _
    $region31: #{tpu_custom_call.1} parent=1 // pred_check_branch
      %68 = sbr.rel (0) target = $region33
    $region32: #{tpu_custom_call.1} parent=1 // pred_region
      %69 = dma.done [#allocation7], 1024
    $region33: #{tpu_custom_call.1} parent=1 // pred_fallthru
      _
    // Predicated region
    $region34: #{tpu_custom_call.1} parent=1 // pred_check
      _
    $region35: #{tpu_custom_call.1} parent=1 // pred_check_branch
      %71 = sbr.rel (0) target = $region37
    $region36: #{tpu_custom_call.1} parent=1 // pred_region
      %72 = dma.done [#allocation10], 128
    $region37: #{tpu_custom_call.1} parent=1 // pred_fallthru
      _
    %v73 = vlaneseq
    %v74 = vshrl.u32 %v73, 7
    %v75 = vadd.s32 %v74, 8
    %v76 = vadd.s32 %v74, 16
    %v77 = vadd.s32 %v74, 24
    %v78 = vadd.s32 %v74, 32
    %v79 = vadd.s32 %v74, 40
    %v80 = vadd.s32 %v74, 48
    %v81 = vadd.s32 %v74, 56
    %v82 = vlaneseq
    %v83 = vand.u32 %v82, 127
    %vm84 = vcmp.eq.s32.totalorder %v74, %v83
    %vm85 = vcmp.eq.s32.totalorder %v75, %v83
    %vm86 = vcmp.eq.s32.totalorder %v76, %v83
    %vm87 = vcmp.eq.s32.totalorder %v77, %v83
    %vm88 = vcmp.eq.s32.totalorder %v78, %v83
    %vm89 = vcmp.eq.s32.totalorder %v79, %v83
    %vm90 = vcmp.eq.s32.totalorder %v80, %v83
    %vm91 = vcmp.eq.s32.totalorder %v81, %v83
    %v92 = vsel %vm84, 1, 0
    %v93 = vsel %vm85, 1, 0
    %v94 = vsel %vm86, 1, 0
    %v95 = vsel %vm87, 1, 0
    %v96 = vsel %vm88, 1, 0
    %v97 = vsel %vm89, 1, 0
    %v98 = vsel %vm90, 1, 0
    %v99 = vsel %vm91, 1, 0
    %v100 = vcvt.s32.f32 %v92
    %v101 = vcvt.s32.f32 %v93
    %v102 = vcvt.s32.f32 %v94
    %v103 = vcvt.s32.f32 %v95
    %v104 = vcvt.s32.f32 %v96
    %v105 = vcvt.s32.f32 %v97
    %v106 = vcvt.s32.f32 %v98
    %v107 = vcvt.s32.f32 %v99
    %v108 = vld [vmem:[#allocation4] sm:$0xff]
    %v109 = vld [vmem:[#allocation4 + $0x8] sm:$0xff]
    %110 = vxpose.xlu0.b32.start [1/16] %v108, 128
    %111 = vxpose.xlu0.b32.cont [2/16] %v109, 128
    %112 = vxpose.xlu0.b32.cont [3/16] 0.0, 128
    %113 = vxpose.xlu0.b32.cont [4/16] 0.0, 128
    %114 = vxpose.xlu0.b32.cont [5/16] 0.0, 128
    %115 = vxpose.xlu0.b32.cont [6/16] 0.0, 128
    %116 = vxpose.xlu0.b32.cont [7/16] 0.0, 128
    %117 = vxpose.xlu0.b32.cont [8/16] 0.0, 128
    %118 = vxpose.xlu0.b32.cont [9/16] 0.0, 128
    %119 = vxpose.xlu0.b32.cont [10/16] 0.0, 128
    %120 = vxpose.xlu0.b32.cont [11/16] 0.0, 128
    %121 = vxpose.xlu0.b32.cont [12/16] 0.0, 128
    %122 = vxpose.xlu0.b32.cont [13/16] 0.0, 128
    %123 = vxpose.xlu0.b32.cont [14/16] 0.0, 128
    %124 = vxpose.xlu0.b32.cont [15/16] 0.0, 128
    %125 = vxpose.xlu0.b32.end [16/16] 0.0, 128
    %v126 = vpop.trf.xlu0
    %v127 = vpop.trf.xlu0
    %v128 = vpop.trf.xlu0
    %v129 = vpop.trf.xlu0
    %v130 = vpop.trf.xlu0
    %v131 = vpop.trf.xlu0
    %v132 = vpop.trf.xlu0
    %v133 = vpop.trf.xlu0
    %v134 = vpop.trf.xlu0
    %v135 = vpop.trf.xlu0
    %v136 = vpop.trf.xlu0
    %v137 = vpop.trf.xlu0
    %v138 = vpop.trf.xlu0
    %v139 = vpop.trf.xlu0
    %v140 = vpop.trf.xlu0
    %v141 = vpop.trf.xlu0
    %vm142 = vcmask 130048
    %v144 = vsel %vm142, %v126, 0
    %v147 = vsel %vm142, %v127, 0
    %v150 = vsel %vm142, %v128, 0
    %v153 = vsel %vm142, %v129, 0
    %v156 = vsel %vm142, %v130, 0
    %v159 = vsel %vm142, %v131, 0
    %v162 = vsel %vm142, %v132, 0
    %v165 = vsel %vm142, %v133, 0
    %167 = vmatprep.subr.mxu0 0.0
    %168 = vmatpush1.msra.mxu0 0.0
    %169 = vmatprep.subr.mxu0 0.0
    %170 = vmatpush1.msra.mxu0 0.0
    %171 = vmatprep.subr.mxu0 0.0
    %172 = vmatpush1.msra.mxu0 0.0
    %173 = vmatprep.subr.mxu0 0.0
    %174 = vmatpush1.msra.mxu0 0.0
    %175 = vmatprep.subr.mxu0 0.0
    %176 = vmatpush1.msra.mxu0 0.0
    %177 = vmatprep.subr.mxu0 0.0
    %178 = vmatpush1.msra.mxu0 0.0
    %179 = vmatprep.subr.mxu0 0.0
    %180 = vmatpush1.msra.mxu0 0.0
    %181 = vmatprep.subr.mxu0 0.0
    %182 = vmatpush1.msra.mxu0 0.0
    %183 = vmatprep.subr.mxu0 0.0
    %184 = vmatpush1.msra.mxu0 0.0
    %185 = vmatprep.subr.mxu0 0.0
    %186 = vmatpush1.msra.mxu0 0.0
    %187 = vmatprep.subr.mxu0 0.0
    %188 = vmatpush1.msra.mxu0 0.0
    %189 = vmatprep.subr.mxu0 0.0
    %190 = vmatpush1.msra.mxu0 0.0
    %191 = vmatprep.subr.mxu0 0.0
    %192 = vmatpush1.msra.mxu0 0.0
    %193 = vmatprep.subr.mxu0 0.0
    %194 = vmatpush1.msra.mxu0 0.0
    %195 = vmatprep.subr.mxu0 0.0
    %196 = vmatpush1.msra.mxu0 %v109
    %197 = vmatprep.subr.mxu0 0.0
    %198 = vmatpush1.msra.mxu0 %v108
    %199 = vmatprep.subr.mxu0 0.0
    %200 = vmatpush2.msra.mxu0 0.0
    %201 = vmatprep.subr.mxu0 0.0
    %202 = vmatpush2.msra.mxu0 0.0
    %203 = vmatprep.subr.mxu0 0.0
    %204 = vmatpush2.msra.mxu0 0.0
    %205 = vmatprep.subr.mxu0 0.0
    %206 = vmatpush2.msra.mxu0 0.0
    %207 = vmatprep.subr.mxu0 0.0
    %208 = vmatpush2.msra.mxu0 0.0
    %209 = vmatprep.subr.mxu0 0.0
    %210 = vmatpush2.msra.mxu0 0.0
    %211 = vmatprep.subr.mxu0 0.0
    %212 = vmatpush2.msra.mxu0 0.0
    %213 = vmatprep.subr.mxu0 0.0
    %214 = vmatpush2.msra.mxu0 0.0
    %215 = vmatprep.subr.mxu0 0.0
    %216 = vmatpush2.msra.mxu0 0.0
    %217 = vmatprep.subr.mxu0 0.0
    %218 = vmatpush2.msra.mxu0 0.0
    %219 = vmatprep.subr.mxu0 0.0
    %220 = vmatpush2.msra.mxu0 0.0
    %221 = vmatprep.subr.mxu0 0.0
    %222 = vmatpush2.msra.mxu0 0.0
    %223 = vmatprep.subr.mxu0 0.0
    %224 = vmatpush2.msra.mxu0 0.0
    %225 = vmatprep.subr.mxu0 0.0
    %226 = vmatpush2.msra.mxu0 0.0
    %227 = vmatprep.subr.mxu0 0.0
    %228 = vmatpush2.msra.mxu0 0.0
    %229 = vmatprep.subr.mxu0 0.0
    %230 = vmatpush2.msra.mxu0 0.0
    %231 = vmatprep.mubr.f32.mxu0 0.0
    %232 = vmatmul.mubr.f32.gmra.mxu0 %v144
    %v233 = vpop.f32.mrf.mxu0
    %v234 = vadd.f32 0.0, %v233
    %v235 = vpop.f32.mrf.mxu0
    %236 = vmatprep.mubr.f32.mxu0 0.0
    %237 = vmatmul.mubr.f32.gmra.mxu0 %v147
    %v238 = vpop.f32.mrf.mxu0
    %v239 = vadd.f32 0.0, %v238
    %v240 = vpop.f32.mrf.mxu0
    %241 = vmatprep.mubr.f32.mxu0 0.0
    %242 = vmatmul.mubr.f32.gmra.mxu0 %v150
    %v243 = vpop.f32.mrf.mxu0
    %v244 = vadd.f32 0.0, %v243
    %v245 = vpop.f32.mrf.mxu0
    %246 = vmatprep.mubr.f32.mxu0 0.0
    %247 = vmatmul.mubr.f32.gmra.mxu0 %v153
    %v248 = vpop.f32.mrf.mxu0
    %v249 = vadd.f32 0.0, %v248
    %v250 = vpop.f32.mrf.mxu0
    %251 = vmatprep.mubr.f32.mxu0 0.0
    %252 = vmatmul.mubr.f32.gmra.mxu0 %v156
    %v253 = vpop.f32.mrf.mxu0
    %v254 = vadd.f32 0.0, %v253
    %v255 = vpop.f32.mrf.mxu0
    %256 = vmatprep.mubr.f32.mxu0 0.0
    %257 = vmatmul.mubr.f32.gmra.mxu0 %v159
    %v258 = vpop.f32.mrf.mxu0
    %v259 = vadd.f32 0.0, %v258
    %v260 = vpop.f32.mrf.mxu0
    %261 = vmatprep.mubr.f32.mxu0 0.0
    %262 = vmatmul.mubr.f32.gmra.mxu0 %v162
    %v263 = vpop.f32.mrf.mxu0
    %v264 = vadd.f32 0.0, %v263
    %v265 = vpop.f32.mrf.mxu0
    %266 = vmatprep.mubr.f32.mxu0 0.0
    %267 = vmatmul.mubr.f32.gmra.mxu0 %v165
    %v268 = vpop.f32.mrf.mxu0
    %v269 = vadd.f32 0.0, %v268
    %v270 = vpop.f32.mrf.mxu0
    %271 = vdwg.mxu0
    %v272 = vld [vmem:[#allocation8] sm:$0xff]
    %v273 = vld [vmem:[#allocation8 + $0x8] sm:$0xff]
    %v274 = vld [vmem:[#allocation8 + $0x10] sm:$0xff]
    %v275 = vld [vmem:[#allocation8 + $0x18] sm:$0xff]
    %v276 = vld [vmem:[#allocation8 + $0x20] sm:$0xff]
    %v277 = vld [vmem:[#allocation8 + $0x28] sm:$0xff]
    %v278 = vld [vmem:[#allocation8 + $0x30] sm:$0xff]
    %v279 = vld [vmem:[#allocation8 + $0x38] sm:$0xff]
    %v280 = vmul.f32 %v234, %v272
    %v281 = vmul.f32 %v239, %v273
    %v282 = vmul.f32 %v244, %v274
    %v283 = vmul.f32 %v249, %v275
    %v284 = vmul.f32 %v254, %v276
    %v285 = vmul.f32 %v259, %v277
    %v286 = vmul.f32 %v264, %v278
    %v287 = vmul.f32 %v269, %v279
    %vm288 = vcmask 523264
    %289 = vst.msk [vmem:[#allocation2] sm:$0xff] %vm288, %v280
    %290 = vst.msk [vmem:[#allocation2 + $0x8] sm:$0xff] %vm288, %v281
    %291 = vst.msk [vmem:[#allocation2 + $0x10] sm:$0xff] %vm288, %v282
    %292 = vst.msk [vmem:[#allocation2 + $0x18] sm:$0xff] %vm288, %v283
    %293 = vst.msk [vmem:[#allocation2 + $0x20] sm:$0xff] %vm288, %v284
    %294 = vst.msk [vmem:[#allocation2 + $0x28] sm:$0xff] %vm288, %v285
    %295 = vst.msk [vmem:[#allocation2 + $0x30] sm:$0xff] %vm288, %v286
    %296 = vst.msk [vmem:[#allocation2 + $0x38] sm:$0xff] %vm288, %v287
    %297 = vst.msk [vmem:[#allocation3] sm:$0xff] %vm288, %v100
    %298 = vst.msk [vmem:[#allocation3 + $0x8] sm:$0xff] %vm288, %v101
    %299 = vst.msk [vmem:[#allocation3 + $0x10] sm:$0xff] %vm288, %v102
    %300 = vst.msk [vmem:[#allocation3 + $0x18] sm:$0xff] %vm288, %v103
    %301 = vst.msk [vmem:[#allocation3 + $0x20] sm:$0xff] %vm288, %v104
    %302 = vst.msk [vmem:[#allocation3 + $0x28] sm:$0xff] %vm288, %v105
    %303 = vst.msk [vmem:[#allocation3 + $0x30] sm:$0xff] %vm288, %v106
    %304 = vst.msk [vmem:[#allocation3 + $0x38] sm:$0xff] %vm288, %v107
    loop: start=0, step=1, limit=10
    $region38: #{tpu_custom_call.1} parent=1 // loop_pre_header
      _
    $region39: #{tpu_custom_call.1} parent=1 // loop_header
      %s306 = sphi 0, %s310
      %p307 = scmp.ge.s32.totalorder %s306, 10
    $region40: #{tpu_custom_call.1} parent=1 // loop_header_branch
      %309 = sbr.rel (%p307) target = $region44
    $region41: #{tpu_custom_call.1} parent=1 // loop_body
      %v311 = vld [vmem:[#allocation6] sm:$0xff]
      %v312 = vld [vmem:[#allocation6 + $0x8] sm:$0xff]
      %v313 = vld [vmem:[#allocation6 + $0x10] sm:$0xff]
      %v314 = vld [vmem:[#allocation6 + $0x18] sm:$0xff]
      %v315 = vld [vmem:[#allocation6 + $0x20] sm:$0xff]
      %v316 = vld [vmem:[#allocation6 + $0x28] sm:$0xff]
      %v317 = vld [vmem:[#allocation6 + $0x30] sm:$0xff]
      %v318 = vld [vmem:[#allocation6 + $0x38] sm:$0xff]
      %v319 = vand.u32 2147483647, %v311
      %v320 = vand.u32 2147483647, %v312
      %v321 = vand.u32 2147483647, %v313
      %v322 = vand.u32 2147483647, %v314
      %v323 = vand.u32 2147483647, %v315
      %v324 = vand.u32 2147483647, %v316
      %v325 = vand.u32 2147483647, %v317
      %v326 = vand.u32 2147483647, %v318
      %v327 = vld [vmem:[#allocation2] sm:$0xff]
      %v328 = vld [vmem:[#allocation2 + $0x8] sm:$0xff]
      %v329 = vld [vmem:[#allocation2 + $0x10] sm:$0xff]
      %v330 = vld [vmem:[#allocation2 + $0x18] sm:$0xff]
      %v331 = vld [vmem:[#allocation2 + $0x20] sm:$0xff]
      %v332 = vld [vmem:[#allocation2 + $0x28] sm:$0xff]
      %v333 = vld [vmem:[#allocation2 + $0x30] sm:$0xff]
      %v334 = vld [vmem:[#allocation2 + $0x38] sm:$0xff]
      %v335 = vmul.f32 %v327, %v100
      %v336 = vmul.f32 %v328, %v101
      %v337 = vmul.f32 %v329, %v102
      %v338 = vmul.f32 %v330, %v103
      %v339 = vmul.f32 %v331, %v104
      %v340 = vmul.f32 %v332, %v105
      %v341 = vmul.f32 %v333, %v106
      %v342 = vmul.f32 %v334, %v107
      %v343 = vsel %vm288, %v335, 0.0
      %344 = vadd.xlane.f32.xlu0 %v343
      %v345 = vpop.xlane.xlu0 %344
      %v346 = vsel %vm288, %v336, 0.0
      %347 = vadd.xlane.f32.xlu0 %v346
      %v348 = vpop.xlane.xlu0 %347
      %v349 = vsel %vm288, %v337, 0.0
      %350 = vadd.xlane.f32.xlu0 %v349
      %v351 = vpop.xlane.xlu0 %350
      %v352 = vsel %vm288, %v338, 0.0
      %353 = vadd.xlane.f32.xlu0 %v352
      %v354 = vpop.xlane.xlu0 %353
      %v355 = vsel %vm288, %v339, 0.0
      %356 = vadd.xlane.f32.xlu0 %v355
      %v357 = vpop.xlane.xlu0 %356
      %v358 = vsel %vm288, %v340, 0.0
      %359 = vadd.xlane.f32.xlu0 %v358
      %v360 = vpop.xlane.xlu0 %359
      %v361 = vsel %vm288, %v341, 0.0
      %362 = vadd.xlane.f32.xlu0 %v361
      %v363 = vpop.xlane.xlu0 %362
      %v364 = vsel %vm288, %v342, 0.0
      %365 = vadd.xlane.f32.xlu0 %v364
      %v366 = vpop.xlane.xlu0 %365
      %v367 = vadd.f32 %v343, %v346
      %v368 = vadd.f32 %v367, %v349
      %v369 = vadd.f32 %v368, %v352
      %v370 = vadd.f32 %v369, %v355
      %v371 = vadd.f32 %v370, %v358
      %v372 = vadd.f32 %v371, %v361
      %v373 = vadd.f32 %v372, %v364
      %v374 = vrot.slane %v373, 4
      %v375 = vadd.f32 %v373, %v374
      %v376 = vrot.slane %v375, 2
      %v377 = vadd.f32 %v375, %v376
      %v378 = vrot.slane %v377, 1
      %v379 = vadd.f32 %v377, %v378
      %v380 = vmul.f32 %v327, %v311
      %v381 = vmul.f32 %v328, %v312
      %v382 = vmul.f32 %v329, %v313
      %v383 = vmul.f32 %v330, %v314
      %v384 = vmul.f32 %v331, %v315
      %v385 = vmul.f32 %v332, %v316
      %v386 = vmul.f32 %v333, %v317
      %v387 = vmul.f32 %v334, %v318
      %v388 = vsel %vm288, %v380, 0.0
      %v389 = vsel %vm288, %v381, 0.0
      %v390 = vadd.f32 %v388, %v389
      %v391 = vsel %vm288, %v382, 0.0
      %v392 = vadd.f32 %v390, %v391
      %v393 = vsel %vm288, %v383, 0.0
      %v394 = vadd.f32 %v392, %v393
      %v395 = vsel %vm288, %v384, 0.0
      %v396 = vadd.f32 %v394, %v395
      %v397 = vsel %vm288, %v385, 0.0
      %v398 = vadd.f32 %v396, %v397
      %v399 = vsel %vm288, %v386, 0.0
      %v400 = vadd.f32 %v398, %v399
      %v401 = vsel %vm288, %v387, 0.0
      %v402 = vadd.f32 %v400, %v401
      %v403 = vrot.slane %v402, 4
      %v404 = vadd.f32 %v402, %v403
      %v405 = vrot.slane %v404, 2
      %v406 = vadd.f32 %v404, %v405
      %v407 = vrot.slane %v406, 1
      %v408 = vadd.f32 %v406, %v407
      %v409 = vmul.f32 %v319, %v345
      %v410 = vmul.f32 %v320, %v348
      %v411 = vmul.f32 %v321, %v351
      %v412 = vmul.f32 %v322, %v354
      %v413 = vmul.f32 %v323, %v357
      %v414 = vmul.f32 %v324, %v360
      %v415 = vmul.f32 %v325, %v363
      %v416 = vmul.f32 %v326, %v366
      %v417 = vsel %vm288, %v409, 0.0
      %v418 = vsel %vm288, %v410, 0.0
      %v419 = vadd.f32 %v417, %v418
      %v420 = vsel %vm288, %v411, 0.0
      %v421 = vadd.f32 %v419, %v420
      %v422 = vsel %vm288, %v412, 0.0
      %v423 = vadd.f32 %v421, %v422
      %v424 = vsel %vm288, %v413, 0.0
      %v425 = vadd.f32 %v423, %v424
      %v426 = vsel %vm288, %v414, 0.0
      %v427 = vadd.f32 %v425, %v426
      %v428 = vsel %vm288, %v415, 0.0
      %v429 = vadd.f32 %v427, %v428
      %v430 = vsel %vm288, %v416, 0.0
      %v431 = vadd.f32 %v429, %v430
      %v432 = vrot.slane %v431, 4
      %v433 = vadd.f32 %v431, %v432
      %v434 = vrot.slane %v433, 2
      %v435 = vadd.f32 %v433, %v434
      %v436 = vrot.slane %v435, 1
      %v437 = vadd.f32 %v435, %v436
      %v438 = vand.u32 2147483647, %v408
      %vm439 = vcmp.gt.f32.partialorder %v438, 1e-12
      %v440 = vsel %vm439, %v408, 1.0
      %v441 = vsub.f32 %v379, %v437
      %v442 = vmul.f32 %v440, 2.0
      %v443 = vrcp.pop %v442
      %v444 = vmul.f32 %v441, %v443
      %vm445 = vcmp.ge.f32.partialorder %v444, 0.0
      %v446 = vsel %vm445, 1.0, -1.0
      %v447 = vand.u32 2147483647, %v444
      %v448 = vmul.f32 %v444, %v444
      %v449 = vadd.f32 %v448, 1.0
      %v450 = vrsqrt.pop %v449
      %v451 = vmul.f32 %v449, %v450
      %vm452 = vcmp.eq.f32.partialorder %v449, inf
      %v453 = vsel %vm452, %v449, %v451
      %vm454 = vcmp.eq.f32.partialorder %v449, 0.0
      %v455 = vand.u32 %v449, 2147483648
      %v456 = vsel %vm454, %v455, %v453
      %v457 = vadd.f32 %v447, %v456
      %v458 = vrcp.pop %v457
      %v459 = vmul.f32 %v446, %v458
      %v460 = vmul.f32 %v459, %v459
      %v461 = vadd.f32 %v460, 1.0
      %v462 = vrsqrt.pop %v461
      %v463 = vmul.f32 %v459, %v462
      %v464 = vsel %vm439, %v462, 1.0
      %v465 = vsel %vm439, %v463, 0.0
      %v466 = vmul.f32 %v100, %v464
      %v467 = vmul.f32 %v101, %v464
      %v468 = vmul.f32 %v102, %v464
      %v469 = vmul.f32 %v103, %v464
      %v470 = vmul.f32 %v104, %v464
      %v471 = vmul.f32 %v105, %v464
      %v472 = vmul.f32 %v106, %v464
      %v473 = vmul.f32 %v107, %v464
      %v474 = vmul.f32 %v311, %v465
      %v475 = vmul.f32 %v312, %v465
      %v476 = vmul.f32 %v313, %v465
      %v477 = vmul.f32 %v314, %v465
      %v478 = vmul.f32 %v315, %v465
      %v479 = vmul.f32 %v316, %v465
      %v480 = vmul.f32 %v317, %v465
      %v481 = vmul.f32 %v318, %v465
      %v482 = vadd.f32 %v466, %v474
      %v483 = vadd.f32 %v467, %v475
      %v484 = vadd.f32 %v468, %v476
      %v485 = vadd.f32 %v469, %v477
      %v486 = vadd.f32 %v470, %v478
      %v487 = vadd.f32 %v471, %v479
      %v488 = vadd.f32 %v472, %v480
      %v489 = vadd.f32 %v473, %v481
      %v491 = vsel %vm288, %v327, 0
      %v494 = vsel %vm288, %v328, 0
      %v497 = vsel %vm288, %v329, 0
      %v500 = vsel %vm288, %v330, 0
      %v503 = vsel %vm288, %v331, 0
      %v506 = vsel %vm288, %v332, 0
      %v509 = vsel %vm288, %v333, 0
      %v512 = vsel %vm288, %v334, 0
      %514 = vmatprep.subr.mxu0 0.0
      %515 = vmatpush1.msra.mxu0 0.0
      %516 = vmatprep.subr.mxu0 0.0
      %517 = vmatpush1.msra.mxu0 0.0
      %518 = vmatprep.subr.mxu0 0.0
      %519 = vmatpush1.msra.mxu0 0.0
      %520 = vmatprep.subr.mxu0 0.0
      %521 = vmatpush1.msra.mxu0 0.0
      %522 = vmatprep.subr.mxu0 0.0
      %523 = vmatpush1.msra.mxu0 0.0
      %524 = vmatprep.subr.mxu0 0.0
      %525 = vmatpush1.msra.mxu0 0.0
      %526 = vmatprep.subr.mxu0 0.0
      %527 = vmatpush1.msra.mxu0 0.0
      %528 = vmatprep.subr.mxu0 0.0
      %529 = vmatpush1.msra.mxu0 0.0
      %530 = vmatprep.subr.mxu0 0.0
      %531 = vmatpush1.msra.mxu0 %v489
      %532 = vmatprep.subr.mxu0 0.0
      %533 = vmatpush1.msra.mxu0 %v488
      %534 = vmatprep.subr.mxu0 0.0
      %535 = vmatpush1.msra.mxu0 %v487
      %536 = vmatprep.subr.mxu0 0.0
      %537 = vmatpush1.msra.mxu0 %v486
      %538 = vmatprep.subr.mxu0 0.0
      %539 = vmatpush1.msra.mxu0 %v485
      %540 = vmatprep.subr.mxu0 0.0
      %541 = vmatpush1.msra.mxu0 %v484
      %542 = vmatprep.subr.mxu0 0.0
      %543 = vmatpush1.msra.mxu0 %v483
      %544 = vmatprep.subr.mxu0 0.0
      %545 = vmatpush1.msra.mxu0 %v482
      %546 = vmatprep.subr.mxu0 0.0
      %547 = vmatpush2.msra.mxu0 0.0
      %548 = vmatprep.subr.mxu0 0.0
      %549 = vmatpush2.msra.mxu0 0.0
      %550 = vmatprep.subr.mxu0 0.0
      %551 = vmatpush2.msra.mxu0 0.0
      %552 = vmatprep.subr.mxu0 0.0
      %553 = vmatpush2.msra.mxu0 0.0
      %554 = vmatprep.subr.mxu0 0.0
      %555 = vmatpush2.msra.mxu0 0.0
      %556 = vmatprep.subr.mxu0 0.0
      %557 = vmatpush2.msra.mxu0 0.0
      %558 = vmatprep.subr.mxu0 0.0
      %559 = vmatpush2.msra.mxu0 0.0
      %560 = vmatprep.subr.mxu0 0.0
      %561 = vmatpush2.msra.mxu0 0.0
      %562 = vmatprep.subr.mxu0 0.0
      %563 = vmatpush2.msra.mxu0 0.0
      %564 = vmatprep.subr.mxu0 0.0
      %565 = vmatpush2.msra.mxu0 0.0
      %566 = vmatprep.subr.mxu0 0.0
      %567 = vmatpush2.msra.mxu0 0.0
      %568 = vmatprep.subr.mxu0 0.0
      %569 = vmatpush2.msra.mxu0 0.0
      %570 = vmatprep.subr.mxu0 0.0
      %571 = vmatpush2.msra.mxu0 0.0
      %572 = vmatprep.subr.mxu0 0.0
      %573 = vmatpush2.msra.mxu0 0.0
      %574 = vmatprep.subr.mxu0 0.0
      %575 = vmatpush2.msra.mxu0 0.0
      %576 = vmatprep.subr.mxu0 0.0
      %577 = vmatpush2.msra.mxu0 0.0
      %578 = vmatprep.mubr.f32.mxu0 0.0
      %579 = vmatmul.mubr.f32.gmra.mxu0 %v491
      %v580 = vpop.f32.mrf.mxu0
      %v581 = vadd.f32 0.0, %v580
      %v582 = vpop.f32.mrf.mxu0
      %583 = vmatprep.mubr.f32.mxu0 0.0
      %584 = vmatmul.mubr.f32.gmra.mxu0 %v494
      %v585 = vpop.f32.mrf.mxu0
      %v586 = vadd.f32 0.0, %v585
      %v587 = vpop.f32.mrf.mxu0
      %588 = vmatprep.mubr.f32.mxu0 0.0
      %589 = vmatmul.mubr.f32.gmra.mxu0 %v497
      %v590 = vpop.f32.mrf.mxu0
      %v591 = vadd.f32 0.0, %v590
      %v592 = vpop.f32.mrf.mxu0
      %593 = vmatprep.mubr.f32.mxu0 0.0
      %594 = vmatmul.mubr.f32.gmra.mxu0 %v500
      %v595 = vpop.f32.mrf.mxu0
      %v596 = vadd.f32 0.0, %v595
      %v597 = vpop.f32.mrf.mxu0
      %598 = vmatprep.mubr.f32.mxu0 0.0
      %599 = vmatmul.mubr.f32.gmra.mxu0 %v503
      %v600 = vpop.f32.mrf.mxu0
      %v601 = vadd.f32 0.0, %v600
      %v602 = vpop.f32.mrf.mxu0
      %603 = vmatprep.mubr.f32.mxu0 0.0
      %604 = vmatmul.mubr.f32.gmra.mxu0 %v506
      %v605 = vpop.f32.mrf.mxu0
      %v606 = vadd.f32 0.0, %v605
      %v607 = vpop.f32.mrf.mxu0
      %608 = vmatprep.mubr.f32.mxu0 0.0
      %609 = vmatmul.mubr.f32.gmra.mxu0 %v509
      %v610 = vpop.f32.mrf.mxu0
      %v611 = vadd.f32 0.0, %v610
      %v612 = vpop.f32.mrf.mxu0
      %613 = vmatprep.mubr.f32.mxu0 0.0
      %614 = vmatmul.mubr.f32.gmra.mxu0 %v512
      %v615 = vpop.f32.mrf.mxu0
      %v616 = vadd.f32 0.0, %v615
      %v617 = vpop.f32.mrf.mxu0
      %618 = vdwg.mxu0
      %619 = vxpose.xlu0.b32.start [1/16] %v482, 128
      %620 = vxpose.xlu0.b32.cont [2/16] %v483, 128
      %621 = vxpose.xlu0.b32.cont [3/16] %v484, 128
      %622 = vxpose.xlu0.b32.cont [4/16] %v485, 128
      %623 = vxpose.xlu0.b32.cont [5/16] %v486, 128
      %624 = vxpose.xlu0.b32.cont [6/16] %v487, 128
      %625 = vxpose.xlu0.b32.cont [7/16] %v488, 128
      %626 = vxpose.xlu0.b32.cont [8/16] %v489, 128
      %627 = vxpose.xlu0.b32.cont [9/16] 0.0, 128
      %628 = vxpose.xlu0.b32.cont [10/16] 0.0, 128
      %629 = vxpose.xlu0.b32.cont [11/16] 0.0, 128
      %630 = vxpose.xlu0.b32.cont [12/16] 0.0, 128
      %631 = vxpose.xlu0.b32.cont [13/16] 0.0, 128
      %632 = vxpose.xlu0.b32.cont [14/16] 0.0, 128
      %633 = vxpose.xlu0.b32.cont [15/16] 0.0, 128
      %634 = vxpose.xlu0.b32.end [16/16] 0.0, 128
      %v635 = vpop.trf.xlu0
      %v636 = vpop.trf.xlu0
      %v637 = vpop.trf.xlu0
      %v638 = vpop.trf.xlu0
      %v639 = vpop.trf.xlu0
      %v640 = vpop.trf.xlu0
      %v641 = vpop.trf.xlu0
      %v642 = vpop.trf.xlu0
      %v643 = vpop.trf.xlu0
      %v644 = vpop.trf.xlu0
      %v645 = vpop.trf.xlu0
      %v646 = vpop.trf.xlu0
      %v647 = vpop.trf.xlu0
      %v648 = vpop.trf.xlu0
      %v649 = vpop.trf.xlu0
      %v650 = vpop.trf.xlu0
      %v652 = vsel %vm288, %v635, 0
      %v655 = vsel %vm288, %v636, 0
      %v658 = vsel %vm288, %v637, 0
      %v661 = vsel %vm288, %v638, 0
      %v664 = vsel %vm288, %v639, 0
      %v667 = vsel %vm288, %v640, 0
      %v670 = vsel %vm288, %v641, 0
      %v673 = vsel %vm288, %v642, 0
      %675 = vmatprep.subr.mxu0 0.0
      %676 = vmatpush1.msra.mxu0 0.0
      %677 = vmatprep.subr.mxu0 0.0
      %678 = vmatpush1.msra.mxu0 0.0
      %679 = vmatprep.subr.mxu0 0.0
      %680 = vmatpush1.msra.mxu0 0.0
      %681 = vmatprep.subr.mxu0 0.0
      %682 = vmatpush1.msra.mxu0 0.0
      %683 = vmatprep.subr.mxu0 0.0
      %684 = vmatpush1.msra.mxu0 0.0
      %685 = vmatprep.subr.mxu0 0.0
      %686 = vmatpush1.msra.mxu0 0.0
      %687 = vmatprep.subr.mxu0 0.0
      %688 = vmatpush1.msra.mxu0 0.0
      %689 = vmatprep.subr.mxu0 0.0
      %690 = vmatpush1.msra.mxu0 0.0
      %691 = vmatprep.subr.mxu0 0.0
      %692 = vmatpush1.msra.mxu0 %v616
      %693 = vmatprep.subr.mxu0 0.0
      %694 = vmatpush1.msra.mxu0 %v611
      %695 = vmatprep.subr.mxu0 0.0
      %696 = vmatpush1.msra.mxu0 %v606
      %697 = vmatprep.subr.mxu0 0.0
      %698 = vmatpush1.msra.mxu0 %v601
      %699 = vmatprep.subr.mxu0 0.0
      %700 = vmatpush1.msra.mxu0 %v596
      %701 = vmatprep.subr.mxu0 0.0
      %702 = vmatpush1.msra.mxu0 %v591
      %703 = vmatprep.subr.mxu0 0.0
      %704 = vmatpush1.msra.mxu0 %v586
      %705 = vmatprep.subr.mxu0 0.0
      %706 = vmatpush1.msra.mxu0 %v581
      %707 = vmatprep.subr.mxu0 0.0
      %708 = vmatpush2.msra.mxu0 0.0
      %709 = vmatprep.subr.mxu0 0.0
      %710 = vmatpush2.msra.mxu0 0.0
      %711 = vmatprep.subr.mxu0 0.0
      %712 = vmatpush2.msra.mxu0 0.0
      %713 = vmatprep.subr.mxu0 0.0
      %714 = vmatpush2.msra.mxu0 0.0
      %715 = vmatprep.subr.mxu0 0.0
      %716 = vmatpush2.msra.mxu0 0.0
      %717 = vmatprep.subr.mxu0 0.0
      %718 = vmatpush2.msra.mxu0 0.0
      %719 = vmatprep.subr.mxu0 0.0
      %720 = vmatpush2.msra.mxu0 0.0
      %721 = vmatprep.subr.mxu0 0.0
      %722 = vmatpush2.msra.mxu0 0.0
      %723 = vmatprep.subr.mxu0 0.0
      %724 = vmatpush2.msra.mxu0 0.0
      %725 = vmatprep.subr.mxu0 0.0
      %726 = vmatpush2.msra.mxu0 0.0
      %727 = vmatprep.subr.mxu0 0.0
      %728 = vmatpush2.msra.mxu0 0.0
      %729 = vmatprep.subr.mxu0 0.0
      %730 = vmatpush2.msra.mxu0 0.0
      %731 = vmatprep.subr.mxu0 0.0
      %732 = vmatpush2.msra.mxu0 0.0
      %733 = vmatprep.subr.mxu0 0.0
      %734 = vmatpush2.msra.mxu0 0.0
      %735 = vmatprep.subr.mxu0 0.0
      %736 = vmatpush2.msra.mxu0 0.0
      %737 = vmatprep.subr.mxu0 0.0
      %738 = vmatpush2.msra.mxu0 0.0
      %739 = vmatprep.mubr.f32.mxu0 0.0
      %740 = vmatmul.mubr.f32.gmra.mxu0 %v652
      %v741 = vpop.f32.mrf.mxu0
      %v742 = vadd.f32 0.0, %v741
      %v743 = vpop.f32.mrf.mxu0
      %744 = vmatprep.mubr.f32.mxu0 0.0
      %745 = vmatmul.mubr.f32.gmra.mxu0 %v655
      %v746 = vpop.f32.mrf.mxu0
      %v747 = vadd.f32 0.0, %v746
      %v748 = vpop.f32.mrf.mxu0
      %749 = vmatprep.mubr.f32.mxu0 0.0
      %750 = vmatmul.mubr.f32.gmra.mxu0 %v658
      %v751 = vpop.f32.mrf.mxu0
      %v752 = vadd.f32 0.0, %v751
      %v753 = vpop.f32.mrf.mxu0
      %754 = vmatprep.mubr.f32.mxu0 0.0
      %755 = vmatmul.mubr.f32.gmra.mxu0 %v661
      %v756 = vpop.f32.mrf.mxu0
      %v757 = vadd.f32 0.0, %v756
      %v758 = vpop.f32.mrf.mxu0
      %759 = vmatprep.mubr.f32.mxu0 0.0
      %760 = vmatmul.mubr.f32.gmra.mxu0 %v664
      %v761 = vpop.f32.mrf.mxu0
      %v762 = vadd.f32 0.0, %v761
      %v763 = vpop.f32.mrf.mxu0
      %764 = vmatprep.mubr.f32.mxu0 0.0
      %765 = vmatmul.mubr.f32.gmra.mxu0 %v667
      %v766 = vpop.f32.mrf.mxu0
      %v767 = vadd.f32 0.0, %v766
      %v768 = vpop.f32.mrf.mxu0
      %769 = vmatprep.mubr.f32.mxu0 0.0
      %770 = vmatmul.mubr.f32.gmra.mxu0 %v670
      %v771 = vpop.f32.mrf.mxu0
      %v772 = vadd.f32 0.0, %v771
      %v773 = vpop.f32.mrf.mxu0
      %774 = vmatprep.mubr.f32.mxu0 0.0
      %775 = vmatmul.mubr.f32.gmra.mxu0 %v673
      %v776 = vpop.f32.mrf.mxu0
      %v777 = vadd.f32 0.0, %v776
      %v778 = vpop.f32.mrf.mxu0
      %779 = vdwg.mxu0
      %780 = vst.msk [vmem:[#allocation2] sm:$0xff] %vm288, %v742
      %781 = vst.msk [vmem:[#allocation2 + $0x8] sm:$0xff] %vm288, %v747
      %782 = vst.msk [vmem:[#allocation2 + $0x10] sm:$0xff] %vm288, %v752
      %783 = vst.msk [vmem:[#allocation2 + $0x18] sm:$0xff] %vm288, %v757
      %784 = vst.msk [vmem:[#allocation2 + $0x20] sm:$0xff] %vm288, %v762
      %785 = vst.msk [vmem:[#allocation2 + $0x28] sm:$0xff] %vm288, %v767
      %786 = vst.msk [vmem:[#allocation2 + $0x30] sm:$0xff] %vm288, %v772
      %787 = vst.msk [vmem:[#allocation2 + $0x38] sm:$0xff] %vm288, %v777
      %v788 = vld [vmem:[#allocation3] sm:$0xff]
      %v789 = vld [vmem:[#allocation3 + $0x8] sm:$0xff]
      %v790 = vld [vmem:[#allocation3 + $0x10] sm:$0xff]
      %v791 = vld [vmem:[#allocation3 + $0x18] sm:$0xff]
      %v792 = vld [vmem:[#allocation3 + $0x20] sm:$0xff]
      %v793 = vld [vmem:[#allocation3 + $0x28] sm:$0xff]
      %v794 = vld [vmem:[#allocation3 + $0x30] sm:$0xff]
      %v795 = vld [vmem:[#allocation3 + $0x38] sm:$0xff]
      %v797 = vsel %vm288, %v788, 0
      %v800 = vsel %vm288, %v789, 0
      %v803 = vsel %vm288, %v790, 0
      %v806 = vsel %vm288, %v791, 0
      %v809 = vsel %vm288, %v792, 0
      %v812 = vsel %vm288, %v793, 0
      %v815 = vsel %vm288, %v794, 0
      %v818 = vsel %vm288, %v795, 0
      %820 = vmatprep.subr.mxu0 0.0
      %821 = vmatpush1.msra.mxu0 0.0
      %822 = vmatprep.subr.mxu0 0.0
      %823 = vmatpush1.msra.mxu0 0.0
      %824 = vmatprep.subr.mxu0 0.0
      %825 = vmatpush1.msra.mxu0 0.0
      %826 = vmatprep.subr.mxu0 0.0
      %827 = vmatpush1.msra.mxu0 0.0
      %828 = vmatprep.subr.mxu0 0.0
      %829 = vmatpush1.msra.mxu0 0.0
      %830 = vmatprep.subr.mxu0 0.0
      %831 = vmatpush1.msra.mxu0 0.0
      %832 = vmatprep.subr.mxu0 0.0
      %833 = vmatpush1.msra.mxu0 0.0
      %834 = vmatprep.subr.mxu0 0.0
      %835 = vmatpush1.msra.mxu0 0.0
      %836 = vmatprep.subr.mxu0 0.0
      %837 = vmatpush1.msra.mxu0 %v489
      %838 = vmatprep.subr.mxu0 0.0
      %839 = vmatpush1.msra.mxu0 %v488
      %840 = vmatprep.subr.mxu0 0.0
      %841 = vmatpush1.msra.mxu0 %v487
      %842 = vmatprep.subr.mxu0 0.0
      %843 = vmatpush1.msra.mxu0 %v486
      %844 = vmatprep.subr.mxu0 0.0
      %845 = vmatpush1.msra.mxu0 %v485
      %846 = vmatprep.subr.mxu0 0.0
      %847 = vmatpush1.msra.mxu0 %v484
      %848 = vmatprep.subr.mxu0 0.0
      %849 = vmatpush1.msra.mxu0 %v483
      %850 = vmatprep.subr.mxu0 0.0
      %851 = vmatpush1.msra.mxu0 %v482
      %852 = vmatprep.subr.mxu0 0.0
      %853 = vmatpush2.msra.mxu0 0.0
      %854 = vmatprep.subr.mxu0 0.0
      %855 = vmatpush2.msra.mxu0 0.0
      %856 = vmatprep.subr.mxu0 0.0
      %857 = vmatpush2.msra.mxu0 0.0
      %858 = vmatprep.subr.mxu0 0.0
      %859 = vmatpush2.msra.mxu0 0.0
      %860 = vmatprep.subr.mxu0 0.0
      %861 = vmatpush2.msra.mxu0 0.0
      %862 = vmatprep.subr.mxu0 0.0
      %863 = vmatpush2.msra.mxu0 0.0
      %864 = vmatprep.subr.mxu0 0.0
      %865 = vmatpush2.msra.mxu0 0.0
      %866 = vmatprep.subr.mxu0 0.0
      %867 = vmatpush2.msra.mxu0 0.0
      %868 = vmatprep.subr.mxu0 0.0
      %869 = vmatpush2.msra.mxu0 0.0
      %870 = vmatprep.subr.mxu0 0.0
      %871 = vmatpush2.msra.mxu0 0.0
      %872 = vmatprep.subr.mxu0 0.0
      %873 = vmatpush2.msra.mxu0 0.0
      %874 = vmatprep.subr.mxu0 0.0
      %875 = vmatpush2.msra.mxu0 0.0
      %876 = vmatprep.subr.mxu0 0.0
      %877 = vmatpush2.msra.mxu0 0.0
      %878 = vmatprep.subr.mxu0 0.0
      %879 = vmatpush2.msra.mxu0 0.0
      %880 = vmatprep.subr.mxu0 0.0
      %881 = vmatpush2.msra.mxu0 0.0
      %882 = vmatprep.subr.mxu0 0.0
      %883 = vmatpush2.msra.mxu0 0.0
      %884 = vmatprep.mubr.f32.mxu0 0.0
      %885 = vmatmul.mubr.f32.gmra.mxu0 %v797
      %v886 = vpop.f32.mrf.mxu0
      %v887 = vadd.f32 0.0, %v886
      %v888 = vpop.f32.mrf.mxu0
      %889 = vmatprep.mubr.f32.mxu0 0.0
      %890 = vmatmul.mubr.f32.gmra.mxu0 %v800
      %v891 = vpop.f32.mrf.mxu0
      %v892 = vadd.f32 0.0, %v891
      %v893 = vpop.f32.mrf.mxu0
      %894 = vmatprep.mubr.f32.mxu0 0.0
      %895 = vmatmul.mubr.f32.gmra.mxu0 %v803
      %v896 = vpop.f32.mrf.mxu0
      %v897 = vadd.f32 0.0, %v896
      %v898 = vpop.f32.mrf.mxu0
      %899 = vmatprep.mubr.f32.mxu0 0.0
      %900 = vmatmul.mubr.f32.gmra.mxu0 %v806
      %v901 = vpop.f32.mrf.mxu0
      %v902 = vadd.f32 0.0, %v901
      %v903 = vpop.f32.mrf.mxu0
      %904 = vmatprep.mubr.f32.mxu0 0.0
      %905 = vmatmul.mubr.f32.gmra.mxu0 %v809
      %v906 = vpop.f32.mrf.mxu0
      %v907 = vadd.f32 0.0, %v906
      %v908 = vpop.f32.mrf.mxu0
      %909 = vmatprep.mubr.f32.mxu0 0.0
      %910 = vmatmul.mubr.f32.gmra.mxu0 %v812
      %v911 = vpop.f32.mrf.mxu0
      %v912 = vadd.f32 0.0, %v911
      %v913 = vpop.f32.mrf.mxu0
      %914 = vmatprep.mubr.f32.mxu0 0.0
      %915 = vmatmul.mubr.f32.gmra.mxu0 %v815
      %v916 = vpop.f32.mrf.mxu0
      %v917 = vadd.f32 0.0, %v916
      %v918 = vpop.f32.mrf.mxu0
      %919 = vmatprep.mubr.f32.mxu0 0.0
      %920 = vmatmul.mubr.f32.gmra.mxu0 %v818
      %v921 = vpop.f32.mrf.mxu0
      %v922 = vadd.f32 0.0, %v921
      %v923 = vpop.f32.mrf.mxu0
      %924 = vdwg.mxu0
      %925 = vst.msk [vmem:[#allocation3] sm:$0xff] %vm288, %v887
      %926 = vst.msk [vmem:[#allocation3 + $0x8] sm:$0xff] %vm288, %v892
      %927 = vst.msk [vmem:[#allocation3 + $0x10] sm:$0xff] %vm288, %v897
      %928 = vst.msk [vmem:[#allocation3 + $0x18] sm:$0xff] %vm288, %v902
      %929 = vst.msk [vmem:[#allocation3 + $0x20] sm:$0xff] %vm288, %v907
      %930 = vst.msk [vmem:[#allocation3 + $0x28] sm:$0xff] %vm288, %v912
      %931 = vst.msk [vmem:[#allocation3 + $0x30] sm:$0xff] %vm288, %v917
      %932 = vst.msk [vmem:[#allocation3 + $0x38] sm:$0xff] %vm288, %v922
      %s933 = scalar_lea.vmem [#allocation6], 64
      %v934 = vld [vmem:[%s933] sm:$0xff]
      %v935 = vld [vmem:[%s933 + $0x8] sm:$0xff]
      %v936 = vld [vmem:[%s933 + $0x10] sm:$0xff]
      %v937 = vld [vmem:[%s933 + $0x18] sm:$0xff]
      %v938 = vld [vmem:[%s933 + $0x20] sm:$0xff]
      %v939 = vld [vmem:[%s933 + $0x28] sm:$0xff]
      %v940 = vld [vmem:[%s933 + $0x30] sm:$0xff]
      %v941 = vld [vmem:[%s933 + $0x38] sm:$0xff]
      %v942 = vand.u32 2147483647, %v934
      %v943 = vand.u32 2147483647, %v935
      %v944 = vand.u32 2147483647, %v936
      %v945 = vand.u32 2147483647, %v937
      %v946 = vand.u32 2147483647, %v938
      %v947 = vand.u32 2147483647, %v939
      %v948 = vand.u32 2147483647, %v940
      %v949 = vand.u32 2147483647, %v941
      %v950 = vld [vmem:[#allocation2] sm:$0xff]
      %v951 = vld [vmem:[#allocation2 + $0x8] sm:$0xff]
      %v952 = vld [vmem:[#allocation2 + $0x10] sm:$0xff]
      %v953 = vld [vmem:[#allocation2 + $0x18] sm:$0xff]
      %v954 = vld [vmem:[#allocation2 + $0x20] sm:$0xff]
      %v955 = vld [vmem:[#allocation2 + $0x28] sm:$0xff]
      %v956 = vld [vmem:[#allocation2 + $0x30] sm:$0xff]
      %v957 = vld [vmem:[#allocation2 + $0x38] sm:$0xff]
      %v958 = vmul.f32 %v950, %v100
      %v959 = vmul.f32 %v951, %v101
      %v960 = vmul.f32 %v952, %v102
      %v961 = vmul.f32 %v953, %v103
      %v962 = vmul.f32 %v954, %v104
      %v963 = vmul.f32 %v955, %v105
      %v964 = vmul.f32 %v956, %v106
      %v965 = vmul.f32 %v957, %v107
      %v966 = vsel %vm288, %v958, 0.0
      %967 = vadd.xlane.f32.xlu0 %v966
      %v968 = vpop.xlane.xlu0 %967
      %v969 = vsel %vm288, %v959, 0.0
      %970 = vadd.xlane.f32.xlu0 %v969
      %v971 = vpop.xlane.xlu0 %970
      %v972 = vsel %vm288, %v960, 0.0
      %973 = vadd.xlane.f32.xlu0 %v972
      %v974 = vpop.xlane.xlu0 %973
      %v975 = vsel %vm288, %v961, 0.0
      %976 = vadd.xlane.f32.xlu0 %v975
      %v977 = vpop.xlane.xlu0 %976
      %v978 = vsel %vm288, %v962, 0.0
      %979 = vadd.xlane.f32.xlu0 %v978
      %v980 = vpop.xlane.xlu0 %979
      %v981 = vsel %vm288, %v963, 0.0
      %982 = vadd.xlane.f32.xlu0 %v981
      %v983 = vpop.xlane.xlu0 %982
      %v984 = vsel %vm288, %v964, 0.0
      %985 = vadd.xlane.f32.xlu0 %v984
      %v986 = vpop.xlane.xlu0 %985
      %v987 = vsel %vm288, %v965, 0.0
      %988 = vadd.xlane.f32.xlu0 %v987
      %v989 = vpop.xlane.xlu0 %988
      %v990 = vadd.f32 %v966, %v969
      %v991 = vadd.f32 %v990, %v972
      %v992 = vadd.f32 %v991, %v975
      %v993 = vadd.f32 %v992, %v978
      %v994 = vadd.f32 %v993, %v981
      %v995 = vadd.f32 %v994, %v984
      %v996 = vadd.f32 %v995, %v987
      %v997 = vrot.slane %v996, 4
      %v998 = vadd.f32 %v996, %v997
      %v999 = vrot.slane %v998, 2
      %v1000 = vadd.f32 %v998, %v999
      %v1001 = vrot.slane %v1000, 1
      %v1002 = vadd.f32 %v1000, %v1001
      %v1003 = vmul.f32 %v950, %v934
      %v1004 = vmul.f32 %v951, %v935
      %v1005 = vmul.f32 %v952, %v936
      %v1006 = vmul.f32 %v953, %v937
      %v1007 = vmul.f32 %v954, %v938
      %v1008 = vmul.f32 %v955, %v939
      %v1009 = vmul.f32 %v956, %v940
      %v1010 = vmul.f32 %v957, %v941
      %v1011 = vsel %vm288, %v1003, 0.0
      %v1012 = vsel %vm288, %v1004, 0.0
      %v1013 = vadd.f32 %v1011, %v1012
      %v1014 = vsel %vm288, %v1005, 0.0
      %v1015 = vadd.f32 %v1013, %v1014
      %v1016 = vsel %vm288, %v1006, 0.0
      %v1017 = vadd.f32 %v1015, %v1016
      %v1018 = vsel %vm288, %v1007, 0.0
      %v1019 = vadd.f32 %v1017, %v1018
      %v1020 = vsel %vm288, %v1008, 0.0
      %v1021 = vadd.f32 %v1019, %v1020
      %v1022 = vsel %vm288, %v1009, 0.0
      %v1023 = vadd.f32 %v1021, %v1022
      %v1024 = vsel %vm288, %v1010, 0.0
      %v1025 = vadd.f32 %v1023, %v1024
      %v1026 = vrot.slane %v1025, 4
      %v1027 = vadd.f32 %v1025, %v1026
      %v1028 = vrot.slane %v1027, 2
      %v1029 = vadd.f32 %v1027, %v1028
      %v1030 = vrot.slane %v1029, 1
      %v1031 = vadd.f32 %v1029, %v1030
      %v1032 = vmul.f32 %v942, %v968
      %v1033 = vmul.f32 %v943, %v971
      %v1034 = vmul.f32 %v944, %v974
      %v1035 = vmul.f32 %v945, %v977
      %v1036 = vmul.f32 %v946, %v980
      %v1037 = vmul.f32 %v947, %v983
      %v1038 = vmul.f32 %v948, %v986
      %v1039 = vmul.f32 %v949, %v989
      %v1040 = vsel %vm288, %v1032, 0.0
      %v1041 = vsel %vm288, %v1033, 0.0
      %v1042 = vadd.f32 %v1040, %v1041
      %v1043 = vsel %vm288, %v1034, 0.0
      %v1044 = vadd.f32 %v1042, %v1043
      %v1045 = vsel %vm288, %v1035, 0.0
      %v1046 = vadd.f32 %v1044, %v1045
      %v1047 = vsel %vm288, %v1036, 0.0
      %v1048 = vadd.f32 %v1046, %v1047
      %v1049 = vsel %vm288, %v1037, 0.0
      %v1050 = vadd.f32 %v1048, %v1049
      %v1051 = vsel %vm288, %v1038, 0.0
      %v1052 = vadd.f32 %v1050, %v1051
      %v1053 = vsel %vm288, %v1039, 0.0
      %v1054 = vadd.f32 %v1052, %v1053
      %v1055 = vrot.slane %v1054, 4
      %v1056 = vadd.f32 %v1054, %v1055
      %v1057 = vrot.slane %v1056, 2
      %v1058 = vadd.f32 %v1056, %v1057
      %v1059 = vrot.slane %v1058, 1
      %v1060 = vadd.f32 %v1058, %v1059
      %v1061 = vand.u32 2147483647, %v1031
      %vm1062 = vcmp.gt.f32.partialorder %v1061, 1e-12
      %v1063 = vsel %vm1062, %v1031, 1.0
      %v1064 = vsub.f32 %v1002, %v1060
      %v1065 = vmul.f32 %v1063, 2.0
      %v1066 = vrcp.pop %v1065
      %v1067 = vmul.f32 %v1064, %v1066
      %vm1068 = vcmp.ge.f32.partialorder %v1067, 0.0
      %v1069 = vsel %vm1068, 1.0, -1.0
      %v1070 = vand.u32 2147483647, %v1067
      %v1071 = vmul.f32 %v1067, %v1067
      %v1072 = vadd.f32 %v1071, 1.0
      %v1073 = vrsqrt.pop %v1072
      %v1074 = vmul.f32 %v1072, %v1073
      %vm1075 = vcmp.eq.f32.partialorder %v1072, inf
      %v1076 = vsel %vm1075, %v1072, %v1074
      %vm1077 = vcmp.eq.f32.partialorder %v1072, 0.0
      %v1078 = vand.u32 %v1072, 2147483648
      %v1079 = vsel %vm1077, %v1078, %v1076
      %v1080 = vadd.f32 %v1070, %v1079
      %v1081 = vrcp.pop %v1080
      %v1082 = vmul.f32 %v1069, %v1081
      %v1083 = vmul.f32 %v1082, %v1082
      %v1084 = vadd.f32 %v1083, 1.0
      %v1085 = vrsqrt.pop %v1084
      %v1086 = vmul.f32 %v1082, %v1085
      %v1087 = vsel %vm1062, %v1085, 1.0
      %v1088 = vsel %vm1062, %v1086, 0.0
      %v1089 = vmul.f32 %v100, %v1087
      %v1090 = vmul.f32 %v101, %v1087
      %v1091 = vmul.f32 %v102, %v1087
      %v1092 = vmul.f32 %v103, %v1087
      %v1093 = vmul.f32 %v104, %v1087
      %v1094 = vmul.f32 %v105, %v1087
      %v1095 = vmul.f32 %v106, %v1087
      %v1096 = vmul.f32 %v107, %v1087
      %v1097 = vmul.f32 %v934, %v1088
      %v1098 = vmul.f32 %v935, %v1088
      %v1099 = vmul.f32 %v936, %v1088
      %v1100 = vmul.f32 %v937, %v1088
      %v1101 = vmul.f32 %v938, %v1088
      %v1102 = vmul.f32 %v939, %v1088
      %v1103 = vmul.f32 %v940, %v1088
      %v1104 = vmul.f32 %v941, %v1088
      %v1105 = vadd.f32 %v1089, %v1097
      %v1106 = vadd.f32 %v1090, %v1098
      %v1107 = vadd.f32 %v1091, %v1099
      %v1108 = vadd.f32 %v1092, %v1100
      %v1109 = vadd.f32 %v1093, %v1101
      %v1110 = vadd.f32 %v1094, %v1102
      %v1111 = vadd.f32 %v1095, %v1103
      %v1112 = vadd.f32 %v1096, %v1104
      %v1114 = vsel %vm288, %v950, 0
      %v1117 = vsel %vm288, %v951, 0
      %v1120 = vsel %vm288, %v952, 0
      %v1123 = vsel %vm288, %v953, 0
      %v1126 = vsel %vm288, %v954, 0
      %v1129 = vsel %vm288, %v955, 0
      %v1132 = vsel %vm288, %v956, 0
      %v1135 = vsel %vm288, %v957, 0
      %1137 = vmatprep.subr.mxu0 0.0
      %1138 = vmatpush1.msra.mxu0 0.0
      %1139 = vmatprep.subr.mxu0 0.0
      %1140 = vmatpush1.msra.mxu0 0.0
      %1141 = vmatprep.subr.mxu0 0.0
      %1142 = vmatpush1.msra.mxu0 0.0
      %1143 = vmatprep.subr.mxu0 0.0
      %1144 = vmatpush1.msra.mxu0 0.0
      %1145 = vmatprep.subr.mxu0 0.0
      %1146 = vmatpush1.msra.mxu0 0.0
      %1147 = vmatprep.subr.mxu0 0.0
      %1148 = vmatpush1.msra.mxu0 0.0
      %1149 = vmatprep.subr.mxu0 0.0
      %1150 = vmatpush1.msra.mxu0 0.0
      %1151 = vmatprep.subr.mxu0 0.0
      %1152 = vmatpush1.msra.mxu0 0.0
      %1153 = vmatprep.subr.mxu0 0.0
      %1154 = vmatpush1.msra.mxu0 %v1112
      %1155 = vmatprep.subr.mxu0 0.0
      %1156 = vmatpush1.msra.mxu0 %v1111
      %1157 = vmatprep.subr.mxu0 0.0
      %1158 = vmatpush1.msra.mxu0 %v1110
      %1159 = vmatprep.subr.mxu0 0.0
      %1160 = vmatpush1.msra.mxu0 %v1109
      %1161 = vmatprep.subr.mxu0 0.0
      %1162 = vmatpush1.msra.mxu0 %v1108
      %1163 = vmatprep.subr.mxu0 0.0
      %1164 = vmatpush1.msra.mxu0 %v1107
      %1165 = vmatprep.subr.mxu0 0.0
      %1166 = vmatpush1.msra.mxu0 %v1106
      %1167 = vmatprep.subr.mxu0 0.0
      %1168 = vmatpush1.msra.mxu0 %v1105
      %1169 = vmatprep.subr.mxu0 0.0
      %1170 = vmatpush2.msra.mxu0 0.0
      %1171 = vmatprep.subr.mxu0 0.0
      %1172 = vmatpush2.msra.mxu0 0.0
      %1173 = vmatprep.subr.mxu0 0.0
      %1174 = vmatpush2.msra.mxu0 0.0
      %1175 = vmatprep.subr.mxu0 0.0
      %1176 = vmatpush2.msra.mxu0 0.0
      %1177 = vmatprep.subr.mxu0 0.0
      %1178 = vmatpush2.msra.mxu0 0.0
      %1179 = vmatprep.subr.mxu0 0.0
      %1180 = vmatpush2.msra.mxu0 0.0
      %1181 = vmatprep.subr.mxu0 0.0
      %1182 = vmatpush2.msra.mxu0 0.0
      %1183 = vmatprep.subr.mxu0 0.0
      %1184 = vmatpush2.msra.mxu0 0.0
      %1185 = vmatprep.subr.mxu0 0.0
      %1186 = vmatpush2.msra.mxu0 0.0
      %1187 = vmatprep.subr.mxu0 0.0
      %1188 = vmatpush2.msra.mxu0 0.0
      %1189 = vmatprep.subr.mxu0 0.0
      %1190 = vmatpush2.msra.mxu0 0.0
      %1191 = vmatprep.subr.mxu0 0.0
      %1192 = vmatpush2.msra.mxu0 0.0
      %1193 = vmatprep.subr.mxu0 0.0
      %1194 = vmatpush2.msra.mxu0 0.0
      %1195 = vmatprep.subr.mxu0 0.0
      %1196 = vmatpush2.msra.mxu0 0.0
      %1197 = vmatprep.subr.mxu0 0.0
      %1198 = vmatpush2.msra.mxu0 0.0
      %1199 = vmatprep.subr.mxu0 0.0
      %1200 = vmatpush2.msra.mxu0 0.0
      %1201 = vmatprep.mubr.f32.mxu0 0.0
      %1202 = vmatmul.mubr.f32.gmra.mxu0 %v1114
      %v1203 = vpop.f32.mrf.mxu0
      %v1204 = vadd.f32 0.0, %v1203
      %v1205 = vpop.f32.mrf.mxu0
      %1206 = vmatprep.mubr.f32.mxu0 0.0
      %1207 = vmatmul.mubr.f32.gmra.mxu0 %v1117
      %v1208 = vpop.f32.mrf.mxu0
      %v1209 = vadd.f32 0.0, %v1208
      %v1210 = vpop.f32.mrf.mxu0
      %1211 = vmatprep.mubr.f32.mxu0 0.0
      %1212 = vmatmul.mubr.f32.gmra.mxu0 %v1120
      %v1213 = vpop.f32.mrf.mxu0
      %v1214 = vadd.f32 0.0, %v1213
      %v1215 = vpop.f32.mrf.mxu0
      %1216 = vmatprep.mubr.f32.mxu0 0.0
      %1217 = vmatmul.mubr.f32.gmra.mxu0 %v1123
      %v1218 = vpop.f32.mrf.mxu0
      %v1219 = vadd.f32 0.0, %v1218
      %v1220 = vpop.f32.mrf.mxu0
      %1221 = vmatprep.mubr.f32.mxu0 0.0
      %1222 = vmatmul.mubr.f32.gmra.mxu0 %v1126
      %v1223 = vpop.f32.mrf.mxu0
      %v1224 = vadd.f32 0.0, %v1223
      %v1225 = vpop.f32.mrf.mxu0
      %1226 = vmatprep.mubr.f32.mxu0 0.0
      %1227 = vmatmul.mubr.f32.gmra.mxu0 %v1129
      %v1228 = vpop.f32.mrf.mxu0
      %v1229 = vadd.f32 0.0, %v1228
      %v1230 = vpop.f32.mrf.mxu0
      %1231 = vmatprep.mubr.f32.mxu0 0.0
      %1232 = vmatmul.mubr.f32.gmra.mxu0 %v1132
      %v1233 = vpop.f32.mrf.mxu0
      %v1234 = vadd.f32 0.0, %v1233
      %v1235 = vpop.f32.mrf.mxu0
      %1236 = vmatprep.mubr.f32.mxu0 0.0
      %1237 = vmatmul.mubr.f32.gmra.mxu0 %v1135
      %v1238 = vpop.f32.mrf.mxu0
      %v1239 = vadd.f32 0.0, %v1238
      %v1240 = vpop.f32.mrf.mxu0
      %1241 = vdwg.mxu0
      %1242 = vxpose.xlu0.b32.start [1/16] %v1105, 128
      %1243 = vxpose.xlu0.b32.cont [2/16] %v1106, 128
      %1244 = vxpose.xlu0.b32.cont [3/16] %v1107, 128
      %1245 = vxpose.xlu0.b32.cont [4/16] %v1108, 128
      %1246 = vxpose.xlu0.b32.cont [5/16] %v1109, 128
      %1247 = vxpose.xlu0.b32.cont [6/16] %v1110, 128
      %1248 = vxpose.xlu0.b32.cont [7/16] %v1111, 128
      %1249 = vxpose.xlu0.b32.cont [8/16] %v1112, 128
      %1250 = vxpose.xlu0.b32.cont [9/16] 0.0, 128
      %1251 = vxpose.xlu0.b32.cont [10/16] 0.0, 128
      %1252 = vxpose.xlu0.b32.cont [11/16] 0.0, 128
      %1253 = vxpose.xlu0.b32.cont [12/16] 0.0, 128
      %1254 = vxpose.xlu0.b32.cont [13/16] 0.0, 128
      %1255 = vxpose.xlu0.b32.cont [14/16] 0.0, 128
      %1256 = vxpose.xlu0.b32.cont [15/16] 0.0, 128
      %1257 = vxpose.xlu0.b32.end [16/16] 0.0, 128
      %v1258 = vpop.trf.xlu0
      %v1259 = vpop.trf.xlu0
      %v1260 = vpop.trf.xlu0
      %v1261 = vpop.trf.xlu0
      %v1262 = vpop.trf.xlu0
      %v1263 = vpop.trf.xlu0
      %v1264 = vpop.trf.xlu0
      %v1265 = vpop.trf.xlu0
      %v1266 = vpop.trf.xlu0
      %v1267 = vpop.trf.xlu0
      %v1268 = vpop.trf.xlu0
      %v1269 = vpop.trf.xlu0
      %v1270 = vpop.trf.xlu0
      %v1271 = vpop.trf.xlu0
      %v1272 = vpop.trf.xlu0
      %v1273 = vpop.trf.xlu0
      %v1275 = vsel %vm288, %v1258, 0
      %v1278 = vsel %vm288, %v1259, 0
      %v1281 = vsel %vm288, %v1260, 0
      %v1284 = vsel %vm288, %v1261, 0
      %v1287 = vsel %vm288, %v1262, 0
      %v1290 = vsel %vm288, %v1263, 0
      %v1293 = vsel %vm288, %v1264, 0
      %v1296 = vsel %vm288, %v1265, 0
      %1298 = vmatprep.subr.mxu0 0.0
      %1299 = vmatpush1.msra.mxu0 0.0
      %1300 = vmatprep.subr.mxu0 0.0
      %1301 = vmatpush1.msra.mxu0 0.0
      %1302 = vmatprep.subr.mxu0 0.0
      %1303 = vmatpush1.msra.mxu0 0.0
      %1304 = vmatprep.subr.mxu0 0.0
      %1305 = vmatpush1.msra.mxu0 0.0
      %1306 = vmatprep.subr.mxu0 0.0
      %1307 = vmatpush1.msra.mxu0 0.0
      %1308 = vmatprep.subr.mxu0 0.0
      %1309 = vmatpush1.msra.mxu0 0.0
      %1310 = vmatprep.subr.mxu0 0.0
      %1311 = vmatpush1.msra.mxu0 0.0
      %1312 = vmatprep.subr.mxu0 0.0
      %1313 = vmatpush1.msra.mxu0 0.0
      %1314 = vmatprep.subr.mxu0 0.0
      %1315 = vmatpush1.msra.mxu0 %v1239
      %1316 = vmatprep.subr.mxu0 0.0
      %1317 = vmatpush1.msra.mxu0 %v1234
      %1318 = vmatprep.subr.mxu0 0.0
      %1319 = vmatpush1.msra.mxu0 %v1229
      %1320 = vmatprep.subr.mxu0 0.0
      %1321 = vmatpush1.msra.mxu0 %v1224
      %1322 = vmatprep.subr.mxu0 0.0
      %1323 = vmatpush1.msra.mxu0 %v1219
      %1324 = vmatprep.subr.mxu0 0.0
      %1325 = vmatpush1.msra.mxu0 %v1214
      %1326 = vmatprep.subr.mxu0 0.0
      %1327 = vmatpush1.msra.mxu0 %v1209
      %1328 = vmatprep.subr.mxu0 0.0
      %1329 = vmatpush1.msra.mxu0 %v1204
      %1330 = vmatprep.subr.mxu0 0.0
      %1331 = vmatpush2.msra.mxu0 0.0
      %1332 = vmatprep.subr.mxu0 0.0
      %1333 = vmatpush2.msra.mxu0 0.0
      %1334 = vmatprep.subr.mxu0 0.0
      %1335 = vmatpush2.msra.mxu0 0.0
      %1336 = vmatprep.subr.mxu0 0.0
      %1337 = vmatpush2.msra.mxu0 0.0
      %1338 = vmatprep.subr.mxu0 0.0
      %1339 = vmatpush2.msra.mxu0 0.0
      %1340 = vmatprep.subr.mxu0 0.0
      %1341 = vmatpush2.msra.mxu0 0.0
      %1342 = vmatprep.subr.mxu0 0.0
      %1343 = vmatpush2.msra.mxu0 0.0
      %1344 = vmatprep.subr.mxu0 0.0
      %1345 = vmatpush2.msra.mxu0 0.0
      %1346 = vmatprep.subr.mxu0 0.0
      %1347 = vmatpush2.msra.mxu0 0.0
      %1348 = vmatprep.subr.mxu0 0.0
      %1349 = vmatpush2.msra.mxu0 0.0
      %1350 = vmatprep.subr.mxu0 0.0
      %1351 = vmatpush2.msra.mxu0 0.0
      %1352 = vmatprep.subr.mxu0 0.0
      %1353 = vmatpush2.msra.mxu0 0.0
      %1354 = vmatprep.subr.mxu0 0.0
      %1355 = vmatpush2.msra.mxu0 0.0
      %1356 = vmatprep.subr.mxu0 0.0
      %1357 = vmatpush2.msra.mxu0 0.0
      %1358 = vmatprep.subr.mxu0 0.0
      %1359 = vmatpush2.msra.mxu0 0.0
      %1360 = vmatprep.subr.mxu0 0.0
      %1361 = vmatpush2.msra.mxu0 0.0
      %1362 = vmatprep.mubr.f32.mxu0 0.0
      %1363 = vmatmul.mubr.f32.gmra.mxu0 %v1275
      %v1364 = vpop.f32.mrf.mxu0
      %v1365 = vadd.f32 0.0, %v1364
      %v1366 = vpop.f32.mrf.mxu0
      %1367 = vmatprep.mubr.f32.mxu0 0.0
      %1368 = vmatmul.mubr.f32.gmra.mxu0 %v1278
      %v1369 = vpop.f32.mrf.mxu0
      %v1370 = vadd.f32 0.0, %v1369
      %v1371 = vpop.f32.mrf.mxu0
      %1372 = vmatprep.mubr.f32.mxu0 0.0
      %1373 = vmatmul.mubr.f32.gmra.mxu0 %v1281
      %v1374 = vpop.f32.mrf.mxu0
      %v1375 = vadd.f32 0.0, %v1374
      %v1376 = vpop.f32.mrf.mxu0
      %1377 = vmatprep.mubr.f32.mxu0 0.0
      %1378 = vmatmul.mubr.f32.gmra.mxu0 %v1284
      %v1379 = vpop.f32.mrf.mxu0
      %v1380 = vadd.f32 0.0, %v1379
      %v1381 = vpop.f32.mrf.mxu0
      %1382 = vmatprep.mubr.f32.mxu0 0.0
      %1383 = vmatmul.mubr.f32.gmra.mxu0 %v1287
      %v1384 = vpop.f32.mrf.mxu0
      %v1385 = vadd.f32 0.0, %v1384
      %v1386 = vpop.f32.mrf.mxu0
      %1387 = vmatprep.mubr.f32.mxu0 0.0
      %1388 = vmatmul.mubr.f32.gmra.mxu0 %v1290
      %v1389 = vpop.f32.mrf.mxu0
      %v1390 = vadd.f32 0.0, %v1389
      %v1391 = vpop.f32.mrf.mxu0
      %1392 = vmatprep.mubr.f32.mxu0 0.0
      %1393 = vmatmul.mubr.f32.gmra.mxu0 %v1293
      %v1394 = vpop.f32.mrf.mxu0
      %v1395 = vadd.f32 0.0, %v1394
      %v1396 = vpop.f32.mrf.mxu0
      %1397 = vmatprep.mubr.f32.mxu0 0.0
      %1398 = vmatmul.mubr.f32.gmra.mxu0 %v1296
      %v1399 = vpop.f32.mrf.mxu0
      %v1400 = vadd.f32 0.0, %v1399
      %v1401 = vpop.f32.mrf.mxu0
      %1402 = vdwg.mxu0
      %1403 = vst.msk [vmem:[#allocation2] sm:$0xff] %vm288, %v1365
      %1404 = vst.msk [vmem:[#allocation2 + $0x8] sm:$0xff] %vm288, %v1370
      %1405 = vst.msk [vmem:[#allocation2 + $0x10] sm:$0xff] %vm288, %v1375
      %1406 = vst.msk [vmem:[#allocation2 + $0x18] sm:$0xff] %vm288, %v1380
      %1407 = vst.msk [vmem:[#allocation2 + $0x20] sm:$0xff] %vm288, %v1385
      %1408 = vst.msk [vmem:[#allocation2 + $0x28] sm:$0xff] %vm288, %v1390
      %1409 = vst.msk [vmem:[#allocation2 + $0x30] sm:$0xff] %vm288, %v1395
      %1410 = vst.msk [vmem:[#allocation2 + $0x38] sm:$0xff] %vm288, %v1400
      %v1411 = vld [vmem:[#allocation3] sm:$0xff]
      %v1412 = vld [vmem:[#allocation3 + $0x8] sm:$0xff]
      %v1413 = vld [vmem:[#allocation3 + $0x10] sm:$0xff]
      %v1414 = vld [vmem:[#allocation3 + $0x18] sm:$0xff]
      %v1415 = vld [vmem:[#allocation3 + $0x20] sm:$0xff]
      %v1416 = vld [vmem:[#allocation3 + $0x28] sm:$0xff]
      %v1417 = vld [vmem:[#allocation3 + $0x30] sm:$0xff]
      %v1418 = vld [vmem:[#allocation3 + $0x38] sm:$0xff]
      %v1420 = vsel %vm288, %v1411, 0
      %v1423 = vsel %vm288, %v1412, 0
      %v1426 = vsel %vm288, %v1413, 0
      %v1429 = vsel %vm288, %v1414, 0
      %v1432 = vsel %vm288, %v1415, 0
      %v1435 = vsel %vm288, %v1416, 0
      %v1438 = vsel %vm288, %v1417, 0
      %v1441 = vsel %vm288, %v1418, 0
      %1443 = vmatprep.subr.mxu0 0.0
      %1444 = vmatpush1.msra.mxu0 0.0
      %1445 = vmatprep.subr.mxu0 0.0
      %1446 = vmatpush1.msra.mxu0 0.0
      %1447 = vmatprep.subr.mxu0 0.0
      %1448 = vmatpush1.msra.mxu0 0.0
      %1449 = vmatprep.subr.mxu0 0.0
      %1450 = vmatpush1.msra.mxu0 0.0
      %1451 = vmatprep.subr.mxu0 0.0
      %1452 = vmatpush1.msra.mxu0 0.0
      %1453 = vmatprep.subr.mxu0 0.0
      %1454 = vmatpush1.msra.mxu0 0.0
      %1455 = vmatprep.subr.mxu0 0.0
      %1456 = vmatpush1.msra.mxu0 0.0
      %1457 = vmatprep.subr.mxu0 0.0
      %1458 = vmatpush1.msra.mxu0 0.0
      %1459 = vmatprep.subr.mxu0 0.0
      %1460 = vmatpush1.msra.mxu0 %v1112
      %1461 = vmatprep.subr.mxu0 0.0
      %1462 = vmatpush1.msra.mxu0 %v1111
      %1463 = vmatprep.subr.mxu0 0.0
      %1464 = vmatpush1.msra.mxu0 %v1110
      %1465 = vmatprep.subr.mxu0 0.0
      %1466 = vmatpush1.msra.mxu0 %v1109
      %1467 = vmatprep.subr.mxu0 0.0
      %1468 = vmatpush1.msra.mxu0 %v1108
      %1469 = vmatprep.subr.mxu0 0.0
      %1470 = vmatpush1.msra.mxu0 %v1107
      %1471 = vmatprep.subr.mxu0 0.0
      %1472 = vmatpush1.msra.mxu0 %v1106
      %1473 = vmatprep.subr.mxu0 0.0
      %1474 = vmatpush1.msra.mxu0 %v1105
      %1475 = vmatprep.subr.mxu0 0.0
      %1476 = vmatpush2.msra.mxu0 0.0
      %1477 = vmatprep.subr.mxu0 0.0
      %1478 = vmatpush2.msra.mxu0 0.0
      %1479 = vmatprep.subr.mxu0 0.0
      %1480 = vmatpush2.msra.mxu0 0.0
      %1481 = vmatprep.subr.mxu0 0.0
      %1482 = vmatpush2.msra.mxu0 0.0
      %1483 = vmatprep.subr.mxu0 0.0
      %1484 = vmatpush2.msra.mxu0 0.0
      %1485 = vmatprep.subr.mxu0 0.0
      %1486 = vmatpush2.msra.mxu0 0.0
      %1487 = vmatprep.subr.mxu0 0.0
      %1488 = vmatpush2.msra.mxu0 0.0
      %1489 = vmatprep.subr.mxu0 0.0
      %1490 = vmatpush2.msra.mxu0 0.0
      %1491 = vmatprep.subr.mxu0 0.0
      %1492 = vmatpush2.msra.mxu0 0.0
      %1493 = vmatprep.subr.mxu0 0.0
      %1494 = vmatpush2.msra.mxu0 0.0
      %1495 = vmatprep.subr.mxu0 0.0
      %1496 = vmatpush2.msra.mxu0 0.0
      %1497 = vmatprep.subr.mxu0 0.0
      %1498 = vmatpush2.msra.mxu0 0.0
      %1499 = vmatprep.subr.mxu0 0.0
      %1500 = vmatpush2.msra.mxu0 0.0
      %1501 = vmatprep.subr.mxu0 0.0
      %1502 = vmatpush2.msra.mxu0 0.0
      %1503 = vmatprep.subr.mxu0 0.0
      %1504 = vmatpush2.msra.mxu0 0.0
      %1505 = vmatprep.subr.mxu0 0.0
      %1506 = vmatpush2.msra.mxu0 0.0
      %1507 = vmatprep.mubr.f32.mxu0 0.0
      %1508 = vmatmul.mubr.f32.gmra.mxu0 %v1420
      %v1509 = vpop.f32.mrf.mxu0
      %v1510 = vadd.f32 0.0, %v1509
      %v1511 = vpop.f32.mrf.mxu0
      %1512 = vmatprep.mubr.f32.mxu0 0.0
      %1513 = vmatmul.mubr.f32.gmra.mxu0 %v1423
      %v1514 = vpop.f32.mrf.mxu0
      %v1515 = vadd.f32 0.0, %v1514
      %v1516 = vpop.f32.mrf.mxu0
      %1517 = vmatprep.mubr.f32.mxu0 0.0
      %1518 = vmatmul.mubr.f32.gmra.mxu0 %v1426
      %v1519 = vpop.f32.mrf.mxu0
      %v1520 = vadd.f32 0.0, %v1519
      %v1521 = vpop.f32.mrf.mxu0
      %1522 = vmatprep.mubr.f32.mxu0 0.0
      %1523 = vmatmul.mubr.f32.gmra.mxu0 %v1429
      %v1524 = vpop.f32.mrf.mxu0
      %v1525 = vadd.f32 0.0, %v1524
      %v1526 = vpop.f32.mrf.mxu0
      %1527 = vmatprep.mubr.f32.mxu0 0.0
      %1528 = vmatmul.mubr.f32.gmra.mxu0 %v1432
      %v1529 = vpop.f32.mrf.mxu0
      %v1530 = vadd.f32 0.0, %v1529
      %v1531 = vpop.f32.mrf.mxu0
      %1532 = vmatprep.mubr.f32.mxu0 0.0
      %1533 = vmatmul.mubr.f32.gmra.mxu0 %v1435
      %v1534 = vpop.f32.mrf.mxu0
      %v1535 = vadd.f32 0.0, %v1534
      %v1536 = vpop.f32.mrf.mxu0
      %1537 = vmatprep.mubr.f32.mxu0 0.0
      %1538 = vmatmul.mubr.f32.gmra.mxu0 %v1438
      %v1539 = vpop.f32.mrf.mxu0
      %v1540 = vadd.f32 0.0, %v1539
      %v1541 = vpop.f32.mrf.mxu0
      %1542 = vmatprep.mubr.f32.mxu0 0.0
      %1543 = vmatmul.mubr.f32.gmra.mxu0 %v1441
      %v1544 = vpop.f32.mrf.mxu0
      %v1545 = vadd.f32 0.0, %v1544
      %v1546 = vpop.f32.mrf.mxu0
      %1547 = vdwg.mxu0
      %1548 = vst.msk [vmem:[#allocation3] sm:$0xff] %vm288, %v1510
      %1549 = vst.msk [vmem:[#allocation3 + $0x8] sm:$0xff] %vm288, %v1515
      %1550 = vst.msk [vmem:[#allocation3 + $0x10] sm:$0xff] %vm288, %v1520
      %1551 = vst.msk [vmem:[#allocation3 + $0x18] sm:$0xff] %vm288, %v1525
      %1552 = vst.msk [vmem:[#allocation3 + $0x20] sm:$0xff] %vm288, %v1530
      %1553 = vst.msk [vmem:[#allocation3 + $0x28] sm:$0xff] %vm288, %v1535
      %1554 = vst.msk [vmem:[#allocation3 + $0x30] sm:$0xff] %vm288, %v1540
      %1555 = vst.msk [vmem:[#allocation3 + $0x38] sm:$0xff] %vm288, %v1545
      %s1556 = scalar_lea.vmem [#allocation6], 128
      %v1557 = vld [vmem:[%s1556] sm:$0xff]
      %v1558 = vld [vmem:[%s1556 + $0x8] sm:$0xff]
      %v1559 = vld [vmem:[%s1556 + $0x10] sm:$0xff]
      %v1560 = vld [vmem:[%s1556 + $0x18] sm:$0xff]
      %v1561 = vld [vmem:[%s1556 + $0x20] sm:$0xff]
      %v1562 = vld [vmem:[%s1556 + $0x28] sm:$0xff]
      %v1563 = vld [vmem:[%s1556 + $0x30] sm:$0xff]
      %v1564 = vld [vmem:[%s1556 + $0x38] sm:$0xff]
      %v1565 = vand.u32 2147483647, %v1557
      %v1566 = vand.u32 2147483647, %v1558
      %v1567 = vand.u32 2147483647, %v1559
      %v1568 = vand.u32 2147483647, %v1560
      %v1569 = vand.u32 2147483647, %v1561
      %v1570 = vand.u32 2147483647, %v1562
      %v1571 = vand.u32 2147483647, %v1563
      %v1572 = vand.u32 2147483647, %v1564
      %v1573 = vld [vmem:[#allocation2] sm:$0xff]
      %v1574 = vld [vmem:[#allocation2 + $0x8] sm:$0xff]
      %v1575 = vld [vmem:[#allocation2 + $0x10] sm:$0xff]
      %v1576 = vld [vmem:[#allocation2 + $0x18] sm:$0xff]
      %v1577 = vld [vmem:[#allocation2 + $0x20] sm:$0xff]
      %v1578 = vld [vmem:[#allocation2 + $0x28] sm:$0xff]
      %v1579 = vld [vmem:[#allocation2 + $0x30] sm:$0xff]
      %v1580 = vld [vmem:[#allocation2 + $0x38] sm:$0xff]
      %v1581 = vmul.f32 %v1573, %v100
      %v1582 = vmul.f32 %v1574, %v101
      %v1583 = vmul.f32 %v1575, %v102
      %v1584 = vmul.f32 %v1576, %v103
      %v1585 = vmul.f32 %v1577, %v104
      %v1586 = vmul.f32 %v1578, %v105
      %v1587 = vmul.f32 %v1579, %v106
      %v1588 = vmul.f32 %v1580, %v107
      %v1589 = vsel %vm288, %v1581, 0.0
      %1590 = vadd.xlane.f32.xlu0 %v1589
      %v1591 = vpop.xlane.xlu0 %1590
      %v1592 = vsel %vm288, %v1582, 0.0
      %1593 = vadd.xlane.f32.xlu0 %v1592
      %v1594 = vpop.xlane.xlu0 %1593
      %v1595 = vsel %vm288, %v1583, 0.0
      %1596 = vadd.xlane.f32.xlu0 %v1595
      %v1597 = vpop.xlane.xlu0 %1596
      %v1598 = vsel %vm288, %v1584, 0.0
      %1599 = vadd.xlane.f32.xlu0 %v1598
      %v1600 = vpop.xlane.xlu0 %1599
      %v1601 = vsel %vm288, %v1585, 0.0
      %1602 = vadd.xlane.f32.xlu0 %v1601
      %v1603 = vpop.xlane.xlu0 %1602
      %v1604 = vsel %vm288, %v1586, 0.0
      %1605 = vadd.xlane.f32.xlu0 %v1604
      %v1606 = vpop.xlane.xlu0 %1605
      %v1607 = vsel %vm288, %v1587, 0.0
      %1608 = vadd.xlane.f32.xlu0 %v1607
      %v1609 = vpop.xlane.xlu0 %1608
      %v1610 = vsel %vm288, %v1588, 0.0
      %1611 = vadd.xlane.f32.xlu0 %v1610
      %v1612 = vpop.xlane.xlu0 %1611
      %v1613 = vadd.f32 %v1589, %v1592
      %v1614 = vadd.f32 %v1613, %v1595
      %v1615 = vadd.f32 %v1614, %v1598
      %v1616 = vadd.f32 %v1615, %v1601
      %v1617 = vadd.f32 %v1616, %v1604
      %v1618 = vadd.f32 %v1617, %v1607
      %v1619 = vadd.f32 %v1618, %v1610
      %v1620 = vrot.slane %v1619, 4
      %v1621 = vadd.f32 %v1619, %v1620
      %v1622 = vrot.slane %v1621, 2
      %v1623 = vadd.f32 %v1621, %v1622
      %v1624 = vrot.slane %v1623, 1
      %v1625 = vadd.f32 %v1623, %v1624
      %v1626 = vmul.f32 %v1573, %v1557
      %v1627 = vmul.f32 %v1574, %v1558
      %v1628 = vmul.f32 %v1575, %v1559
      %v1629 = vmul.f32 %v1576, %v1560
      %v1630 = vmul.f32 %v1577, %v1561
      %v1631 = vmul.f32 %v1578, %v1562
      %v1632 = vmul.f32 %v1579, %v1563
      %v1633 = vmul.f32 %v1580, %v1564
      %v1634 = vsel %vm288, %v1626, 0.0
      %v1635 = vsel %vm288, %v1627, 0.0
      %v1636 = vadd.f32 %v1634, %v1635
      %v1637 = vsel %vm288, %v1628, 0.0
      %v1638 = vadd.f32 %v1636, %v1637
      %v1639 = vsel %vm288, %v1629, 0.0
      %v1640 = vadd.f32 %v1638, %v1639
      %v1641 = vsel %vm288, %v1630, 0.0
      %v1642 = vadd.f32 %v1640, %v1641
      %v1643 = vsel %vm288, %v1631, 0.0
      %v1644 = vadd.f32 %v1642, %v1643
      %v1645 = vsel %vm288, %v1632, 0.0
      %v1646 = vadd.f32 %v1644, %v1645
      %v1647 = vsel %vm288, %v1633, 0.0
      %v1648 = vadd.f32 %v1646, %v1647
      %v1649 = vrot.slane %v1648, 4
      %v1650 = vadd.f32 %v1648, %v1649
      %v1651 = vrot.slane %v1650, 2
      %v1652 = vadd.f32 %v1650, %v1651
      %v1653 = vrot.slane %v1652, 1
      %v1654 = vadd.f32 %v1652, %v1653
      %v1655 = vmul.f32 %v1565, %v1591
      %v1656 = vmul.f32 %v1566, %v1594
      %v1657 = vmul.f32 %v1567, %v1597
      %v1658 = vmul.f32 %v1568, %v1600
      %v1659 = vmul.f32 %v1569, %v1603
      %v1660 = vmul.f32 %v1570, %v1606
      %v1661 = vmul.f32 %v1571, %v1609
      %v1662 = vmul.f32 %v1572, %v1612
      %v1663 = vsel %vm288, %v1655, 0.0
      %v1664 = vsel %vm288, %v1656, 0.0
      %v1665 = vadd.f32 %v1663, %v1664
      %v1666 = vsel %vm288, %v1657, 0.0
      %v1667 = vadd.f32 %v1665, %v1666
      %v1668 = vsel %vm288, %v1658, 0.0
      %v1669 = vadd.f32 %v1667, %v1668
      %v1670 = vsel %vm288, %v1659, 0.0
      %v1671 = vadd.f32 %v1669, %v1670
      %v1672 = vsel %vm288, %v1660, 0.0
      %v1673 = vadd.f32 %v1671, %v1672
      %v1674 = vsel %vm288, %v1661, 0.0
      %v1675 = vadd.f32 %v1673, %v1674
      %v1676 = vsel %vm288, %v1662, 0.0
      %v1677 = vadd.f32 %v1675, %v1676
      %v1678 = vrot.slane %v1677, 4
      %v1679 = vadd.f32 %v1677, %v1678
      %v1680 = vrot.slane %v1679, 2
      %v1681 = vadd.f32 %v1679, %v1680
      %v1682 = vrot.slane %v1681, 1
      %v1683 = vadd.f32 %v1681, %v1682
      %v1684 = vand.u32 2147483647, %v1654
      %vm1685 = vcmp.gt.f32.partialorder %v1684, 1e-12
      %v1686 = vsel %vm1685, %v1654, 1.0
      %v1687 = vsub.f32 %v1625, %v1683
      %v1688 = vmul.f32 %v1686, 2.0
      %v1689 = vrcp.pop %v1688
      %v1690 = vmul.f32 %v1687, %v1689
      %vm1691 = vcmp.ge.f32.partialorder %v1690, 0.0
      %v1692 = vsel %vm1691, 1.0, -1.0
      %v1693 = vand.u32 2147483647, %v1690
      %v1694 = vmul.f32 %v1690, %v1690
      %v1695 = vadd.f32 %v1694, 1.0
      %v1696 = vrsqrt.pop %v1695
      %v1697 = vmul.f32 %v1695, %v1696
      %vm1698 = vcmp.eq.f32.partialorder %v1695, inf
      %v1699 = vsel %vm1698, %v1695, %v1697
      %vm1700 = vcmp.eq.f32.partialorder %v1695, 0.0
      %v1701 = vand.u32 %v1695, 2147483648
      %v1702 = vsel %vm1700, %v1701, %v1699
      %v1703 = vadd.f32 %v1693, %v1702
      %v1704 = vrcp.pop %v1703
      %v1705 = vmul.f32 %v1692, %v1704
      %v1706 = vmul.f32 %v1705, %v1705
      %v1707 = vadd.f32 %v1706, 1.0
      %v1708 = vrsqrt.pop %v1707
      %v1709 = vmul.f32 %v1705, %v1708
      %v1710 = vsel %vm1685, %v1708, 1.0
      %v1711 = vsel %vm1685, %v1709, 0.0
      %v1712 = vmul.f32 %v100, %v1710
      %v1713 = vmul.f32 %v101, %v1710
      %v1714 = vmul.f32 %v102, %v1710
      %v1715 = vmul.f32 %v103, %v1710
      %v1716 = vmul.f32 %v104, %v1710
      %v1717 = vmul.f32 %v105, %v1710
      %v1718 = vmul.f32 %v106, %v1710
      %v1719 = vmul.f32 %v107, %v1710
      %v1720 = vmul.f32 %v1557, %v1711
      %v1721 = vmul.f32 %v1558, %v1711
      %v1722 = vmul.f32 %v1559, %v1711
      %v1723 = vmul.f32 %v1560, %v1711
      %v1724 = vmul.f32 %v1561, %v1711
      %v1725 = vmul.f32 %v1562, %v1711
      %v1726 = vmul.f32 %v1563, %v1711
      %v1727 = vmul.f32 %v1564, %v1711
      %v1728 = vadd.f32 %v1712, %v1720
      %v1729 = vadd.f32 %v1713, %v1721
      %v1730 = vadd.f32 %v1714, %v1722
      %v1731 = vadd.f32 %v1715, %v1723
      %v1732 = vadd.f32 %v1716, %v1724
      %v1733 = vadd.f32 %v1717, %v1725
      %v1734 = vadd.f32 %v1718, %v1726
      %v1735 = vadd.f32 %v1719, %v1727
      %v1737 = vsel %vm288, %v1573, 0
      %v1740 = vsel %vm288, %v1574, 0
      %v1743 = vsel %vm288, %v1575, 0
      %v1746 = vsel %vm288, %v1576, 0
      %v1749 = vsel %vm288, %v1577, 0
      %v1752 = vsel %vm288, %v1578, 0
      %v1755 = vsel %vm288, %v1579, 0
      %v1758 = vsel %vm288, %v1580, 0
      %1760 = vmatprep.subr.mxu0 0.0
      %1761 = vmatpush1.msra.mxu0 0.0
      %1762 = vmatprep.subr.mxu0 0.0
      %1763 = vmatpush1.msra.mxu0 0.0
      %1764 = vmatprep.subr.mxu0 0.0
      %1765 = vmatpush1.msra.mxu0 0.0
      %1766 = vmatprep.subr.mxu0 0.0
      %1767 = vmatpush1.msra.mxu0 0.0
      %1768 = vmatprep.subr.mxu0 0.0
      %1769 = vmatpush1.msra.mxu0 0.0
      %1770 = vmatprep.subr.mxu0 0.0
      %1771 = vmatpush1.msra.mxu0 0.0
      %1772 = vmatprep.subr.mxu0 0.0
      %1773 = vmatpush1.msra.mxu0 0.0
      %1774 = vmatprep.subr.mxu0 0.0
      %1775 = vmatpush1.msra.mxu0 0.0
      %1776 = vmatprep.subr.mxu0 0.0
      %1777 = vmatpush1.msra.mxu0 %v1735
      %1778 = vmatprep.subr.mxu0 0.0
      %1779 = vmatpush1.msra.mxu0 %v1734
      %1780 = vmatprep.subr.mxu0 0.0
      %1781 = vmatpush1.msra.mxu0 %v1733
      %1782 = vmatprep.subr.mxu0 0.0
      %1783 = vmatpush1.msra.mxu0 %v1732
      %1784 = vmatprep.subr.mxu0 0.0
      %1785 = vmatpush1.msra.mxu0 %v1731
      %1786 = vmatprep.subr.mxu0 0.0
      %1787 = vmatpush1.msra.mxu0 %v1730
      %1788 = vmatprep.subr.mxu0 0.0
      %1789 = vmatpush1.msra.mxu0 %v1729
      %1790 = vmatprep.subr.mxu0 0.0
      %1791 = vmatpush1.msra.mxu0 %v1728
      %1792 = vmatprep.subr.mxu0 0.0
      %1793 = vmatpush2.msra.mxu0 0.0
      %1794 = vmatprep.subr.mxu0 0.0
      %1795 = vmatpush2.msra.mxu0 0.0
      %1796 = vmatprep.subr.mxu0 0.0
      %1797 = vmatpush2.msra.mxu0 0.0
      %1798 = vmatprep.subr.mxu0 0.0
      %1799 = vmatpush2.msra.mxu0 0.0
      %1800 = vmatprep.subr.mxu0 0.0
      %1801 = vmatpush2.msra.mxu0 0.0
      %1802 = vmatprep.subr.mxu0 0.0
      %1803 = vmatpush2.msra.mxu0 0.0
      %1804 = vmatprep.subr.mxu0 0.0
      %1805 = vmatpush2.msra.mxu0 0.0
      %1806 = vmatprep.subr.mxu0 0.0
      %1807 = vmatpush2.msra.mxu0 0.0
      %1808 = vmatprep.subr.mxu0 0.0
      %1809 = vmatpush2.msra.mxu0 0.0
      %1810 = vmatprep.subr.mxu0 0.0
      %1811 = vmatpush2.msra.mxu0 0.0
      %1812 = vmatprep.subr.mxu0 0.0
      %1813 = vmatpush2.msra.mxu0 0.0
      %1814 = vmatprep.subr.mxu0 0.0
      %1815 = vmatpush2.msra.mxu0 0.0
      %1816 = vmatprep.subr.mxu0 0.0
      %1817 = vmatpush2.msra.mxu0 0.0
      %1818 = vmatprep.subr.mxu0 0.0
      %1819 = vmatpush2.msra.mxu0 0.0
      %1820 = vmatprep.subr.mxu0 0.0
      %1821 = vmatpush2.msra.mxu0 0.0
      %1822 = vmatprep.subr.mxu0 0.0
      %1823 = vmatpush2.msra.mxu0 0.0
      %1824 = vmatprep.mubr.f32.mxu0 0.0
      %1825 = vmatmul.mubr.f32.gmra.mxu0 %v1737
      %v1826 = vpop.f32.mrf.mxu0
      %v1827 = vadd.f32 0.0, %v1826
      %v1828 = vpop.f32.mrf.mxu0
      %1829 = vmatprep.mubr.f32.mxu0 0.0
      %1830 = vmatmul.mubr.f32.gmra.mxu0 %v1740
      %v1831 = vpop.f32.mrf.mxu0
      %v1832 = vadd.f32 0.0, %v1831
      %v1833 = vpop.f32.mrf.mxu0
      %1834 = vmatprep.mubr.f32.mxu0 0.0
      %1835 = vmatmul.mubr.f32.gmra.mxu0 %v1743
      %v1836 = vpop.f32.mrf.mxu0
      %v1837 = vadd.f32 0.0, %v1836
      %v1838 = vpop.f32.mrf.mxu0
      %1839 = vmatprep.mubr.f32.mxu0 0.0
      %1840 = vmatmul.mubr.f32.gmra.mxu0 %v1746
      %v1841 = vpop.f32.mrf.mxu0
      %v1842 = vadd.f32 0.0, %v1841
      %v1843 = vpop.f32.mrf.mxu0
      %1844 = vmatprep.mubr.f32.mxu0 0.0
      %1845 = vmatmul.mubr.f32.gmra.mxu0 %v1749
      %v1846 = vpop.f32.mrf.mxu0
      %v1847 = vadd.f32 0.0, %v1846
      %v1848 = vpop.f32.mrf.mxu0
      %1849 = vmatprep.mubr.f32.mxu0 0.0
      %1850 = vmatmul.mubr.f32.gmra.mxu0 %v1752
      %v1851 = vpop.f32.mrf.mxu0
      %v1852 = vadd.f32 0.0, %v1851
      %v1853 = vpop.f32.mrf.mxu0
      %1854 = vmatprep.mubr.f32.mxu0 0.0
      %1855 = vmatmul.mubr.f32.gmra.mxu0 %v1755
      %v1856 = vpop.f32.mrf.mxu0
      %v1857 = vadd.f32 0.0, %v1856
      %v1858 = vpop.f32.mrf.mxu0
      %1859 = vmatprep.mubr.f32.mxu0 0.0
      %1860 = vmatmul.mubr.f32.gmra.mxu0 %v1758
      %v1861 = vpop.f32.mrf.mxu0
      %v1862 = vadd.f32 0.0, %v1861
      %v1863 = vpop.f32.mrf.mxu0
      %1864 = vdwg.mxu0
      %1865 = vxpose.xlu0.b32.start [1/16] %v1728, 128
      %1866 = vxpose.xlu0.b32.cont [2/16] %v1729, 128
      %1867 = vxpose.xlu0.b32.cont [3/16] %v1730, 128
      %1868 = vxpose.xlu0.b32.cont [4/16] %v1731, 128
      %1869 = vxpose.xlu0.b32.cont [5/16] %v1732, 128
      %1870 = vxpose.xlu0.b32.cont [6/16] %v1733, 128
      %1871 = vxpose.xlu0.b32.cont [7/16] %v1734, 128
      %1872 = vxpose.xlu0.b32.cont [8/16] %v1735, 128
      %1873 = vxpose.xlu0.b32.cont [9/16] 0.0, 128
      %1874 = vxpose.xlu0.b32.cont [10/16] 0.0, 128
      %1875 = vxpose.xlu0.b32.cont [11/16] 0.0, 128
      %1876 = vxpose.xlu0.b32.cont [12/16] 0.0, 128
      %1877 = vxpose.xlu0.b32.cont [13/16] 0.0, 128
      %1878 = vxpose.xlu0.b32.cont [14/16] 0.0, 128
      %1879 = vxpose.xlu0.b32.cont [15/16] 0.0, 128
      %1880 = vxpose.xlu0.b32.end [16/16] 0.0, 128
      %v1881 = vpop.trf.xlu0
      %v1882 = vpop.trf.xlu0
      %v1883 = vpop.trf.xlu0
      %v1884 = vpop.trf.xlu0
      %v1885 = vpop.trf.xlu0
      %v1886 = vpop.trf.xlu0
      %v1887 = vpop.trf.xlu0
      %v1888 = vpop.trf.xlu0
      %v1889 = vpop.trf.xlu0
      %v1890 = vpop.trf.xlu0
      %v1891 = vpop.trf.xlu0
      %v1892 = vpop.trf.xlu0
      %v1893 = vpop.trf.xlu0
      %v1894 = vpop.trf.xlu0
      %v1895 = vpop.trf.xlu0
      %v1896 = vpop.trf.xlu0
      %v1898 = vsel %vm288, %v1881, 0
      %v1901 = vsel %vm288, %v1882, 0
      %v1904 = vsel %vm288, %v1883, 0
      %v1907 = vsel %vm288, %v1884, 0
      %v1910 = vsel %vm288, %v1885, 0
      %v1913 = vsel %vm288, %v1886, 0
      %v1916 = vsel %vm288, %v1887, 0
      %v1919 = vsel %vm288, %v1888, 0
      %1921 = vmatprep.subr.mxu0 0.0
      %1922 = vmatpush1.msra.mxu0 0.0
      %1923 = vmatprep.subr.mxu0 0.0
      %1924 = vmatpush1.msra.mxu0 0.0
      %1925 = vmatprep.subr.mxu0 0.0
      %1926 = vmatpush1.msra.mxu0 0.0
      %1927 = vmatprep.subr.mxu0 0.0
      %1928 = vmatpush1.msra.mxu0 0.0
      %1929 = vmatprep.subr.mxu0 0.0
      %1930 = vmatpush1.msra.mxu0 0.0
      %1931 = vmatprep.subr.mxu0 0.0
      %1932 = vmatpush1.msra.mxu0 0.0
      %1933 = vmatprep.subr.mxu0 0.0
      %1934 = vmatpush1.msra.mxu0 0.0
      %1935 = vmatprep.subr.mxu0 0.0
      %1936 = vmatpush1.msra.mxu0 0.0
      %1937 = vmatprep.subr.mxu0 0.0
      %1938 = vmatpush1.msra.mxu0 %v1862
      %1939 = vmatprep.subr.mxu0 0.0
      %1940 = vmatpush1.msra.mxu0 %v1857
      %1941 = vmatprep.subr.mxu0 0.0
      %1942 = vmatpush1.msra.mxu0 %v1852
      %1943 = vmatprep.subr.mxu0 0.0
      %1944 = vmatpush1.msra.mxu0 %v1847
      %1945 = vmatprep.subr.mxu0 0.0
      %1946 = vmatpush1.msra.mxu0 %v1842
      %1947 = vmatprep.subr.mxu0 0.0
      %1948 = vmatpush1.msra.mxu0 %v1837
      %1949 = vmatprep.subr.mxu0 0.0
      %1950 = vmatpush1.msra.mxu0 %v1832
      %1951 = vmatprep.subr.mxu0 0.0
      %1952 = vmatpush1.msra.mxu0 %v1827
      %1953 = vmatprep.subr.mxu0 0.0
      %1954 = vmatpush2.msra.mxu0 0.0
      %1955 = vmatprep.subr.mxu0 0.0
      %1956 = vmatpush2.msra.mxu0 0.0
      %1957 = vmatprep.subr.mxu0 0.0
      %1958 = vmatpush2.msra.mxu0 0.0
      %1959 = vmatprep.subr.mxu0 0.0
      %1960 = vmatpush2.msra.mxu0 0.0
      %1961 = vmatprep.subr.mxu0 0.0
      %1962 = vmatpush2.msra.mxu0 0.0
      %1963 = vmatprep.subr.mxu0 0.0
      %1964 = vmatpush2.msra.mxu0 0.0
      %1965 = vmatprep.subr.mxu0 0.0
      %1966 = vmatpush2.msra.mxu0 0.0
      %1967 = vmatprep.subr.mxu0 0.0
      %1968 = vmatpush2.msra.mxu0 0.0
      %1969 = vmatprep.subr.mxu0 0.0
      %1970 = vmatpush2.msra.mxu0 0.0
      %1971 = vmatprep.subr.mxu0 0.0
      %1972 = vmatpush2.msra.mxu0 0.0
      %1973 = vmatprep.subr.mxu0 0.0
      %1974 = vmatpush2.msra.mxu0 0.0
      %1975 = vmatprep.subr.mxu0 0.0
      %1976 = vmatpush2.msra.mxu0 0.0
      %1977 = vmatprep.subr.mxu0 0.0
      %1978 = vmatpush2.msra.mxu0 0.0
      %1979 = vmatprep.subr.mxu0 0.0
      %1980 = vmatpush2.msra.mxu0 0.0
      %1981 = vmatprep.subr.mxu0 0.0
      %1982 = vmatpush2.msra.mxu0 0.0
      %1983 = vmatprep.subr.mxu0 0.0
      %1984 = vmatpush2.msra.mxu0 0.0
      %1985 = vmatprep.mubr.f32.mxu0 0.0
      %1986 = vmatmul.mubr.f32.gmra.mxu0 %v1898
      %v1987 = vpop.f32.mrf.mxu0
      %v1988 = vadd.f32 0.0, %v1987
      %v1989 = vpop.f32.mrf.mxu0
      %1990 = vmatprep.mubr.f32.mxu0 0.0
      %1991 = vmatmul.mubr.f32.gmra.mxu0 %v1901
      %v1992 = vpop.f32.mrf.mxu0
      %v1993 = vadd.f32 0.0, %v1992
      %v1994 = vpop.f32.mrf.mxu0
      %1995 = vmatprep.mubr.f32.mxu0 0.0
      %1996 = vmatmul.mubr.f32.gmra.mxu0 %v1904
      %v1997 = vpop.f32.mrf.mxu0
      %v1998 = vadd.f32 0.0, %v1997
      %v1999 = vpop.f32.mrf.mxu0
      %2000 = vmatprep.mubr.f32.mxu0 0.0
      %2001 = vmatmul.mubr.f32.gmra.mxu0 %v1907
      %v2002 = vpop.f32.mrf.mxu0
      %v2003 = vadd.f32 0.0, %v2002
      %v2004 = vpop.f32.mrf.mxu0
      %2005 = vmatprep.mubr.f32.mxu0 0.0
      %2006 = vmatmul.mubr.f32.gmra.mxu0 %v1910
      %v2007 = vpop.f32.mrf.mxu0
      %v2008 = vadd.f32 0.0, %v2007
      %v2009 = vpop.f32.mrf.mxu0
      %2010 = vmatprep.mubr.f32.mxu0 0.0
      %2011 = vmatmul.mubr.f32.gmra.mxu0 %v1913
      %v2012 = vpop.f32.mrf.mxu0
      %v2013 = vadd.f32 0.0, %v2012
      %v2014 = vpop.f32.mrf.mxu0
      %2015 = vmatprep.mubr.f32.mxu0 0.0
      %2016 = vmatmul.mubr.f32.gmra.mxu0 %v1916
      %v2017 = vpop.f32.mrf.mxu0
      %v2018 = vadd.f32 0.0, %v2017
      %v2019 = vpop.f32.mrf.mxu0
      %2020 = vmatprep.mubr.f32.mxu0 0.0
      %2021 = vmatmul.mubr.f32.gmra.mxu0 %v1919
      %v2022 = vpop.f32.mrf.mxu0
      %v2023 = vadd.f32 0.0, %v2022
      %v2024 = vpop.f32.mrf.mxu0
      %2025 = vdwg.mxu0
      %2026 = vst.msk [vmem:[#allocation2] sm:$0xff] %vm288, %v1988
      %2027 = vst.msk [vmem:[#allocation2 + $0x8] sm:$0xff] %vm288, %v1993
      %2028 = vst.msk [vmem:[#allocation2 + $0x10] sm:$0xff] %vm288, %v1998
      %2029 = vst.msk [vmem:[#allocation2 + $0x18] sm:$0xff] %vm288, %v2003
      %2030 = vst.msk [vmem:[#allocation2 + $0x20] sm:$0xff] %vm288, %v2008
      %2031 = vst.msk [vmem:[#allocation2 + $0x28] sm:$0xff] %vm288, %v2013
      %2032 = vst.msk [vmem:[#allocation2 + $0x30] sm:$0xff] %vm288, %v2018
      %2033 = vst.msk [vmem:[#allocation2 + $0x38] sm:$0xff] %vm288, %v2023
      %v2034 = vld [vmem:[#allocation3] sm:$0xff]
      %v2035 = vld [vmem:[#allocation3 + $0x8] sm:$0xff]
      %v2036 = vld [vmem:[#allocation3 + $0x10] sm:$0xff]
      %v2037 = vld [vmem:[#allocation3 + $0x18] sm:$0xff]
      %v2038 = vld [vmem:[#allocation3 + $0x20] sm:$0xff]
      %v2039 = vld [vmem:[#allocation3 + $0x28] sm:$0xff]
      %v2040 = vld [vmem:[#allocation3 + $0x30] sm:$0xff]
      %v2041 = vld [vmem:[#allocation3 + $0x38] sm:$0xff]
      %v2043 = vsel %vm288, %v2034, 0
      %v2046 = vsel %vm288, %v2035, 0
      %v2049 = vsel %vm288, %v2036, 0
      %v2052 = vsel %vm288, %v2037, 0
      %v2055 = vsel %vm288, %v2038, 0
      %v2058 = vsel %vm288, %v2039, 0
      %v2061 = vsel %vm288, %v2040, 0
      %v2064 = vsel %vm288, %v2041, 0
      %2066 = vmatprep.subr.mxu0 0.0
      %2067 = vmatpush1.msra.mxu0 0.0
      %2068 = vmatprep.subr.mxu0 0.0
      %2069 = vmatpush1.msra.mxu0 0.0
      %2070 = vmatprep.subr.mxu0 0.0
      %2071 = vmatpush1.msra.mxu0 0.0
      %2072 = vmatprep.subr.mxu0 0.0
      %2073 = vmatpush1.msra.mxu0 0.0
      %2074 = vmatprep.subr.mxu0 0.0
      %2075 = vmatpush1.msra.mxu0 0.0
      %2076 = vmatprep.subr.mxu0 0.0
      %2077 = vmatpush1.msra.mxu0 0.0
      %2078 = vmatprep.subr.mxu0 0.0
      %2079 = vmatpush1.msra.mxu0 0.0
      %2080 = vmatprep.subr.mxu0 0.0
      %2081 = vmatpush1.msra.mxu0 0.0
      %2082 = vmatprep.subr.mxu0 0.0
      %2083 = vmatpush1.msra.mxu0 %v1735
      %2084 = vmatprep.subr.mxu0 0.0
      %2085 = vmatpush1.msra.mxu0 %v1734
      %2086 = vmatprep.subr.mxu0 0.0
      %2087 = vmatpush1.msra.mxu0 %v1733
      %2088 = vmatprep.subr.mxu0 0.0
      %2089 = vmatpush1.msra.mxu0 %v1732
      %2090 = vmatprep.subr.mxu0 0.0
      %2091 = vmatpush1.msra.mxu0 %v1731
      %2092 = vmatprep.subr.mxu0 0.0
      %2093 = vmatpush1.msra.mxu0 %v1730
      %2094 = vmatprep.subr.mxu0 0.0
      %2095 = vmatpush1.msra.mxu0 %v1729
      %2096 = vmatprep.subr.mxu0 0.0
      %2097 = vmatpush1.msra.mxu0 %v1728
      %2098 = vmatprep.subr.mxu0 0.0
      %2099 = vmatpush2.msra.mxu0 0.0
      %2100 = vmatprep.subr.mxu0 0.0
      %2101 = vmatpush2.msra.mxu0 0.0
      %2102 = vmatprep.subr.mxu0 0.0
      %2103 = vmatpush2.msra.mxu0 0.0
      %2104 = vmatprep.subr.mxu0 0.0
      %2105 = vmatpush2.msra.mxu0 0.0
      %2106 = vmatprep.subr.mxu0 0.0
      %2107 = vmatpush2.msra.mxu0 0.0
      %2108 = vmatprep.subr.mxu0 0.0
      %2109 = vmatpush2.msra.mxu0 0.0
      %2110 = vmatprep.subr.mxu0 0.0
      %2111 = vmatpush2.msra.mxu0 0.0
      %2112 = vmatprep.subr.mxu0 0.0
      %2113 = vmatpush2.msra.mxu0 0.0
      %2114 = vmatprep.subr.mxu0 0.0
      %2115 = vmatpush2.msra.mxu0 0.0
      %2116 = vmatprep.subr.mxu0 0.0
      %2117 = vmatpush2.msra.mxu0 0.0
      %2118 = vmatprep.subr.mxu0 0.0
      %2119 = vmatpush2.msra.mxu0 0.0
      %2120 = vmatprep.subr.mxu0 0.0
      %2121 = vmatpush2.msra.mxu0 0.0
      %2122 = vmatprep.subr.mxu0 0.0
      %2123 = vmatpush2.msra.mxu0 0.0
      %2124 = vmatprep.subr.mxu0 0.0
      %2125 = vmatpush2.msra.mxu0 0.0
      %2126 = vmatprep.subr.mxu0 0.0
      %2127 = vmatpush2.msra.mxu0 0.0
      %2128 = vmatprep.subr.mxu0 0.0
      %2129 = vmatpush2.msra.mxu0 0.0
      %2130 = vmatprep.mubr.f32.mxu0 0.0
      %2131 = vmatmul.mubr.f32.gmra.mxu0 %v2043
      %v2132 = vpop.f32.mrf.mxu0
      %v2133 = vadd.f32 0.0, %v2132
      %v2134 = vpop.f32.mrf.mxu0
      %2135 = vmatprep.mubr.f32.mxu0 0.0
      %2136 = vmatmul.mubr.f32.gmra.mxu0 %v2046
      %v2137 = vpop.f32.mrf.mxu0
      %v2138 = vadd.f32 0.0, %v2137
      %v2139 = vpop.f32.mrf.mxu0
      %2140 = vmatprep.mubr.f32.mxu0 0.0
      %2141 = vmatmul.mubr.f32.gmra.mxu0 %v2049
      %v2142 = vpop.f32.mrf.mxu0
      %v2143 = vadd.f32 0.0, %v2142
      %v2144 = vpop.f32.mrf.mxu0
      %2145 = vmatprep.mubr.f32.mxu0 0.0
      %2146 = vmatmul.mubr.f32.gmra.mxu0 %v2052
      %v2147 = vpop.f32.mrf.mxu0
      %v2148 = vadd.f32 0.0, %v2147
      %v2149 = vpop.f32.mrf.mxu0
      %2150 = vmatprep.mubr.f32.mxu0 0.0
      %2151 = vmatmul.mubr.f32.gmra.mxu0 %v2055
      %v2152 = vpop.f32.mrf.mxu0
      %v2153 = vadd.f32 0.0, %v2152
      %v2154 = vpop.f32.mrf.mxu0
      %2155 = vmatprep.mubr.f32.mxu0 0.0
      %2156 = vmatmul.mubr.f32.gmra.mxu0 %v2058
      %v2157 = vpop.f32.mrf.mxu0
      %v2158 = vadd.f32 0.0, %v2157
      %v2159 = vpop.f32.mrf.mxu0
      %2160 = vmatprep.mubr.f32.mxu0 0.0
      %2161 = vmatmul.mubr.f32.gmra.mxu0 %v2061
      %v2162 = vpop.f32.mrf.mxu0
      %v2163 = vadd.f32 0.0, %v2162
      %v2164 = vpop.f32.mrf.mxu0
      %2165 = vmatprep.mubr.f32.mxu0 0.0
      %2166 = vmatmul.mubr.f32.gmra.mxu0 %v2064
      %v2167 = vpop.f32.mrf.mxu0
      %v2168 = vadd.f32 0.0, %v2167
      %v2169 = vpop.f32.mrf.mxu0
      %2170 = vdwg.mxu0
      %2171 = vst.msk [vmem:[#allocation3] sm:$0xff] %vm288, %v2133
      %2172 = vst.msk [vmem:[#allocation3 + $0x8] sm:$0xff] %vm288, %v2138
      %2173 = vst.msk [vmem:[#allocation3 + $0x10] sm:$0xff] %vm288, %v2143
      %2174 = vst.msk [vmem:[#allocation3 + $0x18] sm:$0xff] %vm288, %v2148
      %2175 = vst.msk [vmem:[#allocation3 + $0x20] sm:$0xff] %vm288, %v2153
      %2176 = vst.msk [vmem:[#allocation3 + $0x28] sm:$0xff] %vm288, %v2158
      %2177 = vst.msk [vmem:[#allocation3 + $0x30] sm:$0xff] %vm288, %v2163
      %2178 = vst.msk [vmem:[#allocation3 + $0x38] sm:$0xff] %vm288, %v2168
      %s2179 = scalar_lea.vmem [#allocation6], 192
      %v2180 = vld [vmem:[%s2179] sm:$0xff]
      %v2181 = vld [vmem:[%s2179 + $0x8] sm:$0xff]
      %v2182 = vld [vmem:[%s2179 + $0x10] sm:$0xff]
      %v2183 = vld [vmem:[%s2179 + $0x18] sm:$0xff]
      %v2184 = vld [vmem:[%s2179 + $0x20] sm:$0xff]
      %v2185 = vld [vmem:[%s2179 + $0x28] sm:$0xff]
      %v2186 = vld [vmem:[%s2179 + $0x30] sm:$0xff]
      %v2187 = vld [vmem:[%s2179 + $0x38] sm:$0xff]
      %v2188 = vand.u32 2147483647, %v2180
      %v2189 = vand.u32 2147483647, %v2181
      %v2190 = vand.u32 2147483647, %v2182
      %v2191 = vand.u32 2147483647, %v2183
      %v2192 = vand.u32 2147483647, %v2184
      %v2193 = vand.u32 2147483647, %v2185
      %v2194 = vand.u32 2147483647, %v2186
      %v2195 = vand.u32 2147483647, %v2187
      %v2196 = vld [vmem:[#allocation2] sm:$0xff]
      %v2197 = vld [vmem:[#allocation2 + $0x8] sm:$0xff]
      %v2198 = vld [vmem:[#allocation2 + $0x10] sm:$0xff]
      %v2199 = vld [vmem:[#allocation2 + $0x18] sm:$0xff]
      %v2200 = vld [vmem:[#allocation2 + $0x20] sm:$0xff]
      %v2201 = vld [vmem:[#allocation2 + $0x28] sm:$0xff]
      %v2202 = vld [vmem:[#allocation2 + $0x30] sm:$0xff]
      %v2203 = vld [vmem:[#allocation2 + $0x38] sm:$0xff]
      %v2204 = vmul.f32 %v2196, %v100
      %v2205 = vmul.f32 %v2197, %v101
      %v2206 = vmul.f32 %v2198, %v102
      %v2207 = vmul.f32 %v2199, %v103
      %v2208 = vmul.f32 %v2200, %v104
      %v2209 = vmul.f32 %v2201, %v105
      %v2210 = vmul.f32 %v2202, %v106
      %v2211 = vmul.f32 %v2203, %v107
      %v2212 = vsel %vm288, %v2204, 0.0
      %2213 = vadd.xlane.f32.xlu0 %v2212
      %v2214 = vpop.xlane.xlu0 %2213
      %v2215 = vsel %vm288, %v2205, 0.0
      %2216 = vadd.xlane.f32.xlu0 %v2215
      %v2217 = vpop.xlane.xlu0 %2216
      %v2218 = vsel %vm288, %v2206, 0.0
      %2219 = vadd.xlane.f32.xlu0 %v2218
      %v2220 = vpop.xlane.xlu0 %2219
      %v2221 = vsel %vm288, %v2207, 0.0
      %2222 = vadd.xlane.f32.xlu0 %v2221
      %v2223 = vpop.xlane.xlu0 %2222
      %v2224 = vsel %vm288, %v2208, 0.0
      %2225 = vadd.xlane.f32.xlu0 %v2224
      %v2226 = vpop.xlane.xlu0 %2225
      %v2227 = vsel %vm288, %v2209, 0.0
      %2228 = vadd.xlane.f32.xlu0 %v2227
      %v2229 = vpop.xlane.xlu0 %2228
      %v2230 = vsel %vm288, %v2210, 0.0
      %2231 = vadd.xlane.f32.xlu0 %v2230
      %v2232 = vpop.xlane.xlu0 %2231
      %v2233 = vsel %vm288, %v2211, 0.0
      %2234 = vadd.xlane.f32.xlu0 %v2233
      %v2235 = vpop.xlane.xlu0 %2234
      %v2236 = vadd.f32 %v2212, %v2215
      %v2237 = vadd.f32 %v2236, %v2218
      %v2238 = vadd.f32 %v2237, %v2221
      %v2239 = vadd.f32 %v2238, %v2224
      %v2240 = vadd.f32 %v2239, %v2227
      %v2241 = vadd.f32 %v2240, %v2230
      %v2242 = vadd.f32 %v2241, %v2233
      %v2243 = vrot.slane %v2242, 4
      %v2244 = vadd.f32 %v2242, %v2243
      %v2245 = vrot.slane %v2244, 2
      %v2246 = vadd.f32 %v2244, %v2245
      %v2247 = vrot.slane %v2246, 1
      %v2248 = vadd.f32 %v2246, %v2247
      %v2249 = vmul.f32 %v2196, %v2180
      %v2250 = vmul.f32 %v2197, %v2181
      %v2251 = vmul.f32 %v2198, %v2182
      %v2252 = vmul.f32 %v2199, %v2183
      %v2253 = vmul.f32 %v2200, %v2184
      %v2254 = vmul.f32 %v2201, %v2185
      %v2255 = vmul.f32 %v2202, %v2186
      %v2256 = vmul.f32 %v2203, %v2187
      %v2257 = vsel %vm288, %v2249, 0.0
      %v2258 = vsel %vm288, %v2250, 0.0
      %v2259 = vadd.f32 %v2257, %v2258
      %v2260 = vsel %vm288, %v2251, 0.0
      %v2261 = vadd.f32 %v2259, %v2260
      %v2262 = vsel %vm288, %v2252, 0.0
      %v2263 = vadd.f32 %v2261, %v2262
      %v2264 = vsel %vm288, %v2253, 0.0
      %v2265 = vadd.f32 %v2263, %v2264
      %v2266 = vsel %vm288, %v2254, 0.0
      %v2267 = vadd.f32 %v2265, %v2266
      %v2268 = vsel %vm288, %v2255, 0.0
      %v2269 = vadd.f32 %v2267, %v2268
      %v2270 = vsel %vm288, %v2256, 0.0
      %v2271 = vadd.f32 %v2269, %v2270
      %v2272 = vrot.slane %v2271, 4
      %v2273 = vadd.f32 %v2271, %v2272
      %v2274 = vrot.slane %v2273, 2
      %v2275 = vadd.f32 %v2273, %v2274
      %v2276 = vrot.slane %v2275, 1
      %v2277 = vadd.f32 %v2275, %v2276
      %v2278 = vmul.f32 %v2188, %v2214
      %v2279 = vmul.f32 %v2189, %v2217
      %v2280 = vmul.f32 %v2190, %v2220
      %v2281 = vmul.f32 %v2191, %v2223
      %v2282 = vmul.f32 %v2192, %v2226
      %v2283 = vmul.f32 %v2193, %v2229
      %v2284 = vmul.f32 %v2194, %v2232
      %v2285 = vmul.f32 %v2195, %v2235
      %v2286 = vsel %vm288, %v2278, 0.0
      %v2287 = vsel %vm288, %v2279, 0.0
      %v2288 = vadd.f32 %v2286, %v2287
      %v2289 = vsel %vm288, %v2280, 0.0
      %v2290 = vadd.f32 %v2288, %v2289
      %v2291 = vsel %vm288, %v2281, 0.0
      %v2292 = vadd.f32 %v2290, %v2291
      %v2293 = vsel %vm288, %v2282, 0.0
      %v2294 = vadd.f32 %v2292, %v2293
      %v2295 = vsel %vm288, %v2283, 0.0
      %v2296 = vadd.f32 %v2294, %v2295
      %v2297 = vsel %vm288, %v2284, 0.0
      %v2298 = vadd.f32 %v2296, %v2297
      %v2299 = vsel %vm288, %v2285, 0.0
      %v2300 = vadd.f32 %v2298, %v2299
      %v2301 = vrot.slane %v2300, 4
      %v2302 = vadd.f32 %v2300, %v2301
      %v2303 = vrot.slane %v2302, 2
      %v2304 = vadd.f32 %v2302, %v2303
      %v2305 = vrot.slane %v2304, 1
      %v2306 = vadd.f32 %v2304, %v2305
      %v2307 = vand.u32 2147483647, %v2277
      %vm2308 = vcmp.gt.f32.partialorder %v2307, 1e-12
      %v2309 = vsel %vm2308, %v2277, 1.0
      %v2310 = vsub.f32 %v2248, %v2306
      %v2311 = vmul.f32 %v2309, 2.0
      %v2312 = vrcp.pop %v2311
      %v2313 = vmul.f32 %v2310, %v2312
      %vm2314 = vcmp.ge.f32.partialorder %v2313, 0.0
      %v2315 = vsel %vm2314, 1.0, -1.0
      %v2316 = vand.u32 2147483647, %v2313
      %v2317 = vmul.f32 %v2313, %v2313
      %v2318 = vadd.f32 %v2317, 1.0
      %v2319 = vrsqrt.pop %v2318
      %v2320 = vmul.f32 %v2318, %v2319
      %vm2321 = vcmp.eq.f32.partialorder %v2318, inf
      %v2322 = vsel %vm2321, %v2318, %v2320
      %vm2323 = vcmp.eq.f32.partialorder %v2318, 0.0
      %v2324 = vand.u32 %v2318, 2147483648
      %v2325 = vsel %vm2323, %v2324, %v2322
      %v2326 = vadd.f32 %v2316, %v2325
      %v2327 = vrcp.pop %v2326
      %v2328 = vmul.f32 %v2315, %v2327
      %v2329 = vmul.f32 %v2328, %v2328
      %v2330 = vadd.f32 %v2329, 1.0
      %v2331 = vrsqrt.pop %v2330
      %v2332 = vmul.f32 %v2328, %v2331
      %v2333 = vsel %vm2308, %v2331, 1.0
      %v2334 = vsel %vm2308, %v2332, 0.0
      %v2335 = vmul.f32 %v100, %v2333
      %v2336 = vmul.f32 %v101, %v2333
      %v2337 = vmul.f32 %v102, %v2333
      %v2338 = vmul.f32 %v103, %v2333
      %v2339 = vmul.f32 %v104, %v2333
      %v2340 = vmul.f32 %v105, %v2333
      %v2341 = vmul.f32 %v106, %v2333
      %v2342 = vmul.f32 %v107, %v2333
      %v2343 = vmul.f32 %v2180, %v2334
      %v2344 = vmul.f32 %v2181, %v2334
      %v2345 = vmul.f32 %v2182, %v2334
      %v2346 = vmul.f32 %v2183, %v2334
      %v2347 = vmul.f32 %v2184, %v2334
      %v2348 = vmul.f32 %v2185, %v2334
      %v2349 = vmul.f32 %v2186, %v2334
      %v2350 = vmul.f32 %v2187, %v2334
      %v2351 = vadd.f32 %v2335, %v2343
      %v2352 = vadd.f32 %v2336, %v2344
      %v2353 = vadd.f32 %v2337, %v2345
      %v2354 = vadd.f32 %v2338, %v2346
      %v2355 = vadd.f32 %v2339, %v2347
      %v2356 = vadd.f32 %v2340, %v2348
      %v2357 = vadd.f32 %v2341, %v2349
      %v2358 = vadd.f32 %v2342, %v2350
      %v2360 = vsel %vm288, %v2196, 0
      %v2363 = vsel %vm288, %v2197, 0
      %v2366 = vsel %vm288, %v2198, 0
      %v2369 = vsel %vm288, %v2199, 0
      %v2372 = vsel %vm288, %v2200, 0
      %v2375 = vsel %vm288, %v2201, 0
      %v2378 = vsel %vm288, %v2202, 0
      %v2381 = vsel %vm288, %v2203, 0
      %2383 = vmatprep.subr.mxu0 0.0
      %2384 = vmatpush1.msra.mxu0 0.0
      %2385 = vmatprep.subr.mxu0 0.0
      %2386 = vmatpush1.msra.mxu0 0.0
      %2387 = vmatprep.subr.mxu0 0.0
      %2388 = vmatpush1.msra.mxu0 0.0
      %2389 = vmatprep.subr.mxu0 0.0
      %2390 = vmatpush1.msra.mxu0 0.0
      %2391 = vmatprep.subr.mxu0 0.0
      %2392 = vmatpush1.msra.mxu0 0.0
      %2393 = vmatprep.subr.mxu0 0.0
      %2394 = vmatpush1.msra.mxu0 0.0
      %2395 = vmatprep.subr.mxu0 0.0
      %2396 = vmatpush1.msra.mxu0 0.0
      %2397 = vmatprep.subr.mxu0 0.0
      %2398 = vmatpush1.msra.mxu0 0.0
      %2399 = vmatprep.subr.mxu0 0.0
      %2400 = vmatpush1.msra.mxu0 %v2358
      %2401 = vmatprep.subr.mxu0 0.0
      %2402 = vmatpush1.msra.mxu0 %v2357
      %2403 = vmatprep.subr.mxu0 0.0
      %2404 = vmatpush1.msra.mxu0 %v2356
      %2405 = vmatprep.subr.mxu0 0.0
      %2406 = vmatpush1.msra.mxu0 %v2355
      %2407 = vmatprep.subr.mxu0 0.0
      %2408 = vmatpush1.msra.mxu0 %v2354
      %2409 = vmatprep.subr.mxu0 0.0
      %2410 = vmatpush1.msra.mxu0 %v2353
      %2411 = vmatprep.subr.mxu0 0.0
      %2412 = vmatpush1.msra.mxu0 %v2352
      %2413 = vmatprep.subr.mxu0 0.0
      %2414 = vmatpush1.msra.mxu0 %v2351
      %2415 = vmatprep.subr.mxu0 0.0
      %2416 = vmatpush2.msra.mxu0 0.0
      %2417 = vmatprep.subr.mxu0 0.0
      %2418 = vmatpush2.msra.mxu0 0.0
      %2419 = vmatprep.subr.mxu0 0.0
      %2420 = vmatpush2.msra.mxu0 0.0
      %2421 = vmatprep.subr.mxu0 0.0
      %2422 = vmatpush2.msra.mxu0 0.0
      %2423 = vmatprep.subr.mxu0 0.0
      %2424 = vmatpush2.msra.mxu0 0.0
      %2425 = vmatprep.subr.mxu0 0.0
      %2426 = vmatpush2.msra.mxu0 0.0
      %2427 = vmatprep.subr.mxu0 0.0
      %2428 = vmatpush2.msra.mxu0 0.0
      %2429 = vmatprep.subr.mxu0 0.0
      %2430 = vmatpush2.msra.mxu0 0.0
      %2431 = vmatprep.subr.mxu0 0.0
      %2432 = vmatpush2.msra.mxu0 0.0
      %2433 = vmatprep.subr.mxu0 0.0
      %2434 = vmatpush2.msra.mxu0 0.0
      %2435 = vmatprep.subr.mxu0 0.0
      %2436 = vmatpush2.msra.mxu0 0.0
      %2437 = vmatprep.subr.mxu0 0.0
      %2438 = vmatpush2.msra.mxu0 0.0
      %2439 = vmatprep.subr.mxu0 0.0
      %2440 = vmatpush2.msra.mxu0 0.0
      %2441 = vmatprep.subr.mxu0 0.0
      %2442 = vmatpush2.msra.mxu0 0.0
      %2443 = vmatprep.subr.mxu0 0.0
      %2444 = vmatpush2.msra.mxu0 0.0
      %2445 = vmatprep.subr.mxu0 0.0
      %2446 = vmatpush2.msra.mxu0 0.0
      %2447 = vmatprep.mubr.f32.mxu0 0.0
      %2448 = vmatmul.mubr.f32.gmra.mxu0 %v2360
      %v2449 = vpop.f32.mrf.mxu0
      %v2450 = vadd.f32 0.0, %v2449
      %v2451 = vpop.f32.mrf.mxu0
      %2452 = vmatprep.mubr.f32.mxu0 0.0
      %2453 = vmatmul.mubr.f32.gmra.mxu0 %v2363
      %v2454 = vpop.f32.mrf.mxu0
      %v2455 = vadd.f32 0.0, %v2454
      %v2456 = vpop.f32.mrf.mxu0
      %2457 = vmatprep.mubr.f32.mxu0 0.0
      %2458 = vmatmul.mubr.f32.gmra.mxu0 %v2366
      %v2459 = vpop.f32.mrf.mxu0
      %v2460 = vadd.f32 0.0, %v2459
      %v2461 = vpop.f32.mrf.mxu0
      %2462 = vmatprep.mubr.f32.mxu0 0.0
      %2463 = vmatmul.mubr.f32.gmra.mxu0 %v2369
      %v2464 = vpop.f32.mrf.mxu0
      %v2465 = vadd.f32 0.0, %v2464
      %v2466 = vpop.f32.mrf.mxu0
      %2467 = vmatprep.mubr.f32.mxu0 0.0
      %2468 = vmatmul.mubr.f32.gmra.mxu0 %v2372
      %v2469 = vpop.f32.mrf.mxu0
      %v2470 = vadd.f32 0.0, %v2469
      %v2471 = vpop.f32.mrf.mxu0
      %2472 = vmatprep.mubr.f32.mxu0 0.0
      %2473 = vmatmul.mubr.f32.gmra.mxu0 %v2375
      %v2474 = vpop.f32.mrf.mxu0
      %v2475 = vadd.f32 0.0, %v2474
      %v2476 = vpop.f32.mrf.mxu0
      %2477 = vmatprep.mubr.f32.mxu0 0.0
      %2478 = vmatmul.mubr.f32.gmra.mxu0 %v2378
      %v2479 = vpop.f32.mrf.mxu0
      %v2480 = vadd.f32 0.0, %v2479
      %v2481 = vpop.f32.mrf.mxu0
      %2482 = vmatprep.mubr.f32.mxu0 0.0
      %2483 = vmatmul.mubr.f32.gmra.mxu0 %v2381
      %v2484 = vpop.f32.mrf.mxu0
      %v2485 = vadd.f32 0.0, %v2484
      %v2486 = vpop.f32.mrf.mxu0
      %2487 = vdwg.mxu0
      %2488 = vxpose.xlu0.b32.start [1/16] %v2351, 128
      %2489 = vxpose.xlu0.b32.cont [2/16] %v2352, 128
      %2490 = vxpose.xlu0.b32.cont [3/16] %v2353, 128
      %2491 = vxpose.xlu0.b32.cont [4/16] %v2354, 128
      %2492 = vxpose.xlu0.b32.cont [5/16] %v2355, 128
      %2493 = vxpose.xlu0.b32.cont [6/16] %v2356, 128
      %2494 = vxpose.xlu0.b32.cont [7/16] %v2357, 128
      %2495 = vxpose.xlu0.b32.cont [8/16] %v2358, 128
      %2496 = vxpose.xlu0.b32.cont [9/16] 0.0, 128
      %2497 = vxpose.xlu0.b32.cont [10/16] 0.0, 128
      %2498 = vxpose.xlu0.b32.cont [11/16] 0.0, 128
      %2499 = vxpose.xlu0.b32.cont [12/16] 0.0, 128
      %2500 = vxpose.xlu0.b32.cont [13/16] 0.0, 128
      %2501 = vxpose.xlu0.b32.cont [14/16] 0.0, 128
      %2502 = vxpose.xlu0.b32.cont [15/16] 0.0, 128
      %2503 = vxpose.xlu0.b32.end [16/16] 0.0, 128
      %v2504 = vpop.trf.xlu0
      %v2505 = vpop.trf.xlu0
      %v2506 = vpop.trf.xlu0
      %v2507 = vpop.trf.xlu0
      %v2508 = vpop.trf.xlu0
      %v2509 = vpop.trf.xlu0
      %v2510 = vpop.trf.xlu0
      %v2511 = vpop.trf.xlu0
      %v2512 = vpop.trf.xlu0
      %v2513 = vpop.trf.xlu0
      %v2514 = vpop.trf.xlu0
      %v2515 = vpop.trf.xlu0
      %v2516 = vpop.trf.xlu0
      %v2517 = vpop.trf.xlu0
      %v2518 = vpop.trf.xlu0
      %v2519 = vpop.trf.xlu0
      %v2521 = vsel %vm288, %v2504, 0
      %v2524 = vsel %vm288, %v2505, 0
      %v2527 = vsel %vm288, %v2506, 0
      %v2530 = vsel %vm288, %v2507, 0
      %v2533 = vsel %vm288, %v2508, 0
      %v2536 = vsel %vm288, %v2509, 0
      %v2539 = vsel %vm288, %v2510, 0
      %v2542 = vsel %vm288, %v2511, 0
      %2544 = vmatprep.subr.mxu0 0.0
      %2545 = vmatpush1.msra.mxu0 0.0
      %2546 = vmatprep.subr.mxu0 0.0
      %2547 = vmatpush1.msra.mxu0 0.0
      %2548 = vmatprep.subr.mxu0 0.0
      %2549 = vmatpush1.msra.mxu0 0.0
      %2550 = vmatprep.subr.mxu0 0.0
      %2551 = vmatpush1.msra.mxu0 0.0
      %2552 = vmatprep.subr.mxu0 0.0
      %2553 = vmatpush1.msra.mxu0 0.0
      %2554 = vmatprep.subr.mxu0 0.0
      %2555 = vmatpush1.msra.mxu0 0.0
      %2556 = vmatprep.subr.mxu0 0.0
      %2557 = vmatpush1.msra.mxu0 0.0
      %2558 = vmatprep.subr.mxu0 0.0
      %2559 = vmatpush1.msra.mxu0 0.0
      %2560 = vmatprep.subr.mxu0 0.0
      %2561 = vmatpush1.msra.mxu0 %v2485
      %2562 = vmatprep.subr.mxu0 0.0
      %2563 = vmatpush1.msra.mxu0 %v2480
      %2564 = vmatprep.subr.mxu0 0.0
      %2565 = vmatpush1.msra.mxu0 %v2475
      %2566 = vmatprep.subr.mxu0 0.0
      %2567 = vmatpush1.msra.mxu0 %v2470
      %2568 = vmatprep.subr.mxu0 0.0
      %2569 = vmatpush1.msra.mxu0 %v2465
      %2570 = vmatprep.subr.mxu0 0.0
      %2571 = vmatpush1.msra.mxu0 %v2460
      %2572 = vmatprep.subr.mxu0 0.0
      %2573 = vmatpush1.msra.mxu0 %v2455
      %2574 = vmatprep.subr.mxu0 0.0
      %2575 = vmatpush1.msra.mxu0 %v2450
      %2576 = vmatprep.subr.mxu0 0.0
      %2577 = vmatpush2.msra.mxu0 0.0
      %2578 = vmatprep.subr.mxu0 0.0
      %2579 = vmatpush2.msra.mxu0 0.0
      %2580 = vmatprep.subr.mxu0 0.0
      %2581 = vmatpush2.msra.mxu0 0.0
      %2582 = vmatprep.subr.mxu0 0.0
      %2583 = vmatpush2.msra.mxu0 0.0
      %2584 = vmatprep.subr.mxu0 0.0
      %2585 = vmatpush2.msra.mxu0 0.0
      %2586 = vmatprep.subr.mxu0 0.0
      %2587 = vmatpush2.msra.mxu0 0.0
      %2588 = vmatprep.subr.mxu0 0.0
      %2589 = vmatpush2.msra.mxu0 0.0
      %2590 = vmatprep.subr.mxu0 0.0
      %2591 = vmatpush2.msra.mxu0 0.0
      %2592 = vmatprep.subr.mxu0 0.0
      %2593 = vmatpush2.msra.mxu0 0.0
      %2594 = vmatprep.subr.mxu0 0.0
      %2595 = vmatpush2.msra.mxu0 0.0
      %2596 = vmatprep.subr.mxu0 0.0
      %2597 = vmatpush2.msra.mxu0 0.0
      %2598 = vmatprep.subr.mxu0 0.0
      %2599 = vmatpush2.msra.mxu0 0.0
      %2600 = vmatprep.subr.mxu0 0.0
      %2601 = vmatpush2.msra.mxu0 0.0
      %2602 = vmatprep.subr.mxu0 0.0
      %2603 = vmatpush2.msra.mxu0 0.0
      %2604 = vmatprep.subr.mxu0 0.0
      %2605 = vmatpush2.msra.mxu0 0.0
      %2606 = vmatprep.subr.mxu0 0.0
      %2607 = vmatpush2.msra.mxu0 0.0
      %2608 = vmatprep.mubr.f32.mxu0 0.0
      %2609 = vmatmul.mubr.f32.gmra.mxu0 %v2521
      %v2610 = vpop.f32.mrf.mxu0
      %v2611 = vadd.f32 0.0, %v2610
      %v2612 = vpop.f32.mrf.mxu0
      %2613 = vmatprep.mubr.f32.mxu0 0.0
      %2614 = vmatmul.mubr.f32.gmra.mxu0 %v2524
      %v2615 = vpop.f32.mrf.mxu0
      %v2616 = vadd.f32 0.0, %v2615
      %v2617 = vpop.f32.mrf.mxu0
      %2618 = vmatprep.mubr.f32.mxu0 0.0
      %2619 = vmatmul.mubr.f32.gmra.mxu0 %v2527
      %v2620 = vpop.f32.mrf.mxu0
      %v2621 = vadd.f32 0.0, %v2620
      %v2622 = vpop.f32.mrf.mxu0
      %2623 = vmatprep.mubr.f32.mxu0 0.0
      %2624 = vmatmul.mubr.f32.gmra.mxu0 %v2530
      %v2625 = vpop.f32.mrf.mxu0
      %v2626 = vadd.f32 0.0, %v2625
      %v2627 = vpop.f32.mrf.mxu0
      %2628 = vmatprep.mubr.f32.mxu0 0.0
      %2629 = vmatmul.mubr.f32.gmra.mxu0 %v2533
      %v2630 = vpop.f32.mrf.mxu0
      %v2631 = vadd.f32 0.0, %v2630
      %v2632 = vpop.f32.mrf.mxu0
      %2633 = vmatprep.mubr.f32.mxu0 0.0
      %2634 = vmatmul.mubr.f32.gmra.mxu0 %v2536
      %v2635 = vpop.f32.mrf.mxu0
      %v2636 = vadd.f32 0.0, %v2635
      %v2637 = vpop.f32.mrf.mxu0
      %2638 = vmatprep.mubr.f32.mxu0 0.0
      %2639 = vmatmul.mubr.f32.gmra.mxu0 %v2539
      %v2640 = vpop.f32.mrf.mxu0
      %v2641 = vadd.f32 0.0, %v2640
      %v2642 = vpop.f32.mrf.mxu0
      %2643 = vmatprep.mubr.f32.mxu0 0.0
      %2644 = vmatmul.mubr.f32.gmra.mxu0 %v2542
      %v2645 = vpop.f32.mrf.mxu0
      %v2646 = vadd.f32 0.0, %v2645
      %v2647 = vpop.f32.mrf.mxu0
      %2648 = vdwg.mxu0
      %2649 = vst.msk [vmem:[#allocation2] sm:$0xff] %vm288, %v2611
      %2650 = vst.msk [vmem:[#allocation2 + $0x8] sm:$0xff] %vm288, %v2616
      %2651 = vst.msk [vmem:[#allocation2 + $0x10] sm:$0xff] %vm288, %v2621
      %2652 = vst.msk [vmem:[#allocation2 + $0x18] sm:$0xff] %vm288, %v2626
      %2653 = vst.msk [vmem:[#allocation2 + $0x20] sm:$0xff] %vm288, %v2631
      %2654 = vst.msk [vmem:[#allocation2 + $0x28] sm:$0xff] %vm288, %v2636
      %2655 = vst.msk [vmem:[#allocation2 + $0x30] sm:$0xff] %vm288, %v2641
      %2656 = vst.msk [vmem:[#allocation2 + $0x38] sm:$0xff] %vm288, %v2646
      %v2657 = vld [vmem:[#allocation3] sm:$0xff]
      %v2658 = vld [vmem:[#allocation3 + $0x8] sm:$0xff]
      %v2659 = vld [vmem:[#allocation3 + $0x10] sm:$0xff]
      %v2660 = vld [vmem:[#allocation3 + $0x18] sm:$0xff]
      %v2661 = vld [vmem:[#allocation3 + $0x20] sm:$0xff]
      %v2662 = vld [vmem:[#allocation3 + $0x28] sm:$0xff]
      %v2663 = vld [vmem:[#allocation3 + $0x30] sm:$0xff]
      %v2664 = vld [vmem:[#allocation3 + $0x38] sm:$0xff]
      %v2666 = vsel %vm288, %v2657, 0
      %v2669 = vsel %vm288, %v2658, 0
      %v2672 = vsel %vm288, %v2659, 0
      %v2675 = vsel %vm288, %v2660, 0
      %v2678 = vsel %vm288, %v2661, 0
      %v2681 = vsel %vm288, %v2662, 0
      %v2684 = vsel %vm288, %v2663, 0
      %v2687 = vsel %vm288, %v2664, 0
      %2689 = vmatprep.subr.mxu0 0.0
      %2690 = vmatpush1.msra.mxu0 0.0
      %2691 = vmatprep.subr.mxu0 0.0
      %2692 = vmatpush1.msra.mxu0 0.0
      %2693 = vmatprep.subr.mxu0 0.0
      %2694 = vmatpush1.msra.mxu0 0.0
      %2695 = vmatprep.subr.mxu0 0.0
      %2696 = vmatpush1.msra.mxu0 0.0
      %2697 = vmatprep.subr.mxu0 0.0
      %2698 = vmatpush1.msra.mxu0 0.0
      %2699 = vmatprep.subr.mxu0 0.0
      %2700 = vmatpush1.msra.mxu0 0.0
      %2701 = vmatprep.subr.mxu0 0.0
      %2702 = vmatpush1.msra.mxu0 0.0
      %2703 = vmatprep.subr.mxu0 0.0
      %2704 = vmatpush1.msra.mxu0 0.0
      %2705 = vmatprep.subr.mxu0 0.0
      %2706 = vmatpush1.msra.mxu0 %v2358
      %2707 = vmatprep.subr.mxu0 0.0
      %2708 = vmatpush1.msra.mxu0 %v2357
      %2709 = vmatprep.subr.mxu0 0.0
      %2710 = vmatpush1.msra.mxu0 %v2356
      %2711 = vmatprep.subr.mxu0 0.0
      %2712 = vmatpush1.msra.mxu0 %v2355
      %2713 = vmatprep.subr.mxu0 0.0
      %2714 = vmatpush1.msra.mxu0 %v2354
      %2715 = vmatprep.subr.mxu0 0.0
      %2716 = vmatpush1.msra.mxu0 %v2353
      %2717 = vmatprep.subr.mxu0 0.0
      %2718 = vmatpush1.msra.mxu0 %v2352
      %2719 = vmatprep.subr.mxu0 0.0
      %2720 = vmatpush1.msra.mxu0 %v2351
      %2721 = vmatprep.subr.mxu0 0.0
      %2722 = vmatpush2.msra.mxu0 0.0
      %2723 = vmatprep.subr.mxu0 0.0
      %2724 = vmatpush2.msra.mxu0 0.0
      %2725 = vmatprep.subr.mxu0 0.0
      %2726 = vmatpush2.msra.mxu0 0.0
      %2727 = vmatprep.subr.mxu0 0.0
      %2728 = vmatpush2.msra.mxu0 0.0
      %2729 = vmatprep.subr.mxu0 0.0
      %2730 = vmatpush2.msra.mxu0 0.0
      %2731 = vmatprep.subr.mxu0 0.0
      %2732 = vmatpush2.msra.mxu0 0.0
      %2733 = vmatprep.subr.mxu0 0.0
      %2734 = vmatpush2.msra.mxu0 0.0
      %2735 = vmatprep.subr.mxu0 0.0
      %2736 = vmatpush2.msra.mxu0 0.0
      %2737 = vmatprep.subr.mxu0 0.0
      %2738 = vmatpush2.msra.mxu0 0.0
      %2739 = vmatprep.subr.mxu0 0.0
      %2740 = vmatpush2.msra.mxu0 0.0
      %2741 = vmatprep.subr.mxu0 0.0
      %2742 = vmatpush2.msra.mxu0 0.0
      %2743 = vmatprep.subr.mxu0 0.0
      %2744 = vmatpush2.msra.mxu0 0.0
      %2745 = vmatprep.subr.mxu0 0.0
      %2746 = vmatpush2.msra.mxu0 0.0
      %2747 = vmatprep.subr.mxu0 0.0
      %2748 = vmatpush2.msra.mxu0 0.0
      %2749 = vmatprep.subr.mxu0 0.0
      %2750 = vmatpush2.msra.mxu0 0.0
      %2751 = vmatprep.subr.mxu0 0.0
      %2752 = vmatpush2.msra.mxu0 0.0
      %2753 = vmatprep.mubr.f32.mxu0 0.0
      %2754 = vmatmul.mubr.f32.gmra.mxu0 %v2666
      %v2755 = vpop.f32.mrf.mxu0
      %v2756 = vadd.f32 0.0, %v2755
      %v2757 = vpop.f32.mrf.mxu0
      %2758 = vmatprep.mubr.f32.mxu0 0.0
      %2759 = vmatmul.mubr.f32.gmra.mxu0 %v2669
      %v2760 = vpop.f32.mrf.mxu0
      %v2761 = vadd.f32 0.0, %v2760
      %v2762 = vpop.f32.mrf.mxu0
      %2763 = vmatprep.mubr.f32.mxu0 0.0
      %2764 = vmatmul.mubr.f32.gmra.mxu0 %v2672
      %v2765 = vpop.f32.mrf.mxu0
      %v2766 = vadd.f32 0.0, %v2765
      %v2767 = vpop.f32.mrf.mxu0
      %2768 = vmatprep.mubr.f32.mxu0 0.0
      %2769 = vmatmul.mubr.f32.gmra.mxu0 %v2675
      %v2770 = vpop.f32.mrf.mxu0
      %v2771 = vadd.f32 0.0, %v2770
      %v2772 = vpop.f32.mrf.mxu0
      %2773 = vmatprep.mubr.f32.mxu0 0.0
      %2774 = vmatmul.mubr.f32.gmra.mxu0 %v2678
      %v2775 = vpop.f32.mrf.mxu0
      %v2776 = vadd.f32 0.0, %v2775
      %v2777 = vpop.f32.mrf.mxu0
      %2778 = vmatprep.mubr.f32.mxu0 0.0
      %2779 = vmatmul.mubr.f32.gmra.mxu0 %v2681
      %v2780 = vpop.f32.mrf.mxu0
      %v2781 = vadd.f32 0.0, %v2780
      %v2782 = vpop.f32.mrf.mxu0
      %2783 = vmatprep.mubr.f32.mxu0 0.0
      %2784 = vmatmul.mubr.f32.gmra.mxu0 %v2684
      %v2785 = vpop.f32.mrf.mxu0
      %v2786 = vadd.f32 0.0, %v2785
      %v2787 = vpop.f32.mrf.mxu0
      %2788 = vmatprep.mubr.f32.mxu0 0.0
      %2789 = vmatmul.mubr.f32.gmra.mxu0 %v2687
      %v2790 = vpop.f32.mrf.mxu0
      %v2791 = vadd.f32 0.0, %v2790
      %v2792 = vpop.f32.mrf.mxu0
      %2793 = vdwg.mxu0
      %2794 = vst.msk [vmem:[#allocation3] sm:$0xff] %vm288, %v2756
      %2795 = vst.msk [vmem:[#allocation3 + $0x8] sm:$0xff] %vm288, %v2761
      %2796 = vst.msk [vmem:[#allocation3 + $0x10] sm:$0xff] %vm288, %v2766
      %2797 = vst.msk [vmem:[#allocation3 + $0x18] sm:$0xff] %vm288, %v2771
      %2798 = vst.msk [vmem:[#allocation3 + $0x20] sm:$0xff] %vm288, %v2776
      %2799 = vst.msk [vmem:[#allocation3 + $0x28] sm:$0xff] %vm288, %v2781
      %2800 = vst.msk [vmem:[#allocation3 + $0x30] sm:$0xff] %vm288, %v2786
      %2801 = vst.msk [vmem:[#allocation3 + $0x38] sm:$0xff] %vm288, %v2791
      %s2802 = scalar_lea.vmem [#allocation6], 256
      %v2803 = vld [vmem:[%s2802] sm:$0xff]
      %v2804 = vld [vmem:[%s2802 + $0x8] sm:$0xff]
      %v2805 = vld [vmem:[%s2802 + $0x10] sm:$0xff]
      %v2806 = vld [vmem:[%s2802 + $0x18] sm:$0xff]
      %v2807 = vld [vmem:[%s2802 + $0x20] sm:$0xff]
      %v2808 = vld [vmem:[%s2802 + $0x28] sm:$0xff]
      %v2809 = vld [vmem:[%s2802 + $0x30] sm:$0xff]
      %v2810 = vld [vmem:[%s2802 + $0x38] sm:$0xff]
      %v2811 = vand.u32 2147483647, %v2803
      %v2812 = vand.u32 2147483647, %v2804
      %v2813 = vand.u32 2147483647, %v2805
      %v2814 = vand.u32 2147483647, %v2806
      %v2815 = vand.u32 2147483647, %v2807
      %v2816 = vand.u32 2147483647, %v2808
      %v2817 = vand.u32 2147483647, %v2809
      %v2818 = vand.u32 2147483647, %v2810
      %v2819 = vld [vmem:[#allocation2] sm:$0xff]
      %v2820 = vld [vmem:[#allocation2 + $0x8] sm:$0xff]
      %v2821 = vld [vmem:[#allocation2 + $0x10] sm:$0xff]
      %v2822 = vld [vmem:[#allocation2 + $0x18] sm:$0xff]
      %v2823 = vld [vmem:[#allocation2 + $0x20] sm:$0xff]
      %v2824 = vld [vmem:[#allocation2 + $0x28] sm:$0xff]
      %v2825 = vld [vmem:[#allocation2 + $0x30] sm:$0xff]
      %v2826 = vld [vmem:[#allocation2 + $0x38] sm:$0xff]
      %v2827 = vmul.f32 %v2819, %v100
      %v2828 = vmul.f32 %v2820, %v101
      %v2829 = vmul.f32 %v2821, %v102
      %v2830 = vmul.f32 %v2822, %v103
      %v2831 = vmul.f32 %v2823, %v104
      %v2832 = vmul.f32 %v2824, %v105
      %v2833 = vmul.f32 %v2825, %v106
      %v2834 = vmul.f32 %v2826, %v107
      %v2835 = vsel %vm288, %v2827, 0.0
      %2836 = vadd.xlane.f32.xlu0 %v2835
      %v2837 = vpop.xlane.xlu0 %2836
      %v2838 = vsel %vm288, %v2828, 0.0
      %2839 = vadd.xlane.f32.xlu0 %v2838
      %v2840 = vpop.xlane.xlu0 %2839
      %v2841 = vsel %vm288, %v2829, 0.0
      %2842 = vadd.xlane.f32.xlu0 %v2841
      %v2843 = vpop.xlane.xlu0 %2842
      %v2844 = vsel %vm288, %v2830, 0.0
      %2845 = vadd.xlane.f32.xlu0 %v2844
      %v2846 = vpop.xlane.xlu0 %2845
      %v2847 = vsel %vm288, %v2831, 0.0
      %2848 = vadd.xlane.f32.xlu0 %v2847
      %v2849 = vpop.xlane.xlu0 %2848
      %v2850 = vsel %vm288, %v2832, 0.0
      %2851 = vadd.xlane.f32.xlu0 %v2850
      %v2852 = vpop.xlane.xlu0 %2851
      %v2853 = vsel %vm288, %v2833, 0.0
      %2854 = vadd.xlane.f32.xlu0 %v2853
      %v2855 = vpop.xlane.xlu0 %2854
      %v2856 = vsel %vm288, %v2834, 0.0
      %2857 = vadd.xlane.f32.xlu0 %v2856
      %v2858 = vpop.xlane.xlu0 %2857
      %v2859 = vadd.f32 %v2835, %v2838
      %v2860 = vadd.f32 %v2859, %v2841
      %v2861 = vadd.f32 %v2860, %v2844
      %v2862 = vadd.f32 %v2861, %v2847
      %v2863 = vadd.f32 %v2862, %v2850
      %v2864 = vadd.f32 %v2863, %v2853
      %v2865 = vadd.f32 %v2864, %v2856
      %v2866 = vrot.slane %v2865, 4
      %v2867 = vadd.f32 %v2865, %v2866
      %v2868 = vrot.slane %v2867, 2
      %v2869 = vadd.f32 %v2867, %v2868
      %v2870 = vrot.slane %v2869, 1
      %v2871 = vadd.f32 %v2869, %v2870
      %v2872 = vmul.f32 %v2819, %v2803
      %v2873 = vmul.f32 %v2820, %v2804
      %v2874 = vmul.f32 %v2821, %v2805
      %v2875 = vmul.f32 %v2822, %v2806
      %v2876 = vmul.f32 %v2823, %v2807
      %v2877 = vmul.f32 %v2824, %v2808
      %v2878 = vmul.f32 %v2825, %v2809
      %v2879 = vmul.f32 %v2826, %v2810
      %v2880 = vsel %vm288, %v2872, 0.0
      %v2881 = vsel %vm288, %v2873, 0.0
      %v2882 = vadd.f32 %v2880, %v2881
      %v2883 = vsel %vm288, %v2874, 0.0
      %v2884 = vadd.f32 %v2882, %v2883
      %v2885 = vsel %vm288, %v2875, 0.0
      %v2886 = vadd.f32 %v2884, %v2885
      %v2887 = vsel %vm288, %v2876, 0.0
      %v2888 = vadd.f32 %v2886, %v2887
      %v2889 = vsel %vm288, %v2877, 0.0
      %v2890 = vadd.f32 %v2888, %v2889
      %v2891 = vsel %vm288, %v2878, 0.0
      %v2892 = vadd.f32 %v2890, %v2891
      %v2893 = vsel %vm288, %v2879, 0.0
      %v2894 = vadd.f32 %v2892, %v2893
      %v2895 = vrot.slane %v2894, 4
      %v2896 = vadd.f32 %v2894, %v2895
      %v2897 = vrot.slane %v2896, 2
      %v2898 = vadd.f32 %v2896, %v2897
      %v2899 = vrot.slane %v2898, 1
      %v2900 = vadd.f32 %v2898, %v2899
      %v2901 = vmul.f32 %v2811, %v2837
      %v2902 = vmul.f32 %v2812, %v2840
      %v2903 = vmul.f32 %v2813, %v2843
      %v2904 = vmul.f32 %v2814, %v2846
      %v2905 = vmul.f32 %v2815, %v2849
      %v2906 = vmul.f32 %v2816, %v2852
      %v2907 = vmul.f32 %v2817, %v2855
      %v2908 = vmul.f32 %v2818, %v2858
      %v2909 = vsel %vm288, %v2901, 0.0
      %v2910 = vsel %vm288, %v2902, 0.0
      %v2911 = vadd.f32 %v2909, %v2910
      %v2912 = vsel %vm288, %v2903, 0.0
      %v2913 = vadd.f32 %v2911, %v2912
      %v2914 = vsel %vm288, %v2904, 0.0
      %v2915 = vadd.f32 %v2913, %v2914
      %v2916 = vsel %vm288, %v2905, 0.0
      %v2917 = vadd.f32 %v2915, %v2916
      %v2918 = vsel %vm288, %v2906, 0.0
      %v2919 = vadd.f32 %v2917, %v2918
      %v2920 = vsel %vm288, %v2907, 0.0
      %v2921 = vadd.f32 %v2919, %v2920
      %v2922 = vsel %vm288, %v2908, 0.0
      %v2923 = vadd.f32 %v2921, %v2922
      %v2924 = vrot.slane %v2923, 4
      %v2925 = vadd.f32 %v2923, %v2924
      %v2926 = vrot.slane %v2925, 2
      %v2927 = vadd.f32 %v2925, %v2926
      %v2928 = vrot.slane %v2927, 1
      %v2929 = vadd.f32 %v2927, %v2928
      %v2930 = vand.u32 2147483647, %v2900
      %vm2931 = vcmp.gt.f32.partialorder %v2930, 1e-12
      %v2932 = vsel %vm2931, %v2900, 1.0
      %v2933 = vsub.f32 %v2871, %v2929
      %v2934 = vmul.f32 %v2932, 2.0
      %v2935 = vrcp.pop %v2934
      %v2936 = vmul.f32 %v2933, %v2935
      %vm2937 = vcmp.ge.f32.partialorder %v2936, 0.0
      %v2938 = vsel %vm2937, 1.0, -1.0
      %v2939 = vand.u32 2147483647, %v2936
      %v2940 = vmul.f32 %v2936, %v2936
      %v2941 = vadd.f32 %v2940, 1.0
      %v2942 = vrsqrt.pop %v2941
      %v2943 = vmul.f32 %v2941, %v2942
      %vm2944 = vcmp.eq.f32.partialorder %v2941, inf
      %v2945 = vsel %vm2944, %v2941, %v2943
      %vm2946 = vcmp.eq.f32.partialorder %v2941, 0.0
      %v2947 = vand.u32 %v2941, 2147483648
      %v2948 = vsel %vm2946, %v2947, %v2945
      %v2949 = vadd.f32 %v2939, %v2948
      %v2950 = vrcp.pop %v2949
      %v2951 = vmul.f32 %v2938, %v2950
      %v2952 = vmul.f32 %v2951, %v2951
      %v2953 = vadd.f32 %v2952, 1.0
      %v2954 = vrsqrt.pop %v2953
      %v2955 = vmul.f32 %v2951, %v2954
      %v2956 = vsel %vm2931, %v2954, 1.0
      %v2957 = vsel %vm2931, %v2955, 0.0
      %v2958 = vmul.f32 %v100, %v2956
      %v2959 = vmul.f32 %v101, %v2956
      %v2960 = vmul.f32 %v102, %v2956
      %v2961 = vmul.f32 %v103, %v2956
      %v2962 = vmul.f32 %v104, %v2956
      %v2963 = vmul.f32 %v105, %v2956
      %v2964 = vmul.f32 %v106, %v2956
      %v2965 = vmul.f32 %v107, %v2956
      %v2966 = vmul.f32 %v2803, %v2957
      %v2967 = vmul.f32 %v2804, %v2957
      %v2968 = vmul.f32 %v2805, %v2957
      %v2969 = vmul.f32 %v2806, %v2957
      %v2970 = vmul.f32 %v2807, %v2957
      %v2971 = vmul.f32 %v2808, %v2957
      %v2972 = vmul.f32 %v2809, %v2957
      %v2973 = vmul.f32 %v2810, %v2957
      %v2974 = vadd.f32 %v2958, %v2966
      %v2975 = vadd.f32 %v2959, %v2967
      %v2976 = vadd.f32 %v2960, %v2968
      %v2977 = vadd.f32 %v2961, %v2969
      %v2978 = vadd.f32 %v2962, %v2970
      %v2979 = vadd.f32 %v2963, %v2971
      %v2980 = vadd.f32 %v2964, %v2972
      %v2981 = vadd.f32 %v2965, %v2973
      %v2983 = vsel %vm288, %v2819, 0
      %v2986 = vsel %vm288, %v2820, 0
      %v2989 = vsel %vm288, %v2821, 0
      %v2992 = vsel %vm288, %v2822, 0
      %v2995 = vsel %vm288, %v2823, 0
      %v2998 = vsel %vm288, %v2824, 0
      %v3001 = vsel %vm288, %v2825, 0
      %v3004 = vsel %vm288, %v2826, 0
      %3006 = vmatprep.subr.mxu0 0.0
      %3007 = vmatpush1.msra.mxu0 0.0
      %3008 = vmatprep.subr.mxu0 0.0
      %3009 = vmatpush1.msra.mxu0 0.0
      %3010 = vmatprep.subr.mxu0 0.0
      %3011 = vmatpush1.msra.mxu0 0.0
      %3012 = vmatprep.subr.mxu0 0.0
      %3013 = vmatpush1.msra.mxu0 0.0
      %3014 = vmatprep.subr.mxu0 0.0
      %3015 = vmatpush1.msra.mxu0 0.0
      %3016 = vmatprep.subr.mxu0 0.0
      %3017 = vmatpush1.msra.mxu0 0.0
      %3018 = vmatprep.subr.mxu0 0.0
      %3019 = vmatpush1.msra.mxu0 0.0
      %3020 = vmatprep.subr.mxu0 0.0
      %3021 = vmatpush1.msra.mxu0 0.0
      %3022 = vmatprep.subr.mxu0 0.0
      %3023 = vmatpush1.msra.mxu0 %v2981
      %3024 = vmatprep.subr.mxu0 0.0
      %3025 = vmatpush1.msra.mxu0 %v2980
      %3026 = vmatprep.subr.mxu0 0.0
      %3027 = vmatpush1.msra.mxu0 %v2979
      %3028 = vmatprep.subr.mxu0 0.0
      %3029 = vmatpush1.msra.mxu0 %v2978
      %3030 = vmatprep.subr.mxu0 0.0
      %3031 = vmatpush1.msra.mxu0 %v2977
      %3032 = vmatprep.subr.mxu0 0.0
      %3033 = vmatpush1.msra.mxu0 %v2976
      %3034 = vmatprep.subr.mxu0 0.0
      %3035 = vmatpush1.msra.mxu0 %v2975
      %3036 = vmatprep.subr.mxu0 0.0
      %3037 = vmatpush1.msra.mxu0 %v2974
      %3038 = vmatprep.subr.mxu0 0.0
      %3039 = vmatpush2.msra.mxu0 0.0
      %3040 = vmatprep.subr.mxu0 0.0
      %3041 = vmatpush2.msra.mxu0 0.0
      %3042 = vmatprep.subr.mxu0 0.0
      %3043 = vmatpush2.msra.mxu0 0.0
      %3044 = vmatprep.subr.mxu0 0.0
      %3045 = vmatpush2.msra.mxu0 0.0
      %3046 = vmatprep.subr.mxu0 0.0
      %3047 = vmatpush2.msra.mxu0 0.0
      %3048 = vmatprep.subr.mxu0 0.0
      %3049 = vmatpush2.msra.mxu0 0.0
      %3050 = vmatprep.subr.mxu0 0.0
      %3051 = vmatpush2.msra.mxu0 0.0
      %3052 = vmatprep.subr.mxu0 0.0
      %3053 = vmatpush2.msra.mxu0 0.0
      %3054 = vmatprep.subr.mxu0 0.0
      %3055 = vmatpush2.msra.mxu0 0.0
      %3056 = vmatprep.subr.mxu0 0.0
      %3057 = vmatpush2.msra.mxu0 0.0
      %3058 = vmatprep.subr.mxu0 0.0
      %3059 = vmatpush2.msra.mxu0 0.0
      %3060 = vmatprep.subr.mxu0 0.0
      %3061 = vmatpush2.msra.mxu0 0.0
      %3062 = vmatprep.subr.mxu0 0.0
      %3063 = vmatpush2.msra.mxu0 0.0
      %3064 = vmatprep.subr.mxu0 0.0
      %3065 = vmatpush2.msra.mxu0 0.0
      %3066 = vmatprep.subr.mxu0 0.0
      %3067 = vmatpush2.msra.mxu0 0.0
      %3068 = vmatprep.subr.mxu0 0.0
      %3069 = vmatpush2.msra.mxu0 0.0
      %3070 = vmatprep.mubr.f32.mxu0 0.0
      %3071 = vmatmul.mubr.f32.gmra.mxu0 %v2983
      %v3072 = vpop.f32.mrf.mxu0
      %v3073 = vadd.f32 0.0, %v3072
      %v3074 = vpop.f32.mrf.mxu0
      %3075 = vmatprep.mubr.f32.mxu0 0.0
      %3076 = vmatmul.mubr.f32.gmra.mxu0 %v2986
      %v3077 = vpop.f32.mrf.mxu0
      %v3078 = vadd.f32 0.0, %v3077
      %v3079 = vpop.f32.mrf.mxu0
      %3080 = vmatprep.mubr.f32.mxu0 0.0
      %3081 = vmatmul.mubr.f32.gmra.mxu0 %v2989
      %v3082 = vpop.f32.mrf.mxu0
      %v3083 = vadd.f32 0.0, %v3082
      %v3084 = vpop.f32.mrf.mxu0
      %3085 = vmatprep.mubr.f32.mxu0 0.0
      %3086 = vmatmul.mubr.f32.gmra.mxu0 %v2992
      %v3087 = vpop.f32.mrf.mxu0
      %v3088 = vadd.f32 0.0, %v3087
      %v3089 = vpop.f32.mrf.mxu0
      %3090 = vmatprep.mubr.f32.mxu0 0.0
      %3091 = vmatmul.mubr.f32.gmra.mxu0 %v2995
      %v3092 = vpop.f32.mrf.mxu0
      %v3093 = vadd.f32 0.0, %v3092
      %v3094 = vpop.f32.mrf.mxu0
      %3095 = vmatprep.mubr.f32.mxu0 0.0
      %3096 = vmatmul.mubr.f32.gmra.mxu0 %v2998
      %v3097 = vpop.f32.mrf.mxu0
      %v3098 = vadd.f32 0.0, %v3097
      %v3099 = vpop.f32.mrf.mxu0
      %3100 = vmatprep.mubr.f32.mxu0 0.0
      %3101 = vmatmul.mubr.f32.gmra.mxu0 %v3001
      %v3102 = vpop.f32.mrf.mxu0
      %v3103 = vadd.f32 0.0, %v3102
      %v3104 = vpop.f32.mrf.mxu0
      %3105 = vmatprep.mubr.f32.mxu0 0.0
      %3106 = vmatmul.mubr.f32.gmra.mxu0 %v3004
      %v3107 = vpop.f32.mrf.mxu0
      %v3108 = vadd.f32 0.0, %v3107
      %v3109 = vpop.f32.mrf.mxu0
      %3110 = vdwg.mxu0
      %3111 = vxpose.xlu0.b32.start [1/16] %v2974, 128
      %3112 = vxpose.xlu0.b32.cont [2/16] %v2975, 128
      %3113 = vxpose.xlu0.b32.cont [3/16] %v2976, 128
      %3114 = vxpose.xlu0.b32.cont [4/16] %v2977, 128
      %3115 = vxpose.xlu0.b32.cont [5/16] %v2978, 128
      %3116 = vxpose.xlu0.b32.cont [6/16] %v2979, 128
      %3117 = vxpose.xlu0.b32.cont [7/16] %v2980, 128
      %3118 = vxpose.xlu0.b32.cont [8/16] %v2981, 128
      %3119 = vxpose.xlu0.b32.cont [9/16] 0.0, 128
      %3120 = vxpose.xlu0.b32.cont [10/16] 0.0, 128
      %3121 = vxpose.xlu0.b32.cont [11/16] 0.0, 128
      %3122 = vxpose.xlu0.b32.cont [12/16] 0.0, 128
      %3123 = vxpose.xlu0.b32.cont [13/16] 0.0, 128
      %3124 = vxpose.xlu0.b32.cont [14/16] 0.0, 128
      %3125 = vxpose.xlu0.b32.cont [15/16] 0.0, 128
      %3126 = vxpose.xlu0.b32.end [16/16] 0.0, 128
      %v3127 = vpop.trf.xlu0
      %v3128 = vpop.trf.xlu0
      %v3129 = vpop.trf.xlu0
      %v3130 = vpop.trf.xlu0
      %v3131 = vpop.trf.xlu0
      %v3132 = vpop.trf.xlu0
      %v3133 = vpop.trf.xlu0
      %v3134 = vpop.trf.xlu0
      %v3135 = vpop.trf.xlu0
      %v3136 = vpop.trf.xlu0
      %v3137 = vpop.trf.xlu0
      %v3138 = vpop.trf.xlu0
      %v3139 = vpop.trf.xlu0
      %v3140 = vpop.trf.xlu0
      %v3141 = vpop.trf.xlu0
      %v3142 = vpop.trf.xlu0
      %v3144 = vsel %vm288, %v3127, 0
      %v3147 = vsel %vm288, %v3128, 0
      %v3150 = vsel %vm288, %v3129, 0
      %v3153 = vsel %vm288, %v3130, 0
      %v3156 = vsel %vm288, %v3131, 0
      %v3159 = vsel %vm288, %v3132, 0
      %v3162 = vsel %vm288, %v3133, 0
      %v3165 = vsel %vm288, %v3134, 0
      %3167 = vmatprep.subr.mxu0 0.0
      %3168 = vmatpush1.msra.mxu0 0.0
      %3169 = vmatprep.subr.mxu0 0.0
      %3170 = vmatpush1.msra.mxu0 0.0
      %3171 = vmatprep.subr.mxu0 0.0
      %3172 = vmatpush1.msra.mxu0 0.0
      %3173 = vmatprep.subr.mxu0 0.0
      %3174 = vmatpush1.msra.mxu0 0.0
      %3175 = vmatprep.subr.mxu0 0.0
      %3176 = vmatpush1.msra.mxu0 0.0
      %3177 = vmatprep.subr.mxu0 0.0
      %3178 = vmatpush1.msra.mxu0 0.0
      %3179 = vmatprep.subr.mxu0 0.0
      %3180 = vmatpush1.msra.mxu0 0.0
      %3181 = vmatprep.subr.mxu0 0.0
      %3182 = vmatpush1.msra.mxu0 0.0
      %3183 = vmatprep.subr.mxu0 0.0
      %3184 = vmatpush1.msra.mxu0 %v3108
      %3185 = vmatprep.subr.mxu0 0.0
      %3186 = vmatpush1.msra.mxu0 %v3103
      %3187 = vmatprep.subr.mxu0 0.0
      %3188 = vmatpush1.msra.mxu0 %v3098
      %3189 = vmatprep.subr.mxu0 0.0
      %3190 = vmatpush1.msra.mxu0 %v3093
      %3191 = vmatprep.subr.mxu0 0.0
      %3192 = vmatpush1.msra.mxu0 %v3088
      %3193 = vmatprep.subr.mxu0 0.0
      %3194 = vmatpush1.msra.mxu0 %v3083
      %3195 = vmatprep.subr.mxu0 0.0
      %3196 = vmatpush1.msra.mxu0 %v3078
      %3197 = vmatprep.subr.mxu0 0.0
      %3198 = vmatpush1.msra.mxu0 %v3073
      %3199 = vmatprep.subr.mxu0 0.0
      %3200 = vmatpush2.msra.mxu0 0.0
      %3201 = vmatprep.subr.mxu0 0.0
      %3202 = vmatpush2.msra.mxu0 0.0
      %3203 = vmatprep.subr.mxu0 0.0
      %3204 = vmatpush2.msra.mxu0 0.0
      %3205 = vmatprep.subr.mxu0 0.0
      %3206 = vmatpush2.msra.mxu0 0.0
      %3207 = vmatprep.subr.mxu0 0.0
      %3208 = vmatpush2.msra.mxu0 0.0
      %3209 = vmatprep.subr.mxu0 0.0
      %3210 = vmatpush2.msra.mxu0 0.0
      %3211 = vmatprep.subr.mxu0 0.0
      %3212 = vmatpush2.msra.mxu0 0.0
      %3213 = vmatprep.subr.mxu0 0.0
      %3214 = vmatpush2.msra.mxu0 0.0
      %3215 = vmatprep.subr.mxu0 0.0
      %3216 = vmatpush2.msra.mxu0 0.0
      %3217 = vmatprep.subr.mxu0 0.0
      %3218 = vmatpush2.msra.mxu0 0.0
      %3219 = vmatprep.subr.mxu0 0.0
      %3220 = vmatpush2.msra.mxu0 0.0
      %3221 = vmatprep.subr.mxu0 0.0
      %3222 = vmatpush2.msra.mxu0 0.0
      %3223 = vmatprep.subr.mxu0 0.0
      %3224 = vmatpush2.msra.mxu0 0.0
      %3225 = vmatprep.subr.mxu0 0.0
      %3226 = vmatpush2.msra.mxu0 0.0
      %3227 = vmatprep.subr.mxu0 0.0
      %3228 = vmatpush2.msra.mxu0 0.0
      %3229 = vmatprep.subr.mxu0 0.0
      %3230 = vmatpush2.msra.mxu0 0.0
      %3231 = vmatprep.mubr.f32.mxu0 0.0
      %3232 = vmatmul.mubr.f32.gmra.mxu0 %v3144
      %v3233 = vpop.f32.mrf.mxu0
      %v3234 = vadd.f32 0.0, %v3233
      %v3235 = vpop.f32.mrf.mxu0
      %3236 = vmatprep.mubr.f32.mxu0 0.0
      %3237 = vmatmul.mubr.f32.gmra.mxu0 %v3147
      %v3238 = vpop.f32.mrf.mxu0
      %v3239 = vadd.f32 0.0, %v3238
      %v3240 = vpop.f32.mrf.mxu0
      %3241 = vmatprep.mubr.f32.mxu0 0.0
      %3242 = vmatmul.mubr.f32.gmra.mxu0 %v3150
      %v3243 = vpop.f32.mrf.mxu0
      %v3244 = vadd.f32 0.0, %v3243
      %v3245 = vpop.f32.mrf.mxu0
      %3246 = vmatprep.mubr.f32.mxu0 0.0
      %3247 = vmatmul.mubr.f32.gmra.mxu0 %v3153
      %v3248 = vpop.f32.mrf.mxu0
      %v3249 = vadd.f32 0.0, %v3248
      %v3250 = vpop.f32.mrf.mxu0
      %3251 = vmatprep.mubr.f32.mxu0 0.0
      %3252 = vmatmul.mubr.f32.gmra.mxu0 %v3156
      %v3253 = vpop.f32.mrf.mxu0
      %v3254 = vadd.f32 0.0, %v3253
      %v3255 = vpop.f32.mrf.mxu0
      %3256 = vmatprep.mubr.f32.mxu0 0.0
      %3257 = vmatmul.mubr.f32.gmra.mxu0 %v3159
      %v3258 = vpop.f32.mrf.mxu0
      %v3259 = vadd.f32 0.0, %v3258
      %v3260 = vpop.f32.mrf.mxu0
      %3261 = vmatprep.mubr.f32.mxu0 0.0
      %3262 = vmatmul.mubr.f32.gmra.mxu0 %v3162
      %v3263 = vpop.f32.mrf.mxu0
      %v3264 = vadd.f32 0.0, %v3263
      %v3265 = vpop.f32.mrf.mxu0
      %3266 = vmatprep.mubr.f32.mxu0 0.0
      %3267 = vmatmul.mubr.f32.gmra.mxu0 %v3165
      %v3268 = vpop.f32.mrf.mxu0
      %v3269 = vadd.f32 0.0, %v3268
      %v3270 = vpop.f32.mrf.mxu0
      %3271 = vdwg.mxu0
      %3272 = vst.msk [vmem:[#allocation2] sm:$0xff] %vm288, %v3234
      %3273 = vst.msk [vmem:[#allocation2 + $0x8] sm:$0xff] %vm288, %v3239
      %3274 = vst.msk [vmem:[#allocation2 + $0x10] sm:$0xff] %vm288, %v3244
      %3275 = vst.msk [vmem:[#allocation2 + $0x18] sm:$0xff] %vm288, %v3249
      %3276 = vst.msk [vmem:[#allocation2 + $0x20] sm:$0xff] %vm288, %v3254
      %3277 = vst.msk [vmem:[#allocation2 + $0x28] sm:$0xff] %vm288, %v3259
      %3278 = vst.msk [vmem:[#allocation2 + $0x30] sm:$0xff] %vm288, %v3264
      %3279 = vst.msk [vmem:[#allocation2 + $0x38] sm:$0xff] %vm288, %v3269
      %v3280 = vld [vmem:[#allocation3] sm:$0xff]
      %v3281 = vld [vmem:[#allocation3 + $0x8] sm:$0xff]
      %v3282 = vld [vmem:[#allocation3 + $0x10] sm:$0xff]
      %v3283 = vld [vmem:[#allocation3 + $0x18] sm:$0xff]
      %v3284 = vld [vmem:[#allocation3 + $0x20] sm:$0xff]
      %v3285 = vld [vmem:[#allocation3 + $0x28] sm:$0xff]
      %v3286 = vld [vmem:[#allocation3 + $0x30] sm:$0xff]
      %v3287 = vld [vmem:[#allocation3 + $0x38] sm:$0xff]
      %v3289 = vsel %vm288, %v3280, 0
      %v3292 = vsel %vm288, %v3281, 0
      %v3295 = vsel %vm288, %v3282, 0
      %v3298 = vsel %vm288, %v3283, 0
      %v3301 = vsel %vm288, %v3284, 0
      %v3304 = vsel %vm288, %v3285, 0
      %v3307 = vsel %vm288, %v3286, 0
      %v3310 = vsel %vm288, %v3287, 0
      %3312 = vmatprep.subr.mxu0 0.0
      %3313 = vmatpush1.msra.mxu0 0.0
      %3314 = vmatprep.subr.mxu0 0.0
      %3315 = vmatpush1.msra.mxu0 0.0
      %3316 = vmatprep.subr.mxu0 0.0
      %3317 = vmatpush1.msra.mxu0 0.0
      %3318 = vmatprep.subr.mxu0 0.0
      %3319 = vmatpush1.msra.mxu0 0.0
      %3320 = vmatprep.subr.mxu0 0.0
      %3321 = vmatpush1.msra.mxu0 0.0
      %3322 = vmatprep.subr.mxu0 0.0
      %3323 = vmatpush1.msra.mxu0 0.0
      %3324 = vmatprep.subr.mxu0 0.0
      %3325 = vmatpush1.msra.mxu0 0.0
      %3326 = vmatprep.subr.mxu0 0.0
      %3327 = vmatpush1.msra.mxu0 0.0
      %3328 = vmatprep.subr.mxu0 0.0
      %3329 = vmatpush1.msra.mxu0 %v2981
      %3330 = vmatprep.subr.mxu0 0.0
      %3331 = vmatpush1.msra.mxu0 %v2980
      %3332 = vmatprep.subr.mxu0 0.0
      %3333 = vmatpush1.msra.mxu0 %v2979
      %3334 = vmatprep.subr.mxu0 0.0
      %3335 = vmatpush1.msra.mxu0 %v2978
      %3336 = vmatprep.subr.mxu0 0.0
      %3337 = vmatpush1.msra.mxu0 %v2977
      %3338 = vmatprep.subr.mxu0 0.0
      %3339 = vmatpush1.msra.mxu0 %v2976
      %3340 = vmatprep.subr.mxu0 0.0
      %3341 = vmatpush1.msra.mxu0 %v2975
      %3342 = vmatprep.subr.mxu0 0.0
      %3343 = vmatpush1.msra.mxu0 %v2974
      %3344 = vmatprep.subr.mxu0 0.0
      %3345 = vmatpush2.msra.mxu0 0.0
      %3346 = vmatprep.subr.mxu0 0.0
      %3347 = vmatpush2.msra.mxu0 0.0
      %3348 = vmatprep.subr.mxu0 0.0
      %3349 = vmatpush2.msra.mxu0 0.0
      %3350 = vmatprep.subr.mxu0 0.0
      %3351 = vmatpush2.msra.mxu0 0.0
      %3352 = vmatprep.subr.mxu0 0.0
      %3353 = vmatpush2.msra.mxu0 0.0
      %3354 = vmatprep.subr.mxu0 0.0
      %3355 = vmatpush2.msra.mxu0 0.0
      %3356 = vmatprep.subr.mxu0 0.0
      %3357 = vmatpush2.msra.mxu0 0.0
      %3358 = vmatprep.subr.mxu0 0.0
      %3359 = vmatpush2.msra.mxu0 0.0
      %3360 = vmatprep.subr.mxu0 0.0
      %3361 = vmatpush2.msra.mxu0 0.0
      %3362 = vmatprep.subr.mxu0 0.0
      %3363 = vmatpush2.msra.mxu0 0.0
      %3364 = vmatprep.subr.mxu0 0.0
      %3365 = vmatpush2.msra.mxu0 0.0
      %3366 = vmatprep.subr.mxu0 0.0
      %3367 = vmatpush2.msra.mxu0 0.0
      %3368 = vmatprep.subr.mxu0 0.0
      %3369 = vmatpush2.msra.mxu0 0.0
      %3370 = vmatprep.subr.mxu0 0.0
      %3371 = vmatpush2.msra.mxu0 0.0
      %3372 = vmatprep.subr.mxu0 0.0
      %3373 = vmatpush2.msra.mxu0 0.0
      %3374 = vmatprep.subr.mxu0 0.0
      %3375 = vmatpush2.msra.mxu0 0.0
      %3376 = vmatprep.mubr.f32.mxu0 0.0
      %3377 = vmatmul.mubr.f32.gmra.mxu0 %v3289
      %v3378 = vpop.f32.mrf.mxu0
      %v3379 = vadd.f32 0.0, %v3378
      %v3380 = vpop.f32.mrf.mxu0
      %3381 = vmatprep.mubr.f32.mxu0 0.0
      %3382 = vmatmul.mubr.f32.gmra.mxu0 %v3292
      %v3383 = vpop.f32.mrf.mxu0
      %v3384 = vadd.f32 0.0, %v3383
      %v3385 = vpop.f32.mrf.mxu0
      %3386 = vmatprep.mubr.f32.mxu0 0.0
      %3387 = vmatmul.mubr.f32.gmra.mxu0 %v3295
      %v3388 = vpop.f32.mrf.mxu0
      %v3389 = vadd.f32 0.0, %v3388
      %v3390 = vpop.f32.mrf.mxu0
      %3391 = vmatprep.mubr.f32.mxu0 0.0
      %3392 = vmatmul.mubr.f32.gmra.mxu0 %v3298
      %v3393 = vpop.f32.mrf.mxu0
      %v3394 = vadd.f32 0.0, %v3393
      %v3395 = vpop.f32.mrf.mxu0
      %3396 = vmatprep.mubr.f32.mxu0 0.0
      %3397 = vmatmul.mubr.f32.gmra.mxu0 %v3301
      %v3398 = vpop.f32.mrf.mxu0
      %v3399 = vadd.f32 0.0, %v3398
      %v3400 = vpop.f32.mrf.mxu0
      %3401 = vmatprep.mubr.f32.mxu0 0.0
      %3402 = vmatmul.mubr.f32.gmra.mxu0 %v3304
      %v3403 = vpop.f32.mrf.mxu0
      %v3404 = vadd.f32 0.0, %v3403
      %v3405 = vpop.f32.mrf.mxu0
      %3406 = vmatprep.mubr.f32.mxu0 0.0
      %3407 = vmatmul.mubr.f32.gmra.mxu0 %v3307
      %v3408 = vpop.f32.mrf.mxu0
      %v3409 = vadd.f32 0.0, %v3408
      %v3410 = vpop.f32.mrf.mxu0
      %3411 = vmatprep.mubr.f32.mxu0 0.0
      %3412 = vmatmul.mubr.f32.gmra.mxu0 %v3310
      %v3413 = vpop.f32.mrf.mxu0
      %v3414 = vadd.f32 0.0, %v3413
      %v3415 = vpop.f32.mrf.mxu0
      %3416 = vdwg.mxu0
      %3417 = vst.msk [vmem:[#allocation3] sm:$0xff] %vm288, %v3379
      %3418 = vst.msk [vmem:[#allocation3 + $0x8] sm:$0xff] %vm288, %v3384
      %3419 = vst.msk [vmem:[#allocation3 + $0x10] sm:$0xff] %vm288, %v3389
      %3420 = vst.msk [vmem:[#allocation3 + $0x18] sm:$0xff] %vm288, %v3394
      %3421 = vst.msk [vmem:[#allocation3 + $0x20] sm:$0xff] %vm288, %v3399
      %3422 = vst.msk [vmem:[#allocation3 + $0x28] sm:$0xff] %vm288, %v3404
      %3423 = vst.msk [vmem:[#allocation3 + $0x30] sm:$0xff] %vm288, %v3409
      %3424 = vst.msk [vmem:[#allocation3 + $0x38] sm:$0xff] %vm288, %v3414
      %s3425 = scalar_lea.vmem [#allocation6], 320
      %v3426 = vld [vmem:[%s3425] sm:$0xff]
      %v3427 = vld [vmem:[%s3425 + $0x8] sm:$0xff]
      %v3428 = vld [vmem:[%s3425 + $0x10] sm:$0xff]
      %v3429 = vld [vmem:[%s3425 + $0x18] sm:$0xff]
      %v3430 = vld [vmem:[%s3425 + $0x20] sm:$0xff]
      %v3431 = vld [vmem:[%s3425 + $0x28] sm:$0xff]
      %v3432 = vld [vmem:[%s3425 + $0x30] sm:$0xff]
      %v3433 = vld [vmem:[%s3425 + $0x38] sm:$0xff]
      %v3434 = vand.u32 2147483647, %v3426
      %v3435 = vand.u32 2147483647, %v3427
      %v3436 = vand.u32 2147483647, %v3428
      %v3437 = vand.u32 2147483647, %v3429
      %v3438 = vand.u32 2147483647, %v3430
      %v3439 = vand.u32 2147483647, %v3431
      %v3440 = vand.u32 2147483647, %v3432
      %v3441 = vand.u32 2147483647, %v3433
      %v3442 = vld [vmem:[#allocation2] sm:$0xff]
      %v3443 = vld [vmem:[#allocation2 + $0x8] sm:$0xff]
      %v3444 = vld [vmem:[#allocation2 + $0x10] sm:$0xff]
      %v3445 = vld [vmem:[#allocation2 + $0x18] sm:$0xff]
      %v3446 = vld [vmem:[#allocation2 + $0x20] sm:$0xff]
      %v3447 = vld [vmem:[#allocation2 + $0x28] sm:$0xff]
      %v3448 = vld [vmem:[#allocation2 + $0x30] sm:$0xff]
      %v3449 = vld [vmem:[#allocation2 + $0x38] sm:$0xff]
      %v3450 = vmul.f32 %v3442, %v100
      %v3451 = vmul.f32 %v3443, %v101
      %v3452 = vmul.f32 %v3444, %v102
      %v3453 = vmul.f32 %v3445, %v103
      %v3454 = vmul.f32 %v3446, %v104
      %v3455 = vmul.f32 %v3447, %v105
      %v3456 = vmul.f32 %v3448, %v106
      %v3457 = vmul.f32 %v3449, %v107
      %v3458 = vsel %vm288, %v3450, 0.0
      %3459 = vadd.xlane.f32.xlu0 %v3458
      %v3460 = vpop.xlane.xlu0 %3459
      %v3461 = vsel %vm288, %v3451, 0.0
      %3462 = vadd.xlane.f32.xlu0 %v3461
      %v3463 = vpop.xlane.xlu0 %3462
      %v3464 = vsel %vm288, %v3452, 0.0
      %3465 = vadd.xlane.f32.xlu0 %v3464
      %v3466 = vpop.xlane.xlu0 %3465
      %v3467 = vsel %vm288, %v3453, 0.0
      %3468 = vadd.xlane.f32.xlu0 %v3467
      %v3469 = vpop.xlane.xlu0 %3468
      %v3470 = vsel %vm288, %v3454, 0.0
      %3471 = vadd.xlane.f32.xlu0 %v3470
      %v3472 = vpop.xlane.xlu0 %3471
      %v3473 = vsel %vm288, %v3455, 0.0
      %3474 = vadd.xlane.f32.xlu0 %v3473
      %v3475 = vpop.xlane.xlu0 %3474
      %v3476 = vsel %vm288, %v3456, 0.0
      %3477 = vadd.xlane.f32.xlu0 %v3476
      %v3478 = vpop.xlane.xlu0 %3477
      %v3479 = vsel %vm288, %v3457, 0.0
      %3480 = vadd.xlane.f32.xlu0 %v3479
      %v3481 = vpop.xlane.xlu0 %3480
      %v3482 = vadd.f32 %v3458, %v3461
      %v3483 = vadd.f32 %v3482, %v3464
      %v3484 = vadd.f32 %v3483, %v3467
      %v3485 = vadd.f32 %v3484, %v3470
      %v3486 = vadd.f32 %v3485, %v3473
      %v3487 = vadd.f32 %v3486, %v3476
      %v3488 = vadd.f32 %v3487, %v3479
      %v3489 = vrot.slane %v3488, 4
      %v3490 = vadd.f32 %v3488, %v3489
      %v3491 = vrot.slane %v3490, 2
      %v3492 = vadd.f32 %v3490, %v3491
      %v3493 = vrot.slane %v3492, 1
      %v3494 = vadd.f32 %v3492, %v3493
      %v3495 = vmul.f32 %v3442, %v3426
      %v3496 = vmul.f32 %v3443, %v3427
      %v3497 = vmul.f32 %v3444, %v3428
      %v3498 = vmul.f32 %v3445, %v3429
      %v3499 = vmul.f32 %v3446, %v3430
      %v3500 = vmul.f32 %v3447, %v3431
      %v3501 = vmul.f32 %v3448, %v3432
      %v3502 = vmul.f32 %v3449, %v3433
      %v3503 = vsel %vm288, %v3495, 0.0
      %v3504 = vsel %vm288, %v3496, 0.0
      %v3505 = vadd.f32 %v3503, %v3504
      %v3506 = vsel %vm288, %v3497, 0.0
      %v3507 = vadd.f32 %v3505, %v3506
      %v3508 = vsel %vm288, %v3498, 0.0
      %v3509 = vadd.f32 %v3507, %v3508
      %v3510 = vsel %vm288, %v3499, 0.0
      %v3511 = vadd.f32 %v3509, %v3510
      %v3512 = vsel %vm288, %v3500, 0.0
      %v3513 = vadd.f32 %v3511, %v3512
      %v3514 = vsel %vm288, %v3501, 0.0
      %v3515 = vadd.f32 %v3513, %v3514
      %v3516 = vsel %vm288, %v3502, 0.0
      %v3517 = vadd.f32 %v3515, %v3516
      %v3518 = vrot.slane %v3517, 4
      %v3519 = vadd.f32 %v3517, %v3518
      %v3520 = vrot.slane %v3519, 2
      %v3521 = vadd.f32 %v3519, %v3520
      %v3522 = vrot.slane %v3521, 1
      %v3523 = vadd.f32 %v3521, %v3522
      %v3524 = vmul.f32 %v3434, %v3460
      %v3525 = vmul.f32 %v3435, %v3463
      %v3526 = vmul.f32 %v3436, %v3466
      %v3527 = vmul.f32 %v3437, %v3469
      %v3528 = vmul.f32 %v3438, %v3472
      %v3529 = vmul.f32 %v3439, %v3475
      %v3530 = vmul.f32 %v3440, %v3478
      %v3531 = vmul.f32 %v3441, %v3481
      %v3532 = vsel %vm288, %v3524, 0.0
      %v3533 = vsel %vm288, %v3525, 0.0
      %v3534 = vadd.f32 %v3532, %v3533
      %v3535 = vsel %vm288, %v3526, 0.0
      %v3536 = vadd.f32 %v3534, %v3535
      %v3537 = vsel %vm288, %v3527, 0.0
      %v3538 = vadd.f32 %v3536, %v3537
      %v3539 = vsel %vm288, %v3528, 0.0
      %v3540 = vadd.f32 %v3538, %v3539
      %v3541 = vsel %vm288, %v3529, 0.0
      %v3542 = vadd.f32 %v3540, %v3541
      %v3543 = vsel %vm288, %v3530, 0.0
      %v3544 = vadd.f32 %v3542, %v3543
      %v3545 = vsel %vm288, %v3531, 0.0
      %v3546 = vadd.f32 %v3544, %v3545
      %v3547 = vrot.slane %v3546, 4
      %v3548 = vadd.f32 %v3546, %v3547
      %v3549 = vrot.slane %v3548, 2
      %v3550 = vadd.f32 %v3548, %v3549
      %v3551 = vrot.slane %v3550, 1
      %v3552 = vadd.f32 %v3550, %v3551
      %v3553 = vand.u32 2147483647, %v3523
      %vm3554 = vcmp.gt.f32.partialorder %v3553, 1e-12
      %v3555 = vsel %vm3554, %v3523, 1.0
      %v3556 = vsub.f32 %v3494, %v3552
      %v3557 = vmul.f32 %v3555, 2.0
      %v3558 = vrcp.pop %v3557
      %v3559 = vmul.f32 %v3556, %v3558
      %vm3560 = vcmp.ge.f32.partialorder %v3559, 0.0
      %v3561 = vsel %vm3560, 1.0, -1.0
      %v3562 = vand.u32 2147483647, %v3559
      %v3563 = vmul.f32 %v3559, %v3559
      %v3564 = vadd.f32 %v3563, 1.0
      %v3565 = vrsqrt.pop %v3564
      %v3566 = vmul.f32 %v3564, %v3565
      %vm3567 = vcmp.eq.f32.partialorder %v3564, inf
      %v3568 = vsel %vm3567, %v3564, %v3566
      %vm3569 = vcmp.eq.f32.partialorder %v3564, 0.0
      %v3570 = vand.u32 %v3564, 2147483648
      %v3571 = vsel %vm3569, %v3570, %v3568
      %v3572 = vadd.f32 %v3562, %v3571
      %v3573 = vrcp.pop %v3572
      %v3574 = vmul.f32 %v3561, %v3573
      %v3575 = vmul.f32 %v3574, %v3574
      %v3576 = vadd.f32 %v3575, 1.0
      %v3577 = vrsqrt.pop %v3576
      %v3578 = vmul.f32 %v3574, %v3577
      %v3579 = vsel %vm3554, %v3577, 1.0
      %v3580 = vsel %vm3554, %v3578, 0.0
      %v3581 = vmul.f32 %v100, %v3579
      %v3582 = vmul.f32 %v101, %v3579
      %v3583 = vmul.f32 %v102, %v3579
      %v3584 = vmul.f32 %v103, %v3579
      %v3585 = vmul.f32 %v104, %v3579
      %v3586 = vmul.f32 %v105, %v3579
      %v3587 = vmul.f32 %v106, %v3579
      %v3588 = vmul.f32 %v107, %v3579
      %v3589 = vmul.f32 %v3426, %v3580
      %v3590 = vmul.f32 %v3427, %v3580
      %v3591 = vmul.f32 %v3428, %v3580
      %v3592 = vmul.f32 %v3429, %v3580
      %v3593 = vmul.f32 %v3430, %v3580
      %v3594 = vmul.f32 %v3431, %v3580
      %v3595 = vmul.f32 %v3432, %v3580
      %v3596 = vmul.f32 %v3433, %v3580
      %v3597 = vadd.f32 %v3581, %v3589
      %v3598 = vadd.f32 %v3582, %v3590
      %v3599 = vadd.f32 %v3583, %v3591
      %v3600 = vadd.f32 %v3584, %v3592
      %v3601 = vadd.f32 %v3585, %v3593
      %v3602 = vadd.f32 %v3586, %v3594
      %v3603 = vadd.f32 %v3587, %v3595
      %v3604 = vadd.f32 %v3588, %v3596
      %v3606 = vsel %vm288, %v3442, 0
      %v3609 = vsel %vm288, %v3443, 0
      %v3612 = vsel %vm288, %v3444, 0
      %v3615 = vsel %vm288, %v3445, 0
      %v3618 = vsel %vm288, %v3446, 0
      %v3621 = vsel %vm288, %v3447, 0
      %v3624 = vsel %vm288, %v3448, 0
      %v3627 = vsel %vm288, %v3449, 0
      %3629 = vmatprep.subr.mxu0 0.0
      %3630 = vmatpush1.msra.mxu0 0.0
      %3631 = vmatprep.subr.mxu0 0.0
      %3632 = vmatpush1.msra.mxu0 0.0
      %3633 = vmatprep.subr.mxu0 0.0
      %3634 = vmatpush1.msra.mxu0 0.0
      %3635 = vmatprep.subr.mxu0 0.0
      %3636 = vmatpush1.msra.mxu0 0.0
      %3637 = vmatprep.subr.mxu0 0.0
      %3638 = vmatpush1.msra.mxu0 0.0
      %3639 = vmatprep.subr.mxu0 0.0
      %3640 = vmatpush1.msra.mxu0 0.0
      %3641 = vmatprep.subr.mxu0 0.0
      %3642 = vmatpush1.msra.mxu0 0.0
      %3643 = vmatprep.subr.mxu0 0.0
      %3644 = vmatpush1.msra.mxu0 0.0
      %3645 = vmatprep.subr.mxu0 0.0
      %3646 = vmatpush1.msra.mxu0 %v3604
      %3647 = vmatprep.subr.mxu0 0.0
      %3648 = vmatpush1.msra.mxu0 %v3603
      %3649 = vmatprep.subr.mxu0 0.0
      %3650 = vmatpush1.msra.mxu0 %v3602
      %3651 = vmatprep.subr.mxu0 0.0
      %3652 = vmatpush1.msra.mxu0 %v3601
      %3653 = vmatprep.subr.mxu0 0.0
      %3654 = vmatpush1.msra.mxu0 %v3600
      %3655 = vmatprep.subr.mxu0 0.0
      %3656 = vmatpush1.msra.mxu0 %v3599
      %3657 = vmatprep.subr.mxu0 0.0
      %3658 = vmatpush1.msra.mxu0 %v3598
      %3659 = vmatprep.subr.mxu0 0.0
      %3660 = vmatpush1.msra.mxu0 %v3597
      %3661 = vmatprep.subr.mxu0 0.0
      %3662 = vmatpush2.msra.mxu0 0.0
      %3663 = vmatprep.subr.mxu0 0.0
      %3664 = vmatpush2.msra.mxu0 0.0
      %3665 = vmatprep.subr.mxu0 0.0
      %3666 = vmatpush2.msra.mxu0 0.0
      %3667 = vmatprep.subr.mxu0 0.0
      %3668 = vmatpush2.msra.mxu0 0.0
      %3669 = vmatprep.subr.mxu0 0.0
      %3670 = vmatpush2.msra.mxu0 0.0
      %3671 = vmatprep.subr.mxu0 0.0
      %3672 = vmatpush2.msra.mxu0 0.0
      %3673 = vmatprep.subr.mxu0 0.0
      %3674 = vmatpush2.msra.mxu0 0.0
      %3675 = vmatprep.subr.mxu0 0.0
      %3676 = vmatpush2.msra.mxu0 0.0
      %3677 = vmatprep.subr.mxu0 0.0
      %3678 = vmatpush2.msra.mxu0 0.0
      %3679 = vmatprep.subr.mxu0 0.0
      %3680 = vmatpush2.msra.mxu0 0.0
      %3681 = vmatprep.subr.mxu0 0.0
      %3682 = vmatpush2.msra.mxu0 0.0
      %3683 = vmatprep.subr.mxu0 0.0
      %3684 = vmatpush2.msra.mxu0 0.0
      %3685 = vmatprep.subr.mxu0 0.0
      %3686 = vmatpush2.msra.mxu0 0.0
      %3687 = vmatprep.subr.mxu0 0.0
      %3688 = vmatpush2.msra.mxu0 0.0
      %3689 = vmatprep.subr.mxu0 0.0
      %3690 = vmatpush2.msra.mxu0 0.0
      %3691 = vmatprep.subr.mxu0 0.0
      %3692 = vmatpush2.msra.mxu0 0.0
      %3693 = vmatprep.mubr.f32.mxu0 0.0
      %3694 = vmatmul.mubr.f32.gmra.mxu0 %v3606
      %v3695 = vpop.f32.mrf.mxu0
      %v3696 = vadd.f32 0.0, %v3695
      %v3697 = vpop.f32.mrf.mxu0
      %3698 = vmatprep.mubr.f32.mxu0 0.0
      %3699 = vmatmul.mubr.f32.gmra.mxu0 %v3609
      %v3700 = vpop.f32.mrf.mxu0
      %v3701 = vadd.f32 0.0, %v3700
      %v3702 = vpop.f32.mrf.mxu0
      %3703 = vmatprep.mubr.f32.mxu0 0.0
      %3704 = vmatmul.mubr.f32.gmra.mxu0 %v3612
      %v3705 = vpop.f32.mrf.mxu0
      %v3706 = vadd.f32 0.0, %v3705
      %v3707 = vpop.f32.mrf.mxu0
      %3708 = vmatprep.mubr.f32.mxu0 0.0
      %3709 = vmatmul.mubr.f32.gmra.mxu0 %v3615
      %v3710 = vpop.f32.mrf.mxu0
      %v3711 = vadd.f32 0.0, %v3710
      %v3712 = vpop.f32.mrf.mxu0
      %3713 = vmatprep.mubr.f32.mxu0 0.0
      %3714 = vmatmul.mubr.f32.gmra.mxu0 %v3618
      %v3715 = vpop.f32.mrf.mxu0
      %v3716 = vadd.f32 0.0, %v3715
      %v3717 = vpop.f32.mrf.mxu0
      %3718 = vmatprep.mubr.f32.mxu0 0.0
      %3719 = vmatmul.mubr.f32.gmra.mxu0 %v3621
      %v3720 = vpop.f32.mrf.mxu0
      %v3721 = vadd.f32 0.0, %v3720
      %v3722 = vpop.f32.mrf.mxu0
      %3723 = vmatprep.mubr.f32.mxu0 0.0
      %3724 = vmatmul.mubr.f32.gmra.mxu0 %v3624
      %v3725 = vpop.f32.mrf.mxu0
      %v3726 = vadd.f32 0.0, %v3725
      %v3727 = vpop.f32.mrf.mxu0
      %3728 = vmatprep.mubr.f32.mxu0 0.0
      %3729 = vmatmul.mubr.f32.gmra.mxu0 %v3627
      %v3730 = vpop.f32.mrf.mxu0
      %v3731 = vadd.f32 0.0, %v3730
      %v3732 = vpop.f32.mrf.mxu0
      %3733 = vdwg.mxu0
      %3734 = vxpose.xlu0.b32.start [1/16] %v3597, 128
      %3735 = vxpose.xlu0.b32.cont [2/16] %v3598, 128
      %3736 = vxpose.xlu0.b32.cont [3/16] %v3599, 128
      %3737 = vxpose.xlu0.b32.cont [4/16] %v3600, 128
      %3738 = vxpose.xlu0.b32.cont [5/16] %v3601, 128
      %3739 = vxpose.xlu0.b32.cont [6/16] %v3602, 128
      %3740 = vxpose.xlu0.b32.cont [7/16] %v3603, 128
      %3741 = vxpose.xlu0.b32.cont [8/16] %v3604, 128
      %3742 = vxpose.xlu0.b32.cont [9/16] 0.0, 128
      %3743 = vxpose.xlu0.b32.cont [10/16] 0.0, 128
      %3744 = vxpose.xlu0.b32.cont [11/16] 0.0, 128
      %3745 = vxpose.xlu0.b32.cont [12/16] 0.0, 128
      %3746 = vxpose.xlu0.b32.cont [13/16] 0.0, 128
      %3747 = vxpose.xlu0.b32.cont [14/16] 0.0, 128
      %3748 = vxpose.xlu0.b32.cont [15/16] 0.0, 128
      %3749 = vxpose.xlu0.b32.end [16/16] 0.0, 128
      %v3750 = vpop.trf.xlu0
      %v3751 = vpop.trf.xlu0
      %v3752 = vpop.trf.xlu0
      %v3753 = vpop.trf.xlu0
      %v3754 = vpop.trf.xlu0
      %v3755 = vpop.trf.xlu0
      %v3756 = vpop.trf.xlu0
      %v3757 = vpop.trf.xlu0
      %v3758 = vpop.trf.xlu0
      %v3759 = vpop.trf.xlu0
      %v3760 = vpop.trf.xlu0
      %v3761 = vpop.trf.xlu0
      %v3762 = vpop.trf.xlu0
      %v3763 = vpop.trf.xlu0
      %v3764 = vpop.trf.xlu0
      %v3765 = vpop.trf.xlu0
      %v3767 = vsel %vm288, %v3750, 0
      %v3770 = vsel %vm288, %v3751, 0
      %v3773 = vsel %vm288, %v3752, 0
      %v3776 = vsel %vm288, %v3753, 0
      %v3779 = vsel %vm288, %v3754, 0
      %v3782 = vsel %vm288, %v3755, 0
      %v3785 = vsel %vm288, %v3756, 0
      %v3788 = vsel %vm288, %v3757, 0
      %3790 = vmatprep.subr.mxu0 0.0
      %3791 = vmatpush1.msra.mxu0 0.0
      %3792 = vmatprep.subr.mxu0 0.0
      %3793 = vmatpush1.msra.mxu0 0.0
      %3794 = vmatprep.subr.mxu0 0.0
      %3795 = vmatpush1.msra.mxu0 0.0
      %3796 = vmatprep.subr.mxu0 0.0
      %3797 = vmatpush1.msra.mxu0 0.0
      %3798 = vmatprep.subr.mxu0 0.0
      %3799 = vmatpush1.msra.mxu0 0.0
      %3800 = vmatprep.subr.mxu0 0.0
      %3801 = vmatpush1.msra.mxu0 0.0
      %3802 = vmatprep.subr.mxu0 0.0
      %3803 = vmatpush1.msra.mxu0 0.0
      %3804 = vmatprep.subr.mxu0 0.0
      %3805 = vmatpush1.msra.mxu0 0.0
      %3806 = vmatprep.subr.mxu0 0.0
      %3807 = vmatpush1.msra.mxu0 %v3731
      %3808 = vmatprep.subr.mxu0 0.0
      %3809 = vmatpush1.msra.mxu0 %v3726
      %3810 = vmatprep.subr.mxu0 0.0
      %3811 = vmatpush1.msra.mxu0 %v3721
      %3812 = vmatprep.subr.mxu0 0.0
      %3813 = vmatpush1.msra.mxu0 %v3716
      %3814 = vmatprep.subr.mxu0 0.0
      %3815 = vmatpush1.msra.mxu0 %v3711
      %3816 = vmatprep.subr.mxu0 0.0
      %3817 = vmatpush1.msra.mxu0 %v3706
      %3818 = vmatprep.subr.mxu0 0.0
      %3819 = vmatpush1.msra.mxu0 %v3701
      %3820 = vmatprep.subr.mxu0 0.0
      %3821 = vmatpush1.msra.mxu0 %v3696
      %3822 = vmatprep.subr.mxu0 0.0
      %3823 = vmatpush2.msra.mxu0 0.0
      %3824 = vmatprep.subr.mxu0 0.0
      %3825 = vmatpush2.msra.mxu0 0.0
      %3826 = vmatprep.subr.mxu0 0.0
      %3827 = vmatpush2.msra.mxu0 0.0
      %3828 = vmatprep.subr.mxu0 0.0
      %3829 = vmatpush2.msra.mxu0 0.0
      %3830 = vmatprep.subr.mxu0 0.0
      %3831 = vmatpush2.msra.mxu0 0.0
      %3832 = vmatprep.subr.mxu0 0.0
      %3833 = vmatpush2.msra.mxu0 0.0
      %3834 = vmatprep.subr.mxu0 0.0
      %3835 = vmatpush2.msra.mxu0 0.0
      %3836 = vmatprep.subr.mxu0 0.0
      %3837 = vmatpush2.msra.mxu0 0.0
      %3838 = vmatprep.subr.mxu0 0.0
      %3839 = vmatpush2.msra.mxu0 0.0
      %3840 = vmatprep.subr.mxu0 0.0
      %3841 = vmatpush2.msra.mxu0 0.0
      %3842 = vmatprep.subr.mxu0 0.0
      %3843 = vmatpush2.msra.mxu0 0.0
      %3844 = vmatprep.subr.mxu0 0.0
      %3845 = vmatpush2.msra.mxu0 0.0
      %3846 = vmatprep.subr.mxu0 0.0
      %3847 = vmatpush2.msra.mxu0 0.0
      %3848 = vmatprep.subr.mxu0 0.0
      %3849 = vmatpush2.msra.mxu0 0.0
      %3850 = vmatprep.subr.mxu0 0.0
      %3851 = vmatpush2.msra.mxu0 0.0
      %3852 = vmatprep.subr.mxu0 0.0
      %3853 = vmatpush2.msra.mxu0 0.0
      %3854 = vmatprep.mubr.f32.mxu0 0.0
      %3855 = vmatmul.mubr.f32.gmra.mxu0 %v3767
      %v3856 = vpop.f32.mrf.mxu0
      %v3857 = vadd.f32 0.0, %v3856
      %v3858 = vpop.f32.mrf.mxu0
      %3859 = vmatprep.mubr.f32.mxu0 0.0
      %3860 = vmatmul.mubr.f32.gmra.mxu0 %v3770
      %v3861 = vpop.f32.mrf.mxu0
      %v3862 = vadd.f32 0.0, %v3861
      %v3863 = vpop.f32.mrf.mxu0
      %3864 = vmatprep.mubr.f32.mxu0 0.0
      %3865 = vmatmul.mubr.f32.gmra.mxu0 %v3773
      %v3866 = vpop.f32.mrf.mxu0
      %v3867 = vadd.f32 0.0, %v3866
      %v3868 = vpop.f32.mrf.mxu0
      %3869 = vmatprep.mubr.f32.mxu0 0.0
      %3870 = vmatmul.mubr.f32.gmra.mxu0 %v3776
      %v3871 = vpop.f32.mrf.mxu0
      %v3872 = vadd.f32 0.0, %v3871
      %v3873 = vpop.f32.mrf.mxu0
      %3874 = vmatprep.mubr.f32.mxu0 0.0
      %3875 = vmatmul.mubr.f32.gmra.mxu0 %v3779
      %v3876 = vpop.f32.mrf.mxu0
      %v3877 = vadd.f32 0.0, %v3876
      %v3878 = vpop.f32.mrf.mxu0
      %3879 = vmatprep.mubr.f32.mxu0 0.0
      %3880 = vmatmul.mubr.f32.gmra.mxu0 %v3782
      %v3881 = vpop.f32.mrf.mxu0
      %v3882 = vadd.f32 0.0, %v3881
      %v3883 = vpop.f32.mrf.mxu0
      %3884 = vmatprep.mubr.f32.mxu0 0.0
      %3885 = vmatmul.mubr.f32.gmra.mxu0 %v3785
      %v3886 = vpop.f32.mrf.mxu0
      %v3887 = vadd.f32 0.0, %v3886
      %v3888 = vpop.f32.mrf.mxu0
      %3889 = vmatprep.mubr.f32.mxu0 0.0
      %3890 = vmatmul.mubr.f32.gmra.mxu0 %v3788
      %v3891 = vpop.f32.mrf.mxu0
      %v3892 = vadd.f32 0.0, %v3891
      %v3893 = vpop.f32.mrf.mxu0
      %3894 = vdwg.mxu0
      %3895 = vst.msk [vmem:[#allocation2] sm:$0xff] %vm288, %v3857
      %3896 = vst.msk [vmem:[#allocation2 + $0x8] sm:$0xff] %vm288, %v3862
      %3897 = vst.msk [vmem:[#allocation2 + $0x10] sm:$0xff] %vm288, %v3867
      %3898 = vst.msk [vmem:[#allocation2 + $0x18] sm:$0xff] %vm288, %v3872
      %3899 = vst.msk [vmem:[#allocation2 + $0x20] sm:$0xff] %vm288, %v3877
      %3900 = vst.msk [vmem:[#allocation2 + $0x28] sm:$0xff] %vm288, %v3882
      %3901 = vst.msk [vmem:[#allocation2 + $0x30] sm:$0xff] %vm288, %v3887
      %3902 = vst.msk [vmem:[#allocation2 + $0x38] sm:$0xff] %vm288, %v3892
      %v3903 = vld [vmem:[#allocation3] sm:$0xff]
      %v3904 = vld [vmem:[#allocation3 + $0x8] sm:$0xff]
      %v3905 = vld [vmem:[#allocation3 + $0x10] sm:$0xff]
      %v3906 = vld [vmem:[#allocation3 + $0x18] sm:$0xff]
      %v3907 = vld [vmem:[#allocation3 + $0x20] sm:$0xff]
      %v3908 = vld [vmem:[#allocation3 + $0x28] sm:$0xff]
      %v3909 = vld [vmem:[#allocation3 + $0x30] sm:$0xff]
      %v3910 = vld [vmem:[#allocation3 + $0x38] sm:$0xff]
      %v3912 = vsel %vm288, %v3903, 0
      %v3915 = vsel %vm288, %v3904, 0
      %v3918 = vsel %vm288, %v3905, 0
      %v3921 = vsel %vm288, %v3906, 0
      %v3924 = vsel %vm288, %v3907, 0
      %v3927 = vsel %vm288, %v3908, 0
      %v3930 = vsel %vm288, %v3909, 0
      %v3933 = vsel %vm288, %v3910, 0
      %3935 = vmatprep.subr.mxu0 0.0
      %3936 = vmatpush1.msra.mxu0 0.0
      %3937 = vmatprep.subr.mxu0 0.0
      %3938 = vmatpush1.msra.mxu0 0.0
      %3939 = vmatprep.subr.mxu0 0.0
      %3940 = vmatpush1.msra.mxu0 0.0
      %3941 = vmatprep.subr.mxu0 0.0
      %3942 = vmatpush1.msra.mxu0 0.0
      %3943 = vmatprep.subr.mxu0 0.0
      %3944 = vmatpush1.msra.mxu0 0.0
      %3945 = vmatprep.subr.mxu0 0.0
      %3946 = vmatpush1.msra.mxu0 0.0
      %3947 = vmatprep.subr.mxu0 0.0
      %3948 = vmatpush1.msra.mxu0 0.0
      %3949 = vmatprep.subr.mxu0 0.0
      %3950 = vmatpush1.msra.mxu0 0.0
      %3951 = vmatprep.subr.mxu0 0.0
      %3952 = vmatpush1.msra.mxu0 %v3604
      %3953 = vmatprep.subr.mxu0 0.0
      %3954 = vmatpush1.msra.mxu0 %v3603
      %3955 = vmatprep.subr.mxu0 0.0
      %3956 = vmatpush1.msra.mxu0 %v3602
      %3957 = vmatprep.subr.mxu0 0.0
      %3958 = vmatpush1.msra.mxu0 %v3601
      %3959 = vmatprep.subr.mxu0 0.0
      %3960 = vmatpush1.msra.mxu0 %v3600
      %3961 = vmatprep.subr.mxu0 0.0
      %3962 = vmatpush1.msra.mxu0 %v3599
      %3963 = vmatprep.subr.mxu0 0.0
      %3964 = vmatpush1.msra.mxu0 %v3598
      %3965 = vmatprep.subr.mxu0 0.0
      %3966 = vmatpush1.msra.mxu0 %v3597
      %3967 = vmatprep.subr.mxu0 0.0
      %3968 = vmatpush2.msra.mxu0 0.0
      %3969 = vmatprep.subr.mxu0 0.0
      %3970 = vmatpush2.msra.mxu0 0.0
      %3971 = vmatprep.subr.mxu0 0.0
      %3972 = vmatpush2.msra.mxu0 0.0
      %3973 = vmatprep.subr.mxu0 0.0
      %3974 = vmatpush2.msra.mxu0 0.0
      %3975 = vmatprep.subr.mxu0 0.0
      %3976 = vmatpush2.msra.mxu0 0.0
      %3977 = vmatprep.subr.mxu0 0.0
      %3978 = vmatpush2.msra.mxu0 0.0
      %3979 = vmatprep.subr.mxu0 0.0
      %3980 = vmatpush2.msra.mxu0 0.0
      %3981 = vmatprep.subr.mxu0 0.0
      %3982 = vmatpush2.msra.mxu0 0.0
      %3983 = vmatprep.subr.mxu0 0.0
      %3984 = vmatpush2.msra.mxu0 0.0
      %3985 = vmatprep.subr.mxu0 0.0
      %3986 = vmatpush2.msra.mxu0 0.0
      %3987 = vmatprep.subr.mxu0 0.0
      %3988 = vmatpush2.msra.mxu0 0.0
      %3989 = vmatprep.subr.mxu0 0.0
      %3990 = vmatpush2.msra.mxu0 0.0
      %3991 = vmatprep.subr.mxu0 0.0
      %3992 = vmatpush2.msra.mxu0 0.0
      %3993 = vmatprep.subr.mxu0 0.0
      %3994 = vmatpush2.msra.mxu0 0.0
      %3995 = vmatprep.subr.mxu0 0.0
      %3996 = vmatpush2.msra.mxu0 0.0
      %3997 = vmatprep.subr.mxu0 0.0
      %3998 = vmatpush2.msra.mxu0 0.0
      %3999 = vmatprep.mubr.f32.mxu0 0.0
      %4000 = vmatmul.mubr.f32.gmra.mxu0 %v3912
      %v4001 = vpop.f32.mrf.mxu0
      %v4002 = vadd.f32 0.0, %v4001
      %v4003 = vpop.f32.mrf.mxu0
      %4004 = vmatprep.mubr.f32.mxu0 0.0
      %4005 = vmatmul.mubr.f32.gmra.mxu0 %v3915
      %v4006 = vpop.f32.mrf.mxu0
      %v4007 = vadd.f32 0.0, %v4006
      %v4008 = vpop.f32.mrf.mxu0
      %4009 = vmatprep.mubr.f32.mxu0 0.0
      %4010 = vmatmul.mubr.f32.gmra.mxu0 %v3918
      %v4011 = vpop.f32.mrf.mxu0
      %v4012 = vadd.f32 0.0, %v4011
      %v4013 = vpop.f32.mrf.mxu0
      %4014 = vmatprep.mubr.f32.mxu0 0.0
      %4015 = vmatmul.mubr.f32.gmra.mxu0 %v3921
      %v4016 = vpop.f32.mrf.mxu0
      %v4017 = vadd.f32 0.0, %v4016
      %v4018 = vpop.f32.mrf.mxu0
      %4019 = vmatprep.mubr.f32.mxu0 0.0
      %4020 = vmatmul.mubr.f32.gmra.mxu0 %v3924
      %v4021 = vpop.f32.mrf.mxu0
      %v4022 = vadd.f32 0.0, %v4021
      %v4023 = vpop.f32.mrf.mxu0
      %4024 = vmatprep.mubr.f32.mxu0 0.0
      %4025 = vmatmul.mubr.f32.gmra.mxu0 %v3927
      %v4026 = vpop.f32.mrf.mxu0
      %v4027 = vadd.f32 0.0, %v4026
      %v4028 = vpop.f32.mrf.mxu0
      %4029 = vmatprep.mubr.f32.mxu0 0.0
      %4030 = vmatmul.mubr.f32.gmra.mxu0 %v3930
      %v4031 = vpop.f32.mrf.mxu0
      %v4032 = vadd.f32 0.0, %v4031
      %v4033 = vpop.f32.mrf.mxu0
      %4034 = vmatprep.mubr.f32.mxu0 0.0
      %4035 = vmatmul.mubr.f32.gmra.mxu0 %v3933
      %v4036 = vpop.f32.mrf.mxu0
      %v4037 = vadd.f32 0.0, %v4036
      %v4038 = vpop.f32.mrf.mxu0
      %4039 = vdwg.mxu0
      %4040 = vst.msk [vmem:[#allocation3] sm:$0xff] %vm288, %v4002
      %4041 = vst.msk [vmem:[#allocation3 + $0x8] sm:$0xff] %vm288, %v4007
      %4042 = vst.msk [vmem:[#allocation3 + $0x10] sm:$0xff] %vm288, %v4012
      %4043 = vst.msk [vmem:[#allocation3 + $0x18] sm:$0xff] %vm288, %v4017
      %4044 = vst.msk [vmem:[#allocation3 + $0x20] sm:$0xff] %vm288, %v4022
      %4045 = vst.msk [vmem:[#allocation3 + $0x28] sm:$0xff] %vm288, %v4027
      %4046 = vst.msk [vmem:[#allocation3 + $0x30] sm:$0xff] %vm288, %v4032
      %4047 = vst.msk [vmem:[#allocation3 + $0x38] sm:$0xff] %vm288, %v4037
      %s4048 = scalar_lea.vmem [#allocation6], 384
      %v4049 = vld [vmem:[%s4048] sm:$0xff]
      %v4050 = vld [vmem:[%s4048 + $0x8] sm:$0xff]
      %v4051 = vld [vmem:[%s4048 + $0x10] sm:$0xff]
      %v4052 = vld [vmem:[%s4048 + $0x18] sm:$0xff]
      %v4053 = vld [vmem:[%s4048 + $0x20] sm:$0xff]
      %v4054 = vld [vmem:[%s4048 + $0x28] sm:$0xff]
      %v4055 = vld [vmem:[%s4048 + $0x30] sm:$0xff]
      %v4056 = vld [vmem:[%s4048 + $0x38] sm:$0xff]
      %v4057 = vand.u32 2147483647, %v4049
      %v4058 = vand.u32 2147483647, %v4050
      %v4059 = vand.u32 2147483647, %v4051
      %v4060 = vand.u32 2147483647, %v4052
      %v4061 = vand.u32 2147483647, %v4053
      %v4062 = vand.u32 2147483647, %v4054
      %v4063 = vand.u32 2147483647, %v4055
      %v4064 = vand.u32 2147483647, %v4056
      %v4065 = vld [vmem:[#allocation2] sm:$0xff]
      %v4066 = vld [vmem:[#allocation2 + $0x8] sm:$0xff]
      %v4067 = vld [vmem:[#allocation2 + $0x10] sm:$0xff]
      %v4068 = vld [vmem:[#allocation2 + $0x18] sm:$0xff]
      %v4069 = vld [vmem:[#allocation2 + $0x20] sm:$0xff]
      %v4070 = vld [vmem:[#allocation2 + $0x28] sm:$0xff]
      %v4071 = vld [vmem:[#allocation2 + $0x30] sm:$0xff]
      %v4072 = vld [vmem:[#allocation2 + $0x38] sm:$0xff]
      %v4073 = vmul.f32 %v4065, %v100
      %v4074 = vmul.f32 %v4066, %v101
      %v4075 = vmul.f32 %v4067, %v102
      %v4076 = vmul.f32 %v4068, %v103
      %v4077 = vmul.f32 %v4069, %v104
      %v4078 = vmul.f32 %v4070, %v105
      %v4079 = vmul.f32 %v4071, %v106
      %v4080 = vmul.f32 %v4072, %v107
      %v4081 = vsel %vm288, %v4073, 0.0
      %4082 = vadd.xlane.f32.xlu0 %v4081
      %v4083 = vpop.xlane.xlu0 %4082
      %v4084 = vsel %vm288, %v4074, 0.0
      %4085 = vadd.xlane.f32.xlu0 %v4084
      %v4086 = vpop.xlane.xlu0 %4085
      %v4087 = vsel %vm288, %v4075, 0.0
      %4088 = vadd.xlane.f32.xlu0 %v4087
      %v4089 = vpop.xlane.xlu0 %4088
      %v4090 = vsel %vm288, %v4076, 0.0
      %4091 = vadd.xlane.f32.xlu0 %v4090
      %v4092 = vpop.xlane.xlu0 %4091
      %v4093 = vsel %vm288, %v4077, 0.0
      %4094 = vadd.xlane.f32.xlu0 %v4093
      %v4095 = vpop.xlane.xlu0 %4094
      %v4096 = vsel %vm288, %v4078, 0.0
      %4097 = vadd.xlane.f32.xlu0 %v4096
      %v4098 = vpop.xlane.xlu0 %4097
      %v4099 = vsel %vm288, %v4079, 0.0
      %4100 = vadd.xlane.f32.xlu0 %v4099
      %v4101 = vpop.xlane.xlu0 %4100
      %v4102 = vsel %vm288, %v4080, 0.0
      %4103 = vadd.xlane.f32.xlu0 %v4102
      %v4104 = vpop.xlane.xlu0 %4103
      %v4105 = vadd.f32 %v4081, %v4084
      %v4106 = vadd.f32 %v4105, %v4087
      %v4107 = vadd.f32 %v4106, %v4090
      %v4108 = vadd.f32 %v4107, %v4093
      %v4109 = vadd.f32 %v4108, %v4096
      %v4110 = vadd.f32 %v4109, %v4099
      %v4111 = vadd.f32 %v4110, %v4102
      %v4112 = vrot.slane %v4111, 4
      %v4113 = vadd.f32 %v4111, %v4112
      %v4114 = vrot.slane %v4113, 2
      %v4115 = vadd.f32 %v4113, %v4114
      %v4116 = vrot.slane %v4115, 1
      %v4117 = vadd.f32 %v4115, %v4116
      %v4118 = vmul.f32 %v4065, %v4049
      %v4119 = vmul.f32 %v4066, %v4050
      %v4120 = vmul.f32 %v4067, %v4051
      %v4121 = vmul.f32 %v4068, %v4052
      %v4122 = vmul.f32 %v4069, %v4053
      %v4123 = vmul.f32 %v4070, %v4054
      %v4124 = vmul.f32 %v4071, %v4055
      %v4125 = vmul.f32 %v4072, %v4056
      %v4126 = vsel %vm288, %v4118, 0.0
      %v4127 = vsel %vm288, %v4119, 0.0
      %v4128 = vadd.f32 %v4126, %v4127
      %v4129 = vsel %vm288, %v4120, 0.0
      %v4130 = vadd.f32 %v4128, %v4129
      %v4131 = vsel %vm288, %v4121, 0.0
      %v4132 = vadd.f32 %v4130, %v4131
      %v4133 = vsel %vm288, %v4122, 0.0
      %v4134 = vadd.f32 %v4132, %v4133
      %v4135 = vsel %vm288, %v4123, 0.0
      %v4136 = vadd.f32 %v4134, %v4135
      %v4137 = vsel %vm288, %v4124, 0.0
      %v4138 = vadd.f32 %v4136, %v4137
      %v4139 = vsel %vm288, %v4125, 0.0
      %v4140 = vadd.f32 %v4138, %v4139
      %v4141 = vrot.slane %v4140, 4
      %v4142 = vadd.f32 %v4140, %v4141
      %v4143 = vrot.slane %v4142, 2
      %v4144 = vadd.f32 %v4142, %v4143
      %v4145 = vrot.slane %v4144, 1
      %v4146 = vadd.f32 %v4144, %v4145
      %v4147 = vmul.f32 %v4057, %v4083
      %v4148 = vmul.f32 %v4058, %v4086
      %v4149 = vmul.f32 %v4059, %v4089
      %v4150 = vmul.f32 %v4060, %v4092
      %v4151 = vmul.f32 %v4061, %v4095
      %v4152 = vmul.f32 %v4062, %v4098
      %v4153 = vmul.f32 %v4063, %v4101
      %v4154 = vmul.f32 %v4064, %v4104
      %v4155 = vsel %vm288, %v4147, 0.0
      %v4156 = vsel %vm288, %v4148, 0.0
      %v4157 = vadd.f32 %v4155, %v4156
      %v4158 = vsel %vm288, %v4149, 0.0
      %v4159 = vadd.f32 %v4157, %v4158
      %v4160 = vsel %vm288, %v4150, 0.0
      %v4161 = vadd.f32 %v4159, %v4160
      %v4162 = vsel %vm288, %v4151, 0.0
      %v4163 = vadd.f32 %v4161, %v4162
      %v4164 = vsel %vm288, %v4152, 0.0
      %v4165 = vadd.f32 %v4163, %v4164
      %v4166 = vsel %vm288, %v4153, 0.0
      %v4167 = vadd.f32 %v4165, %v4166
      %v4168 = vsel %vm288, %v4154, 0.0
      %v4169 = vadd.f32 %v4167, %v4168
      %v4170 = vrot.slane %v4169, 4
      %v4171 = vadd.f32 %v4169, %v4170
      %v4172 = vrot.slane %v4171, 2
      %v4173 = vadd.f32 %v4171, %v4172
      %v4174 = vrot.slane %v4173, 1
      %v4175 = vadd.f32 %v4173, %v4174
      %v4176 = vand.u32 2147483647, %v4146
      %vm4177 = vcmp.gt.f32.partialorder %v4176, 1e-12
      %v4178 = vsel %vm4177, %v4146, 1.0
      %v4179 = vsub.f32 %v4117, %v4175
      %v4180 = vmul.f32 %v4178, 2.0
      %v4181 = vrcp.pop %v4180
      %v4182 = vmul.f32 %v4179, %v4181
      %vm4183 = vcmp.ge.f32.partialorder %v4182, 0.0
      %v4184 = vsel %vm4183, 1.0, -1.0
      %v4185 = vand.u32 2147483647, %v4182
      %v4186 = vmul.f32 %v4182, %v4182
      %v4187 = vadd.f32 %v4186, 1.0
      %v4188 = vrsqrt.pop %v4187
      %v4189 = vmul.f32 %v4187, %v4188
      %vm4190 = vcmp.eq.f32.partialorder %v4187, inf
      %v4191 = vsel %vm4190, %v4187, %v4189
      %vm4192 = vcmp.eq.f32.partialorder %v4187, 0.0
      %v4193 = vand.u32 %v4187, 2147483648
      %v4194 = vsel %vm4192, %v4193, %v4191
      %v4195 = vadd.f32 %v4185, %v4194
      %v4196 = vrcp.pop %v4195
      %v4197 = vmul.f32 %v4184, %v4196
      %v4198 = vmul.f32 %v4197, %v4197
      %v4199 = vadd.f32 %v4198, 1.0
      %v4200 = vrsqrt.pop %v4199
      %v4201 = vmul.f32 %v4197, %v4200
      %v4202 = vsel %vm4177, %v4200, 1.0
      %v4203 = vsel %vm4177, %v4201, 0.0
      %v4204 = vmul.f32 %v100, %v4202
      %v4205 = vmul.f32 %v101, %v4202
      %v4206 = vmul.f32 %v102, %v4202
      %v4207 = vmul.f32 %v103, %v4202
      %v4208 = vmul.f32 %v104, %v4202
      %v4209 = vmul.f32 %v105, %v4202
      %v4210 = vmul.f32 %v106, %v4202
      %v4211 = vmul.f32 %v107, %v4202
      %v4212 = vmul.f32 %v4049, %v4203
      %v4213 = vmul.f32 %v4050, %v4203
      %v4214 = vmul.f32 %v4051, %v4203
      %v4215 = vmul.f32 %v4052, %v4203
      %v4216 = vmul.f32 %v4053, %v4203
      %v4217 = vmul.f32 %v4054, %v4203
      %v4218 = vmul.f32 %v4055, %v4203
      %v4219 = vmul.f32 %v4056, %v4203
      %v4220 = vadd.f32 %v4204, %v4212
      %v4221 = vadd.f32 %v4205, %v4213
      %v4222 = vadd.f32 %v4206, %v4214
      %v4223 = vadd.f32 %v4207, %v4215
      %v4224 = vadd.f32 %v4208, %v4216
      %v4225 = vadd.f32 %v4209, %v4217
      %v4226 = vadd.f32 %v4210, %v4218
      %v4227 = vadd.f32 %v4211, %v4219
      %v4229 = vsel %vm288, %v4065, 0
      %v4232 = vsel %vm288, %v4066, 0
      %v4235 = vsel %vm288, %v4067, 0
      %v4238 = vsel %vm288, %v4068, 0
      %v4241 = vsel %vm288, %v4069, 0
      %v4244 = vsel %vm288, %v4070, 0
      %v4247 = vsel %vm288, %v4071, 0
      %v4250 = vsel %vm288, %v4072, 0
      %4252 = vmatprep.subr.mxu0 0.0
      %4253 = vmatpush1.msra.mxu0 0.0
      %4254 = vmatprep.subr.mxu0 0.0
      %4255 = vmatpush1.msra.mxu0 0.0
      %4256 = vmatprep.subr.mxu0 0.0
      %4257 = vmatpush1.msra.mxu0 0.0
      %4258 = vmatprep.subr.mxu0 0.0
      %4259 = vmatpush1.msra.mxu0 0.0
      %4260 = vmatprep.subr.mxu0 0.0
      %4261 = vmatpush1.msra.mxu0 0.0
      %4262 = vmatprep.subr.mxu0 0.0
      %4263 = vmatpush1.msra.mxu0 0.0
      %4264 = vmatprep.subr.mxu0 0.0
      %4265 = vmatpush1.msra.mxu0 0.0
      %4266 = vmatprep.subr.mxu0 0.0
      %4267 = vmatpush1.msra.mxu0 0.0
      %4268 = vmatprep.subr.mxu0 0.0
      %4269 = vmatpush1.msra.mxu0 %v4227
      %4270 = vmatprep.subr.mxu0 0.0
      %4271 = vmatpush1.msra.mxu0 %v4226
      %4272 = vmatprep.subr.mxu0 0.0
      %4273 = vmatpush1.msra.mxu0 %v4225
      %4274 = vmatprep.subr.mxu0 0.0
      %4275 = vmatpush1.msra.mxu0 %v4224
      %4276 = vmatprep.subr.mxu0 0.0
      %4277 = vmatpush1.msra.mxu0 %v4223
      %4278 = vmatprep.subr.mxu0 0.0
      %4279 = vmatpush1.msra.mxu0 %v4222
      %4280 = vmatprep.subr.mxu0 0.0
      %4281 = vmatpush1.msra.mxu0 %v4221
      %4282 = vmatprep.subr.mxu0 0.0
      %4283 = vmatpush1.msra.mxu0 %v4220
      %4284 = vmatprep.subr.mxu0 0.0
      %4285 = vmatpush2.msra.mxu0 0.0
      %4286 = vmatprep.subr.mxu0 0.0
      %4287 = vmatpush2.msra.mxu0 0.0
      %4288 = vmatprep.subr.mxu0 0.0
      %4289 = vmatpush2.msra.mxu0 0.0
      %4290 = vmatprep.subr.mxu0 0.0
      %4291 = vmatpush2.msra.mxu0 0.0
      %4292 = vmatprep.subr.mxu0 0.0
      %4293 = vmatpush2.msra.mxu0 0.0
      %4294 = vmatprep.subr.mxu0 0.0
      %4295 = vmatpush2.msra.mxu0 0.0
      %4296 = vmatprep.subr.mxu0 0.0
      %4297 = vmatpush2.msra.mxu0 0.0
      %4298 = vmatprep.subr.mxu0 0.0
      %4299 = vmatpush2.msra.mxu0 0.0
      %4300 = vmatprep.subr.mxu0 0.0
      %4301 = vmatpush2.msra.mxu0 0.0
      %4302 = vmatprep.subr.mxu0 0.0
      %4303 = vmatpush2.msra.mxu0 0.0
      %4304 = vmatprep.subr.mxu0 0.0
      %4305 = vmatpush2.msra.mxu0 0.0
      %4306 = vmatprep.subr.mxu0 0.0
      %4307 = vmatpush2.msra.mxu0 0.0
      %4308 = vmatprep.subr.mxu0 0.0
      %4309 = vmatpush2.msra.mxu0 0.0
      %4310 = vmatprep.subr.mxu0 0.0
      %4311 = vmatpush2.msra.mxu0 0.0
      %4312 = vmatprep.subr.mxu0 0.0
      %4313 = vmatpush2.msra.mxu0 0.0
      %4314 = vmatprep.subr.mxu0 0.0
      %4315 = vmatpush2.msra.mxu0 0.0
      %4316 = vmatprep.mubr.f32.mxu0 0.0
      %4317 = vmatmul.mubr.f32.gmra.mxu0 %v4229
      %v4318 = vpop.f32.mrf.mxu0
      %v4319 = vadd.f32 0.0, %v4318
      %v4320 = vpop.f32.mrf.mxu0
      %4321 = vmatprep.mubr.f32.mxu0 0.0
      %4322 = vmatmul.mubr.f32.gmra.mxu0 %v4232
      %v4323 = vpop.f32.mrf.mxu0
      %v4324 = vadd.f32 0.0, %v4323
      %v4325 = vpop.f32.mrf.mxu0
      %4326 = vmatprep.mubr.f32.mxu0 0.0
      %4327 = vmatmul.mubr.f32.gmra.mxu0 %v4235
      %v4328 = vpop.f32.mrf.mxu0
      %v4329 = vadd.f32 0.0, %v4328
      %v4330 = vpop.f32.mrf.mxu0
      %4331 = vmatprep.mubr.f32.mxu0 0.0
      %4332 = vmatmul.mubr.f32.gmra.mxu0 %v4238
      %v4333 = vpop.f32.mrf.mxu0
      %v4334 = vadd.f32 0.0, %v4333
      %v4335 = vpop.f32.mrf.mxu0
      %4336 = vmatprep.mubr.f32.mxu0 0.0
      %4337 = vmatmul.mubr.f32.gmra.mxu0 %v4241
      %v4338 = vpop.f32.mrf.mxu0
      %v4339 = vadd.f32 0.0, %v4338
      %v4340 = vpop.f32.mrf.mxu0
      %4341 = vmatprep.mubr.f32.mxu0 0.0
      %4342 = vmatmul.mubr.f32.gmra.mxu0 %v4244
      %v4343 = vpop.f32.mrf.mxu0
      %v4344 = vadd.f32 0.0, %v4343
      %v4345 = vpop.f32.mrf.mxu0
      %4346 = vmatprep.mubr.f32.mxu0 0.0
      %4347 = vmatmul.mubr.f32.gmra.mxu0 %v4247
      %v4348 = vpop.f32.mrf.mxu0
      %v4349 = vadd.f32 0.0, %v4348
      %v4350 = vpop.f32.mrf.mxu0
      %4351 = vmatprep.mubr.f32.mxu0 0.0
      %4352 = vmatmul.mubr.f32.gmra.mxu0 %v4250
      %v4353 = vpop.f32.mrf.mxu0
      %v4354 = vadd.f32 0.0, %v4353
      %v4355 = vpop.f32.mrf.mxu0
      %4356 = vdwg.mxu0
      %4357 = vxpose.xlu0.b32.start [1/16] %v4220, 128
      %4358 = vxpose.xlu0.b32.cont [2/16] %v4221, 128
      %4359 = vxpose.xlu0.b32.cont [3/16] %v4222, 128
      %4360 = vxpose.xlu0.b32.cont [4/16] %v4223, 128
      %4361 = vxpose.xlu0.b32.cont [5/16] %v4224, 128
      %4362 = vxpose.xlu0.b32.cont [6/16] %v4225, 128
      %4363 = vxpose.xlu0.b32.cont [7/16] %v4226, 128
      %4364 = vxpose.xlu0.b32.cont [8/16] %v4227, 128
      %4365 = vxpose.xlu0.b32.cont [9/16] 0.0, 128
      %4366 = vxpose.xlu0.b32.cont [10/16] 0.0, 128
      %4367 = vxpose.xlu0.b32.cont [11/16] 0.0, 128
      %4368 = vxpose.xlu0.b32.cont [12/16] 0.0, 128
      %4369 = vxpose.xlu0.b32.cont [13/16] 0.0, 128
      %4370 = vxpose.xlu0.b32.cont [14/16] 0.0, 128
      %4371 = vxpose.xlu0.b32.cont [15/16] 0.0, 128
      %4372 = vxpose.xlu0.b32.end [16/16] 0.0, 128
      %v4373 = vpop.trf.xlu0
      %v4374 = vpop.trf.xlu0
      %v4375 = vpop.trf.xlu0
      %v4376 = vpop.trf.xlu0
      %v4377 = vpop.trf.xlu0
      %v4378 = vpop.trf.xlu0
      %v4379 = vpop.trf.xlu0
      %v4380 = vpop.trf.xlu0
      %v4381 = vpop.trf.xlu0
      %v4382 = vpop.trf.xlu0
      %v4383 = vpop.trf.xlu0
      %v4384 = vpop.trf.xlu0
      %v4385 = vpop.trf.xlu0
      %v4386 = vpop.trf.xlu0
      %v4387 = vpop.trf.xlu0
      %v4388 = vpop.trf.xlu0
      %v4390 = vsel %vm288, %v4373, 0
      %v4393 = vsel %vm288, %v4374, 0
      %v4396 = vsel %vm288, %v4375, 0
      %v4399 = vsel %vm288, %v4376, 0
      %v4402 = vsel %vm288, %v4377, 0
      %v4405 = vsel %vm288, %v4378, 0
      %v4408 = vsel %vm288, %v4379, 0
      %v4411 = vsel %vm288, %v4380, 0
      %4413 = vmatprep.subr.mxu0 0.0
      %4414 = vmatpush1.msra.mxu0 0.0
      %4415 = vmatprep.subr.mxu0 0.0
      %4416 = vmatpush1.msra.mxu0 0.0
      %4417 = vmatprep.subr.mxu0 0.0
      %4418 = vmatpush1.msra.mxu0 0.0
      %4419 = vmatprep.subr.mxu0 0.0
      %4420 = vmatpush1.msra.mxu0 0.0
      %4421 = vmatprep.subr.mxu0 0.0
      %4422 = vmatpush1.msra.mxu0 0.0
      %4423 = vmatprep.subr.mxu0 0.0
      %4424 = vmatpush1.msra.mxu0 0.0
      %4425 = vmatprep.subr.mxu0 0.0
      %4426 = vmatpush1.msra.mxu0 0.0
      %4427 = vmatprep.subr.mxu0 0.0
      %4428 = vmatpush1.msra.mxu0 0.0
      %4429 = vmatprep.subr.mxu0 0.0
      %4430 = vmatpush1.msra.mxu0 %v4354
      %4431 = vmatprep.subr.mxu0 0.0
      %4432 = vmatpush1.msra.mxu0 %v4349
      %4433 = vmatprep.subr.mxu0 0.0
      %4434 = vmatpush1.msra.mxu0 %v4344
      %4435 = vmatprep.subr.mxu0 0.0
      %4436 = vmatpush1.msra.mxu0 %v4339
      %4437 = vmatprep.subr.mxu0 0.0
      %4438 = vmatpush1.msra.mxu0 %v4334
      %4439 = vmatprep.subr.mxu0 0.0
      %4440 = vmatpush1.msra.mxu0 %v4329
      %4441 = vmatprep.subr.mxu0 0.0
      %4442 = vmatpush1.msra.mxu0 %v4324
      %4443 = vmatprep.subr.mxu0 0.0
      %4444 = vmatpush1.msra.mxu0 %v4319
      %4445 = vmatprep.subr.mxu0 0.0
      %4446 = vmatpush2.msra.mxu0 0.0
      %4447 = vmatprep.subr.mxu0 0.0
      %4448 = vmatpush2.msra.mxu0 0.0
      %4449 = vmatprep.subr.mxu0 0.0
      %4450 = vmatpush2.msra.mxu0 0.0
      %4451 = vmatprep.subr.mxu0 0.0
      %4452 = vmatpush2.msra.mxu0 0.0
      %4453 = vmatprep.subr.mxu0 0.0
      %4454 = vmatpush2.msra.mxu0 0.0
      %4455 = vmatprep.subr.mxu0 0.0
      %4456 = vmatpush2.msra.mxu0 0.0
      %4457 = vmatprep.subr.mxu0 0.0
      %4458 = vmatpush2.msra.mxu0 0.0
      %4459 = vmatprep.subr.mxu0 0.0
      %4460 = vmatpush2.msra.mxu0 0.0
      %4461 = vmatprep.subr.mxu0 0.0
      %4462 = vmatpush2.msra.mxu0 0.0
      %4463 = vmatprep.subr.mxu0 0.0
      %4464 = vmatpush2.msra.mxu0 0.0
      %4465 = vmatprep.subr.mxu0 0.0
      %4466 = vmatpush2.msra.mxu0 0.0
      %4467 = vmatprep.subr.mxu0 0.0
      %4468 = vmatpush2.msra.mxu0 0.0
      %4469 = vmatprep.subr.mxu0 0.0
      %4470 = vmatpush2.msra.mxu0 0.0
      %4471 = vmatprep.subr.mxu0 0.0
      %4472 = vmatpush2.msra.mxu0 0.0
      %4473 = vmatprep.subr.mxu0 0.0
      %4474 = vmatpush2.msra.mxu0 0.0
      %4475 = vmatprep.subr.mxu0 0.0
      %4476 = vmatpush2.msra.mxu0 0.0
      %4477 = vmatprep.mubr.f32.mxu0 0.0
      %4478 = vmatmul.mubr.f32.gmra.mxu0 %v4390
      %v4479 = vpop.f32.mrf.mxu0
      %v4480 = vadd.f32 0.0, %v4479
      %v4481 = vpop.f32.mrf.mxu0
      %4482 = vmatprep.mubr.f32.mxu0 0.0
      %4483 = vmatmul.mubr.f32.gmra.mxu0 %v4393
      %v4484 = vpop.f32.mrf.mxu0
      %v4485 = vadd.f32 0.0, %v4484
      %v4486 = vpop.f32.mrf.mxu0
      %4487 = vmatprep.mubr.f32.mxu0 0.0
      %4488 = vmatmul.mubr.f32.gmra.mxu0 %v4396
      %v4489 = vpop.f32.mrf.mxu0
      %v4490 = vadd.f32 0.0, %v4489
      %v4491 = vpop.f32.mrf.mxu0
      %4492 = vmatprep.mubr.f32.mxu0 0.0
      %4493 = vmatmul.mubr.f32.gmra.mxu0 %v4399
      %v4494 = vpop.f32.mrf.mxu0
      %v4495 = vadd.f32 0.0, %v4494
      %v4496 = vpop.f32.mrf.mxu0
      %4497 = vmatprep.mubr.f32.mxu0 0.0
      %4498 = vmatmul.mubr.f32.gmra.mxu0 %v4402
      %v4499 = vpop.f32.mrf.mxu0
      %v4500 = vadd.f32 0.0, %v4499
      %v4501 = vpop.f32.mrf.mxu0
      %4502 = vmatprep.mubr.f32.mxu0 0.0
      %4503 = vmatmul.mubr.f32.gmra.mxu0 %v4405
      %v4504 = vpop.f32.mrf.mxu0
      %v4505 = vadd.f32 0.0, %v4504
      %v4506 = vpop.f32.mrf.mxu0
      %4507 = vmatprep.mubr.f32.mxu0 0.0
      %4508 = vmatmul.mubr.f32.gmra.mxu0 %v4408
      %v4509 = vpop.f32.mrf.mxu0
      %v4510 = vadd.f32 0.0, %v4509
      %v4511 = vpop.f32.mrf.mxu0
      %4512 = vmatprep.mubr.f32.mxu0 0.0
      %4513 = vmatmul.mubr.f32.gmra.mxu0 %v4411
      %v4514 = vpop.f32.mrf.mxu0
      %v4515 = vadd.f32 0.0, %v4514
      %v4516 = vpop.f32.mrf.mxu0
      %4517 = vdwg.mxu0
      %4518 = vst.msk [vmem:[#allocation2] sm:$0xff] %vm288, %v4480
      %4519 = vst.msk [vmem:[#allocation2 + $0x8] sm:$0xff] %vm288, %v4485
      %4520 = vst.msk [vmem:[#allocation2 + $0x10] sm:$0xff] %vm288, %v4490
      %4521 = vst.msk [vmem:[#allocation2 + $0x18] sm:$0xff] %vm288, %v4495
      %4522 = vst.msk [vmem:[#allocation2 + $0x20] sm:$0xff] %vm288, %v4500
      %4523 = vst.msk [vmem:[#allocation2 + $0x28] sm:$0xff] %vm288, %v4505
      %4524 = vst.msk [vmem:[#allocation2 + $0x30] sm:$0xff] %vm288, %v4510
      %4525 = vst.msk [vmem:[#allocation2 + $0x38] sm:$0xff] %vm288, %v4515
      %v4526 = vld [vmem:[#allocation3] sm:$0xff]
      %v4527 = vld [vmem:[#allocation3 + $0x8] sm:$0xff]
      %v4528 = vld [vmem:[#allocation3 + $0x10] sm:$0xff]
      %v4529 = vld [vmem:[#allocation3 + $0x18] sm:$0xff]
      %v4530 = vld [vmem:[#allocation3 + $0x20] sm:$0xff]
      %v4531 = vld [vmem:[#allocation3 + $0x28] sm:$0xff]
      %v4532 = vld [vmem:[#allocation3 + $0x30] sm:$0xff]
      %v4533 = vld [vmem:[#allocation3 + $0x38] sm:$0xff]
      %v4535 = vsel %vm288, %v4526, 0
      %v4538 = vsel %vm288, %v4527, 0
      %v4541 = vsel %vm288, %v4528, 0
      %v4544 = vsel %vm288, %v4529, 0
      %v4547 = vsel %vm288, %v4530, 0
      %v4550 = vsel %vm288, %v4531, 0
      %v4553 = vsel %vm288, %v4532, 0
      %v4556 = vsel %vm288, %v4533, 0
      %4558 = vmatprep.subr.mxu0 0.0
      %4559 = vmatpush1.msra.mxu0 0.0
      %4560 = vmatprep.subr.mxu0 0.0
      %4561 = vmatpush1.msra.mxu0 0.0
      %4562 = vmatprep.subr.mxu0 0.0
      %4563 = vmatpush1.msra.mxu0 0.0
      %4564 = vmatprep.subr.mxu0 0.0
      %4565 = vmatpush1.msra.mxu0 0.0
      %4566 = vmatprep.subr.mxu0 0.0
      %4567 = vmatpush1.msra.mxu0 0.0
      %4568 = vmatprep.subr.mxu0 0.0
      %4569 = vmatpush1.msra.mxu0 0.0
      %4570 = vmatprep.subr.mxu0 0.0
      %4571 = vmatpush1.msra.mxu0 0.0
      %4572 = vmatprep.subr.mxu0 0.0
      %4573 = vmatpush1.msra.mxu0 0.0
      %4574 = vmatprep.subr.mxu0 0.0
      %4575 = vmatpush1.msra.mxu0 %v4227
      %4576 = vmatprep.subr.mxu0 0.0
      %4577 = vmatpush1.msra.mxu0 %v4226
      %4578 = vmatprep.subr.mxu0 0.0
      %4579 = vmatpush1.msra.mxu0 %v4225
      %4580 = vmatprep.subr.mxu0 0.0
      %4581 = vmatpush1.msra.mxu0 %v4224
      %4582 = vmatprep.subr.mxu0 0.0
      %4583 = vmatpush1.msra.mxu0 %v4223
      %4584 = vmatprep.subr.mxu0 0.0
      %4585 = vmatpush1.msra.mxu0 %v4222
      %4586 = vmatprep.subr.mxu0 0.0
      %4587 = vmatpush1.msra.mxu0 %v4221
      %4588 = vmatprep.subr.mxu0 0.0
      %4589 = vmatpush1.msra.mxu0 %v4220
      %4590 = vmatprep.subr.mxu0 0.0
      %4591 = vmatpush2.msra.mxu0 0.0
      %4592 = vmatprep.subr.mxu0 0.0
      %4593 = vmatpush2.msra.mxu0 0.0
      %4594 = vmatprep.subr.mxu0 0.0
      %4595 = vmatpush2.msra.mxu0 0.0
      %4596 = vmatprep.subr.mxu0 0.0
      %4597 = vmatpush2.msra.mxu0 0.0
      %4598 = vmatprep.subr.mxu0 0.0
      %4599 = vmatpush2.msra.mxu0 0.0
      %4600 = vmatprep.subr.mxu0 0.0
      %4601 = vmatpush2.msra.mxu0 0.0
      %4602 = vmatprep.subr.mxu0 0.0
      %4603 = vmatpush2.msra.mxu0 0.0
      %4604 = vmatprep.subr.mxu0 0.0
      %4605 = vmatpush2.msra.mxu0 0.0
      %4606 = vmatprep.subr.mxu0 0.0
      %4607 = vmatpush2.msra.mxu0 0.0
      %4608 = vmatprep.subr.mxu0 0.0
      %4609 = vmatpush2.msra.mxu0 0.0
      %4610 = vmatprep.subr.mxu0 0.0
      %4611 = vmatpush2.msra.mxu0 0.0
      %4612 = vmatprep.subr.mxu0 0.0
      %4613 = vmatpush2.msra.mxu0 0.0
      %4614 = vmatprep.subr.mxu0 0.0
      %4615 = vmatpush2.msra.mxu0 0.0
      %4616 = vmatprep.subr.mxu0 0.0
      %4617 = vmatpush2.msra.mxu0 0.0
      %4618 = vmatprep.subr.mxu0 0.0
      %4619 = vmatpush2.msra.mxu0 0.0
      %4620 = vmatprep.subr.mxu0 0.0
      %4621 = vmatpush2.msra.mxu0 0.0
      %4622 = vmatprep.mubr.f32.mxu0 0.0
      %4623 = vmatmul.mubr.f32.gmra.mxu0 %v4535
      %v4624 = vpop.f32.mrf.mxu0
      %v4625 = vadd.f32 0.0, %v4624
      %v4626 = vpop.f32.mrf.mxu0
      %4627 = vmatprep.mubr.f32.mxu0 0.0
      %4628 = vmatmul.mubr.f32.gmra.mxu0 %v4538
      %v4629 = vpop.f32.mrf.mxu0
      %v4630 = vadd.f32 0.0, %v4629
      %v4631 = vpop.f32.mrf.mxu0
      %4632 = vmatprep.mubr.f32.mxu0 0.0
      %4633 = vmatmul.mubr.f32.gmra.mxu0 %v4541
      %v4634 = vpop.f32.mrf.mxu0
      %v4635 = vadd.f32 0.0, %v4634
      %v4636 = vpop.f32.mrf.mxu0
      %4637 = vmatprep.mubr.f32.mxu0 0.0
      %4638 = vmatmul.mubr.f32.gmra.mxu0 %v4544
      %v4639 = vpop.f32.mrf.mxu0
      %v4640 = vadd.f32 0.0, %v4639
      %v4641 = vpop.f32.mrf.mxu0
      %4642 = vmatprep.mubr.f32.mxu0 0.0
      %4643 = vmatmul.mubr.f32.gmra.mxu0 %v4547
      %v4644 = vpop.f32.mrf.mxu0
      %v4645 = vadd.f32 0.0, %v4644
      %v4646 = vpop.f32.mrf.mxu0
      %4647 = vmatprep.mubr.f32.mxu0 0.0
      %4648 = vmatmul.mubr.f32.gmra.mxu0 %v4550
      %v4649 = vpop.f32.mrf.mxu0
      %v4650 = vadd.f32 0.0, %v4649
      %v4651 = vpop.f32.mrf.mxu0
      %4652 = vmatprep.mubr.f32.mxu0 0.0
      %4653 = vmatmul.mubr.f32.gmra.mxu0 %v4553
      %v4654 = vpop.f32.mrf.mxu0
      %v4655 = vadd.f32 0.0, %v4654
      %v4656 = vpop.f32.mrf.mxu0
      %4657 = vmatprep.mubr.f32.mxu0 0.0
      %4658 = vmatmul.mubr.f32.gmra.mxu0 %v4556
      %v4659 = vpop.f32.mrf.mxu0
      %v4660 = vadd.f32 0.0, %v4659
      %v4661 = vpop.f32.mrf.mxu0
      %4662 = vdwg.mxu0
      %4663 = vst.msk [vmem:[#allocation3] sm:$0xff] %vm288, %v4625
      %4664 = vst.msk [vmem:[#allocation3 + $0x8] sm:$0xff] %vm288, %v4630
      %4665 = vst.msk [vmem:[#allocation3 + $0x10] sm:$0xff] %vm288, %v4635
      %4666 = vst.msk [vmem:[#allocation3 + $0x18] sm:$0xff] %vm288, %v4640
      %4667 = vst.msk [vmem:[#allocation3 + $0x20] sm:$0xff] %vm288, %v4645
      %4668 = vst.msk [vmem:[#allocation3 + $0x28] sm:$0xff] %vm288, %v4650
      %4669 = vst.msk [vmem:[#allocation3 + $0x30] sm:$0xff] %vm288, %v4655
      %4670 = vst.msk [vmem:[#allocation3 + $0x38] sm:$0xff] %vm288, %v4660
    $region42: #{tpu_custom_call.1} parent=1 // loop_footer
      %s310 = sadd.s32 1, %s306
    $region43: #{tpu_custom_call.1} parent=1 // loop_footer_branch
      %305 = sbr.rel target = $region39
    $region44: #{tpu_custom_call.1} parent=1 // loop_exit
      _
    %v4671 = vld [vmem:[#allocation2] sm:$0xff]
    %v4672 = vld [vmem:[#allocation2 + $0x8] sm:$0xff]
    %v4673 = vld [vmem:[#allocation2 + $0x10] sm:$0xff]
    %v4674 = vld [vmem:[#allocation2 + $0x18] sm:$0xff]
    %v4675 = vld [vmem:[#allocation2 + $0x20] sm:$0xff]
    %v4676 = vld [vmem:[#allocation2 + $0x28] sm:$0xff]
    %v4677 = vld [vmem:[#allocation2 + $0x30] sm:$0xff]
    %v4678 = vld [vmem:[#allocation2 + $0x38] sm:$0xff]
    %v4679 = vld [vmem:[#allocation3] sm:$0xff]
    %v4680 = vld [vmem:[#allocation3 + $0x8] sm:$0xff]
    %v4681 = vld [vmem:[#allocation3 + $0x10] sm:$0xff]
    %v4682 = vld [vmem:[#allocation3 + $0x18] sm:$0xff]
    %v4683 = vld [vmem:[#allocation3 + $0x20] sm:$0xff]
    %v4684 = vld [vmem:[#allocation3 + $0x28] sm:$0xff]
    %v4685 = vld [vmem:[#allocation3 + $0x30] sm:$0xff]
    %v4686 = vld [vmem:[#allocation3 + $0x38] sm:$0xff]
    %v4687 = vld [vmem:[#allocation8] sm:$0xff]
    %v4688 = vld [vmem:[#allocation8 + $0x8] sm:$0xff]
    %v4689 = vld [vmem:[#allocation8 + $0x10] sm:$0xff]
    %v4690 = vld [vmem:[#allocation8 + $0x18] sm:$0xff]
    %v4691 = vld [vmem:[#allocation8 + $0x20] sm:$0xff]
    %v4692 = vld [vmem:[#allocation8 + $0x28] sm:$0xff]
    %v4693 = vld [vmem:[#allocation8 + $0x30] sm:$0xff]
    %v4694 = vld [vmem:[#allocation8 + $0x38] sm:$0xff]
    %v4695 = vmul.f32 %v4671, %v100
    %v4696 = vmul.f32 %v4672, %v101
    %v4697 = vmul.f32 %v4673, %v102
    %v4698 = vmul.f32 %v4674, %v103
    %v4699 = vmul.f32 %v4675, %v104
    %v4700 = vmul.f32 %v4676, %v105
    %v4701 = vmul.f32 %v4677, %v106
    %v4702 = vmul.f32 %v4678, %v107
    %v4703 = vsel %vm288, %v4695, 0.0
    %4704 = vadd.xlane.f32.xlu0 %v4703
    %v4705 = vpop.xlane.xlu0 %4704
    %v4706 = vsel %vm288, %v4696, 0.0
    %4707 = vadd.xlane.f32.xlu0 %v4706
    %v4708 = vpop.xlane.xlu0 %4707
    %v4709 = vsel %vm288, %v4697, 0.0
    %4710 = vadd.xlane.f32.xlu0 %v4709
    %v4711 = vpop.xlane.xlu0 %4710
    %v4712 = vsel %vm288, %v4698, 0.0
    %4713 = vadd.xlane.f32.xlu0 %v4712
    %v4714 = vpop.xlane.xlu0 %4713
    %v4715 = vsel %vm288, %v4699, 0.0
    %4716 = vadd.xlane.f32.xlu0 %v4715
    %v4717 = vpop.xlane.xlu0 %4716
    %v4718 = vsel %vm288, %v4700, 0.0
    %4719 = vadd.xlane.f32.xlu0 %v4718
    %v4720 = vpop.xlane.xlu0 %4719
    %v4721 = vsel %vm288, %v4701, 0.0
    %4722 = vadd.xlane.f32.xlu0 %v4721
    %v4723 = vpop.xlane.xlu0 %4722
    %v4724 = vsel %vm288, %v4702, 0.0
    %4725 = vadd.xlane.f32.xlu0 %v4724
    %v4726 = vpop.xlane.xlu0 %4725
    %v4727 = vadd.f32 %v4703, %v4706
    %v4728 = vadd.f32 %v4727, %v4709
    %v4729 = vadd.f32 %v4728, %v4712
    %v4730 = vadd.f32 %v4729, %v4715
    %v4731 = vadd.f32 %v4730, %v4718
    %v4732 = vadd.f32 %v4731, %v4721
    %v4733 = vadd.f32 %v4732, %v4724
    %v4734 = vrot.slane %v4733, 4
    %v4735 = vadd.f32 %v4733, %v4734
    %v4736 = vrot.slane %v4735, 2
    %v4737 = vadd.f32 %v4735, %v4736
    %v4738 = vrot.slane %v4737, 1
    %v4739 = vadd.f32 %v4737, %v4738
    %vm4740 = vcmp.gt.f32.partialorder %v4739, %v4705
    %vm4741 = vcmp.gt.f32.partialorder %v4739, %v4708
    %vm4742 = vcmp.gt.f32.partialorder %v4739, %v4711
    %vm4743 = vcmp.gt.f32.partialorder %v4739, %v4714
    %vm4744 = vcmp.gt.f32.partialorder %v4739, %v4717
    %vm4745 = vcmp.gt.f32.partialorder %v4739, %v4720
    %vm4746 = vcmp.gt.f32.partialorder %v4739, %v4723
    %vm4747 = vcmp.gt.f32.partialorder %v4739, %v4726
    %vm4748 = vcmp.eq.f32.partialorder %v4739, %v4705
    %vm4749 = vcmp.eq.f32.partialorder %v4739, %v4708
    %vm4750 = vcmp.eq.f32.partialorder %v4739, %v4711
    %vm4751 = vcmp.eq.f32.partialorder %v4739, %v4714
    %vm4752 = vcmp.eq.f32.partialorder %v4739, %v4717
    %vm4753 = vcmp.eq.f32.partialorder %v4739, %v4720
    %vm4754 = vcmp.eq.f32.partialorder %v4739, %v4723
    %vm4755 = vcmp.eq.f32.partialorder %v4739, %v4726
    %vm4756 = vcmp.lt.s32.totalorder %v83, %v74
    %vm4757 = vcmp.lt.s32.totalorder %v83, %v75
    %vm4758 = vcmp.lt.s32.totalorder %v83, %v76
    %vm4759 = vcmp.lt.s32.totalorder %v83, %v77
    %vm4760 = vcmp.lt.s32.totalorder %v83, %v78
    %vm4761 = vcmp.lt.s32.totalorder %v83, %v79
    %vm4762 = vcmp.lt.s32.totalorder %v83, %v80
    %vm4763 = vcmp.lt.s32.totalorder %v83, %v81
    %vm4764 = vmand %vm4748, %vm4756
    %vm4765 = vmand %vm4749, %vm4757
    %vm4766 = vmand %vm4750, %vm4758
    %vm4767 = vmand %vm4751, %vm4759
    %vm4768 = vmand %vm4752, %vm4760
    %vm4769 = vmand %vm4753, %vm4761
    %vm4770 = vmand %vm4754, %vm4762
    %vm4771 = vmand %vm4755, %vm4763
    %vm4772 = vmor %vm4740, %vm4764
    %vm4773 = vmor %vm4741, %vm4765
    %vm4774 = vmor %vm4742, %vm4766
    %vm4775 = vmor %vm4743, %vm4767
    %vm4776 = vmor %vm4744, %vm4768
    %vm4777 = vmor %vm4745, %vm4769
    %vm4778 = vmor %vm4746, %vm4770
    %vm4779 = vmor %vm4747, %vm4771
    %v4780 = vsel %vm4772, 1, 0
    %v4781 = vsel %vm4773, 1, 0
    %v4782 = vsel %vm4774, 1, 0
    %v4783 = vsel %vm4775, 1, 0
    %v4784 = vsel %vm4776, 1, 0
    %v4785 = vsel %vm4777, 1, 0
    %v4786 = vsel %vm4778, 1, 0
    %v4787 = vsel %vm4779, 1, 0
    %v4788 = vcvt.s32.f32 %v4780
    %v4789 = vcvt.s32.f32 %v4781
    %v4790 = vcvt.s32.f32 %v4782
    %v4791 = vcvt.s32.f32 %v4783
    %v4792 = vcvt.s32.f32 %v4784
    %v4793 = vcvt.s32.f32 %v4785
    %v4794 = vcvt.s32.f32 %v4786
    %v4795 = vcvt.s32.f32 %v4787
    %v4796 = vmul.f32 %v4687, %v4788
    %v4797 = vmul.f32 %v4688, %v4789
    %v4798 = vmul.f32 %v4689, %v4790
    %v4799 = vmul.f32 %v4690, %v4791
    %v4800 = vmul.f32 %v4691, %v4792
    %v4801 = vmul.f32 %v4692, %v4793
    %v4802 = vmul.f32 %v4693, %v4794
    %v4803 = vmul.f32 %v4694, %v4795
    %v4804 = vsel %vm288, %v4796, 0.0
    %4805 = vadd.xlane.f32.xlu0 %v4804
    %v4806 = vpop.xlane.xlu0 %4805
    %v4807 = vsel %vm288, %v4797, 0.0
    %4808 = vadd.xlane.f32.xlu0 %v4807
    %v4809 = vpop.xlane.xlu0 %4808
    %v4810 = vsel %vm288, %v4798, 0.0
    %4811 = vadd.xlane.f32.xlu0 %v4810
    %v4812 = vpop.xlane.xlu0 %4811
    %v4813 = vsel %vm288, %v4799, 0.0
    %4814 = vadd.xlane.f32.xlu0 %v4813
    %v4815 = vpop.xlane.xlu0 %4814
    %v4816 = vsel %vm288, %v4800, 0.0
    %4817 = vadd.xlane.f32.xlu0 %v4816
    %v4818 = vpop.xlane.xlu0 %4817
    %v4819 = vsel %vm288, %v4801, 0.0
    %4820 = vadd.xlane.f32.xlu0 %v4819
    %v4821 = vpop.xlane.xlu0 %4820
    %v4822 = vsel %vm288, %v4802, 0.0
    %4823 = vadd.xlane.f32.xlu0 %v4822
    %v4824 = vpop.xlane.xlu0 %4823
    %v4825 = vsel %vm288, %v4803, 0.0
    %4826 = vadd.xlane.f32.xlu0 %v4825
    %v4827 = vpop.xlane.xlu0 %4826
    %v4828 = vld [vmem:[%s3] sm:$0x1]
    %v4830 = vlaneseq
    %v4831 = vshrl.u32 %v4830, 7
    %v4832 = vsub.s32 0, %v4831
    %v4833 = vrot.slane %v4828, %v4832
    %vm4835 = vcmp.eq.f32.partialorder %v4833, %v4806
    %vm4836 = vcmp.eq.f32.partialorder %v4833, %v4809
    %vm4837 = vcmp.eq.f32.partialorder %v4833, %v4812
    %vm4838 = vcmp.eq.f32.partialorder %v4833, %v4815
    %vm4839 = vcmp.eq.f32.partialorder %v4833, %v4818
    %vm4840 = vcmp.eq.f32.partialorder %v4833, %v4821
    %vm4841 = vcmp.eq.f32.partialorder %v4833, %v4824
    %vm4842 = vcmp.eq.f32.partialorder %v4833, %v4827
    %v4843 = vsel %vm4835, 1, 0
    %v4844 = vsel %vm4836, 1, 0
    %v4845 = vsel %vm4837, 1, 0
    %v4846 = vsel %vm4838, 1, 0
    %v4847 = vsel %vm4839, 1, 0
    %v4848 = vsel %vm4840, 1, 0
    %v4849 = vsel %vm4841, 1, 0
    %v4850 = vsel %vm4842, 1, 0
    %v4851 = vcvt.s32.f32 %v4843
    %v4852 = vcvt.s32.f32 %v4844
    %v4853 = vcvt.s32.f32 %v4845
    %v4854 = vcvt.s32.f32 %v4846
    %v4855 = vcvt.s32.f32 %v4847
    %v4856 = vcvt.s32.f32 %v4848
    %v4857 = vcvt.s32.f32 %v4849
    %v4858 = vcvt.s32.f32 %v4850
    %v4859 = vmul.f32 %v4687, %v4851
    %v4860 = vmul.f32 %v4688, %v4852
    %v4861 = vmul.f32 %v4689, %v4853
    %v4862 = vmul.f32 %v4690, %v4854
    %v4863 = vmul.f32 %v4691, %v4855
    %v4864 = vmul.f32 %v4692, %v4856
    %v4865 = vmul.f32 %v4693, %v4857
    %v4866 = vmul.f32 %v4694, %v4858
    %v4868 = vsel %vm288, %v4679, 0
    %v4871 = vsel %vm288, %v4680, 0
    %v4874 = vsel %vm288, %v4681, 0
    %v4877 = vsel %vm288, %v4682, 0
    %v4880 = vsel %vm288, %v4683, 0
    %v4883 = vsel %vm288, %v4684, 0
    %v4886 = vsel %vm288, %v4685, 0
    %v4889 = vsel %vm288, %v4686, 0
    %4891 = vmatprep.subr.mxu0 0.0
    %4892 = vmatpush1.msra.mxu0 0.0
    %4893 = vmatprep.subr.mxu0 0.0
    %4894 = vmatpush1.msra.mxu0 0.0
    %4895 = vmatprep.subr.mxu0 0.0
    %4896 = vmatpush1.msra.mxu0 0.0
    %4897 = vmatprep.subr.mxu0 0.0
    %4898 = vmatpush1.msra.mxu0 0.0
    %4899 = vmatprep.subr.mxu0 0.0
    %4900 = vmatpush1.msra.mxu0 0.0
    %4901 = vmatprep.subr.mxu0 0.0
    %4902 = vmatpush1.msra.mxu0 0.0
    %4903 = vmatprep.subr.mxu0 0.0
    %4904 = vmatpush1.msra.mxu0 0.0
    %4905 = vmatprep.subr.mxu0 0.0
    %4906 = vmatpush1.msra.mxu0 0.0
    %4907 = vmatprep.subr.mxu0 0.0
    %4908 = vmatpush1.msra.mxu0 %v4866
    %4909 = vmatprep.subr.mxu0 0.0
    %4910 = vmatpush1.msra.mxu0 %v4865
    %4911 = vmatprep.subr.mxu0 0.0
    %4912 = vmatpush1.msra.mxu0 %v4864
    %4913 = vmatprep.subr.mxu0 0.0
    %4914 = vmatpush1.msra.mxu0 %v4863
    %4915 = vmatprep.subr.mxu0 0.0
    %4916 = vmatpush1.msra.mxu0 %v4862
    %4917 = vmatprep.subr.mxu0 0.0
    %4918 = vmatpush1.msra.mxu0 %v4861
    %4919 = vmatprep.subr.mxu0 0.0
    %4920 = vmatpush1.msra.mxu0 %v4860
    %4921 = vmatprep.subr.mxu0 0.0
    %4922 = vmatpush1.msra.mxu0 %v4859
    %4923 = vmatprep.subr.mxu0 0.0
    %4924 = vmatpush2.msra.mxu0 0.0
    %4925 = vmatprep.subr.mxu0 0.0
    %4926 = vmatpush2.msra.mxu0 0.0
    %4927 = vmatprep.subr.mxu0 0.0
    %4928 = vmatpush2.msra.mxu0 0.0
    %4929 = vmatprep.subr.mxu0 0.0
    %4930 = vmatpush2.msra.mxu0 0.0
    %4931 = vmatprep.subr.mxu0 0.0
    %4932 = vmatpush2.msra.mxu0 0.0
    %4933 = vmatprep.subr.mxu0 0.0
    %4934 = vmatpush2.msra.mxu0 0.0
    %4935 = vmatprep.subr.mxu0 0.0
    %4936 = vmatpush2.msra.mxu0 0.0
    %4937 = vmatprep.subr.mxu0 0.0
    %4938 = vmatpush2.msra.mxu0 0.0
    %4939 = vmatprep.subr.mxu0 0.0
    %4940 = vmatpush2.msra.mxu0 0.0
    %4941 = vmatprep.subr.mxu0 0.0
    %4942 = vmatpush2.msra.mxu0 0.0
    %4943 = vmatprep.subr.mxu0 0.0
    %4944 = vmatpush2.msra.mxu0 0.0
    %4945 = vmatprep.subr.mxu0 0.0
    %4946 = vmatpush2.msra.mxu0 0.0
    %4947 = vmatprep.subr.mxu0 0.0
    %4948 = vmatpush2.msra.mxu0 0.0
    %4949 = vmatprep.subr.mxu0 0.0
    %4950 = vmatpush2.msra.mxu0 0.0
    %4951 = vmatprep.subr.mxu0 0.0
    %4952 = vmatpush2.msra.mxu0 0.0
    %4953 = vmatprep.subr.mxu0 0.0
    %4954 = vmatpush2.msra.mxu0 0.0
    %4955 = vmatprep.mubr.f32.mxu0 0.0
    %4956 = vmatmul.mubr.f32.gmra.mxu0 %v4868
    %v4957 = vpop.f32.mrf.mxu0
    %v4958 = vadd.f32 0.0, %v4957
    %v4959 = vpop.f32.mrf.mxu0
    %4960 = vmatprep.mubr.f32.mxu0 0.0
    %4961 = vmatmul.mubr.f32.gmra.mxu0 %v4871
    %v4962 = vpop.f32.mrf.mxu0
    %v4963 = vadd.f32 0.0, %v4962
    %v4964 = vpop.f32.mrf.mxu0
    %4965 = vmatprep.mubr.f32.mxu0 0.0
    %4966 = vmatmul.mubr.f32.gmra.mxu0 %v4874
    %v4967 = vpop.f32.mrf.mxu0
    %v4968 = vadd.f32 0.0, %v4967
    %v4969 = vpop.f32.mrf.mxu0
    %4970 = vmatprep.mubr.f32.mxu0 0.0
    %4971 = vmatmul.mubr.f32.gmra.mxu0 %v4877
    %v4972 = vpop.f32.mrf.mxu0
    %v4973 = vadd.f32 0.0, %v4972
    %v4974 = vpop.f32.mrf.mxu0
    %4975 = vmatprep.mubr.f32.mxu0 0.0
    %4976 = vmatmul.mubr.f32.gmra.mxu0 %v4880
    %v4977 = vpop.f32.mrf.mxu0
    %v4978 = vadd.f32 0.0, %v4977
    %v4979 = vpop.f32.mrf.mxu0
    %4980 = vmatprep.mubr.f32.mxu0 0.0
    %4981 = vmatmul.mubr.f32.gmra.mxu0 %v4883
    %v4982 = vpop.f32.mrf.mxu0
    %v4983 = vadd.f32 0.0, %v4982
    %v4984 = vpop.f32.mrf.mxu0
    %4985 = vmatprep.mubr.f32.mxu0 0.0
    %4986 = vmatmul.mubr.f32.gmra.mxu0 %v4886
    %v4987 = vpop.f32.mrf.mxu0
    %v4988 = vadd.f32 0.0, %v4987
    %v4989 = vpop.f32.mrf.mxu0
    %4990 = vmatprep.mubr.f32.mxu0 0.0
    %4991 = vmatmul.mubr.f32.gmra.mxu0 %v4889
    %v4992 = vpop.f32.mrf.mxu0
    %v4993 = vadd.f32 0.0, %v4992
    %v4994 = vpop.f32.mrf.mxu0
    %4995 = vdwg.mxu0
    %v4996 = vmul.f32 %v4705, %v4859
    %v4997 = vmul.f32 %v4708, %v4860
    %v4998 = vmul.f32 %v4711, %v4861
    %v4999 = vmul.f32 %v4714, %v4862
    %v5000 = vmul.f32 %v4717, %v4863
    %v5001 = vmul.f32 %v4720, %v4864
    %v5002 = vmul.f32 %v4723, %v4865
    %v5003 = vmul.f32 %v4726, %v4866
    %v5004 = vsel %vm288, %v4996, 0.0
    %v5005 = vsel %vm288, %v4997, 0.0
    %v5006 = vadd.f32 %v5004, %v5005
    %v5007 = vsel %vm288, %v4998, 0.0
    %v5008 = vadd.f32 %v5006, %v5007
    %v5009 = vsel %vm288, %v4999, 0.0
    %v5010 = vadd.f32 %v5008, %v5009
    %v5011 = vsel %vm288, %v5000, 0.0
    %v5012 = vadd.f32 %v5010, %v5011
    %v5013 = vsel %vm288, %v5001, 0.0
    %v5014 = vadd.f32 %v5012, %v5013
    %v5015 = vsel %vm288, %v5002, 0.0
    %v5016 = vadd.f32 %v5014, %v5015
    %v5017 = vsel %vm288, %v5003, 0.0
    %v5018 = vadd.f32 %v5016, %v5017
    %v5019 = vrot.slane %v5018, 4
    %v5020 = vadd.f32 %v5018, %v5019
    %v5021 = vrot.slane %v5020, 2
    %v5022 = vadd.f32 %v5020, %v5021
    %v5023 = vrot.slane %v5022, 1
    %v5024 = vadd.f32 %v5022, %v5023
    %v5025 = vmax.f32 %v5024, 0.0
    %v5026 = vrsqrt.pop %v5025
    %v5027 = vmul.f32 %v5025, %v5026
    %vm5028 = vcmp.eq.f32.partialorder %v5025, inf
    %v5029 = vsel %vm5028, %v5025, %v5027
    %vm5030 = vcmp.eq.f32.partialorder %v5025, 0.0
    %v5031 = vand.u32 %v5025, 2147483648
    %v5032 = vsel %vm5030, %v5031, %v5029
    %v5033 = vld [vmem:[#allocation4] sm:$0xff]
    %v5034 = vld [vmem:[#allocation4 + $0x8] sm:$0xff]
    %v5036 = vsel %vm288, %v5033, 0
    %v5039 = vsel %vm288, %v5034, 0
    %5041 = vmatprep.subr.mxu0 0.0
    %5042 = vmatpush1.msra.mxu0 0.0
    %5043 = vmatprep.subr.mxu0 0.0
    %5044 = vmatpush1.msra.mxu0 0.0
    %5045 = vmatprep.subr.mxu0 0.0
    %5046 = vmatpush1.msra.mxu0 0.0
    %5047 = vmatprep.subr.mxu0 0.0
    %5048 = vmatpush1.msra.mxu0 0.0
    %5049 = vmatprep.subr.mxu0 0.0
    %5050 = vmatpush1.msra.mxu0 0.0
    %5051 = vmatprep.subr.mxu0 0.0
    %5052 = vmatpush1.msra.mxu0 0.0
    %5053 = vmatprep.subr.mxu0 0.0
    %5054 = vmatpush1.msra.mxu0 0.0
    %5055 = vmatprep.subr.mxu0 0.0
    %5056 = vmatpush1.msra.mxu0 0.0
    %5057 = vmatprep.subr.mxu0 0.0
    %5058 = vmatpush1.msra.mxu0 %v4993
    %5059 = vmatprep.subr.mxu0 0.0
    %5060 = vmatpush1.msra.mxu0 %v4988
    %5061 = vmatprep.subr.mxu0 0.0
    %5062 = vmatpush1.msra.mxu0 %v4983
    %5063 = vmatprep.subr.mxu0 0.0
    %5064 = vmatpush1.msra.mxu0 %v4978
    %5065 = vmatprep.subr.mxu0 0.0
    %5066 = vmatpush1.msra.mxu0 %v4973
    %5067 = vmatprep.subr.mxu0 0.0
    %5068 = vmatpush1.msra.mxu0 %v4968
    %5069 = vmatprep.subr.mxu0 0.0
    %5070 = vmatpush1.msra.mxu0 %v4963
    %5071 = vmatprep.subr.mxu0 0.0
    %5072 = vmatpush1.msra.mxu0 %v4958
    %5073 = vmatprep.subr.mxu0 0.0
    %5074 = vmatpush2.msra.mxu0 0.0
    %5075 = vmatprep.subr.mxu0 0.0
    %5076 = vmatpush2.msra.mxu0 0.0
    %5077 = vmatprep.subr.mxu0 0.0
    %5078 = vmatpush2.msra.mxu0 0.0
    %5079 = vmatprep.subr.mxu0 0.0
    %5080 = vmatpush2.msra.mxu0 0.0
    %5081 = vmatprep.subr.mxu0 0.0
    %5082 = vmatpush2.msra.mxu0 0.0
    %5083 = vmatprep.subr.mxu0 0.0
    %5084 = vmatpush2.msra.mxu0 0.0
    %5085 = vmatprep.subr.mxu0 0.0
    %5086 = vmatpush2.msra.mxu0 0.0
    %5087 = vmatprep.subr.mxu0 0.0
    %5088 = vmatpush2.msra.mxu0 0.0
    %5089 = vmatprep.subr.mxu0 0.0
    %5090 = vmatpush2.msra.mxu0 0.0
    %5091 = vmatprep.subr.mxu0 0.0
    %5092 = vmatpush2.msra.mxu0 0.0
    %5093 = vmatprep.subr.mxu0 0.0
    %5094 = vmatpush2.msra.mxu0 0.0
    %5095 = vmatprep.subr.mxu0 0.0
    %5096 = vmatpush2.msra.mxu0 0.0
    %5097 = vmatprep.subr.mxu0 0.0
    %5098 = vmatpush2.msra.mxu0 0.0
    %5099 = vmatprep.subr.mxu0 0.0
    %5100 = vmatpush2.msra.mxu0 0.0
    %5101 = vmatprep.subr.mxu0 0.0
    %5102 = vmatpush2.msra.mxu0 0.0
    %5103 = vmatprep.subr.mxu0 0.0
    %5104 = vmatpush2.msra.mxu0 0.0
    %5105 = vmatprep.mubr.f32.mxu0 0.0
    %5106 = vmatmul.mubr.f32.gmra.mxu0 %v5036
    %v5107 = vpop.f32.mrf.mxu0
    %v5108 = vadd.f32 0.0, %v5107
    %v5109 = vpop.f32.mrf.mxu0
    %5110 = vmatprep.mubr.f32.mxu0 0.0
    %5111 = vmatmul.mubr.f32.gmra.mxu0 %v5039
    %v5112 = vpop.f32.mrf.mxu0
    %v5113 = vadd.f32 0.0, %v5112
    %v5114 = vpop.f32.mrf.mxu0
    %5115 = vdwg.mxu0
    %vm5116 = vcmp.gt.f32.partialorder %v5032, 1e-12
    %v5117 = vmax.f32 %v5032, 1e-12
    %v5118 = vrcp.pop %v5117
    %v5119 = vsel %vm5116, %v5118, 0.0
    %v5120 = vmul.f32 %v5108, %v5119
    %v5121 = vmul.f32 %v5113, %v5119
    %v5122 = vld [vmem:[#allocation9] sm:$0xff]
    %v5124 = vsel %vm288, %v5122, 0
    %5126 = vmatprep.subr.mxu0 0.0
    %5127 = vmatpush1.msra.mxu0 0.0
    %5128 = vmatprep.subr.mxu0 0.0
    %5129 = vmatpush1.msra.mxu0 0.0
    %5130 = vmatprep.subr.mxu0 0.0
    %5131 = vmatpush1.msra.mxu0 0.0
    %5132 = vmatprep.subr.mxu0 0.0
    %5133 = vmatpush1.msra.mxu0 0.0
    %5134 = vmatprep.subr.mxu0 0.0
    %5135 = vmatpush1.msra.mxu0 0.0
    %5136 = vmatprep.subr.mxu0 0.0
    %5137 = vmatpush1.msra.mxu0 0.0
    %5138 = vmatprep.subr.mxu0 0.0
    %5139 = vmatpush1.msra.mxu0 0.0
    %5140 = vmatprep.subr.mxu0 0.0
    %5141 = vmatpush1.msra.mxu0 0.0
    %5142 = vmatprep.subr.mxu0 0.0
    %5143 = vmatpush1.msra.mxu0 %v4993
    %5144 = vmatprep.subr.mxu0 0.0
    %5145 = vmatpush1.msra.mxu0 %v4988
    %5146 = vmatprep.subr.mxu0 0.0
    %5147 = vmatpush1.msra.mxu0 %v4983
    %5148 = vmatprep.subr.mxu0 0.0
    %5149 = vmatpush1.msra.mxu0 %v4978
    %5150 = vmatprep.subr.mxu0 0.0
    %5151 = vmatpush1.msra.mxu0 %v4973
    %5152 = vmatprep.subr.mxu0 0.0
    %5153 = vmatpush1.msra.mxu0 %v4968
    %5154 = vmatprep.subr.mxu0 0.0
    %5155 = vmatpush1.msra.mxu0 %v4963
    %5156 = vmatprep.subr.mxu0 0.0
    %5157 = vmatpush1.msra.mxu0 %v4958
    %5158 = vmatprep.subr.mxu0 0.0
    %5159 = vmatpush2.msra.mxu0 0.0
    %5160 = vmatprep.subr.mxu0 0.0
    %5161 = vmatpush2.msra.mxu0 0.0
    %5162 = vmatprep.subr.mxu0 0.0
    %5163 = vmatpush2.msra.mxu0 0.0
    %5164 = vmatprep.subr.mxu0 0.0
    %5165 = vmatpush2.msra.mxu0 0.0
    %5166 = vmatprep.subr.mxu0 0.0
    %5167 = vmatpush2.msra.mxu0 0.0
    %5168 = vmatprep.subr.mxu0 0.0
    %5169 = vmatpush2.msra.mxu0 0.0
    %5170 = vmatprep.subr.mxu0 0.0
    %5171 = vmatpush2.msra.mxu0 0.0
    %5172 = vmatprep.subr.mxu0 0.0
    %5173 = vmatpush2.msra.mxu0 0.0
    %5174 = vmatprep.subr.mxu0 0.0
    %5175 = vmatpush2.msra.mxu0 0.0
    %5176 = vmatprep.subr.mxu0 0.0
    %5177 = vmatpush2.msra.mxu0 0.0
    %5178 = vmatprep.subr.mxu0 0.0
    %5179 = vmatpush2.msra.mxu0 0.0
    %5180 = vmatprep.subr.mxu0 0.0
    %5181 = vmatpush2.msra.mxu0 0.0
    %5182 = vmatprep.subr.mxu0 0.0
    %5183 = vmatpush2.msra.mxu0 0.0
    %5184 = vmatprep.subr.mxu0 0.0
    %5185 = vmatpush2.msra.mxu0 0.0
    %5186 = vmatprep.subr.mxu0 0.0
    %5187 = vmatpush2.msra.mxu0 0.0
    %5188 = vmatprep.subr.mxu0 0.0
    %5189 = vmatpush2.msra.mxu0 0.0
    %5190 = vmatprep.mubr.f32.mxu0 0.0
    %5191 = vmatmul.mubr.f32.gmra.mxu0 %v5124
    %v5192 = vpop.f32.mrf.mxu0
    %v5193 = vadd.f32 0.0, %v5192
    %v5194 = vpop.f32.mrf.mxu0
    %5195 = vdwg.mxu0
    %5196 = vst.msk [vmem:[%s5] sm:$0xff] %vm288, %v5120
    %5197 = vst.msk [vmem:[%s5 + $0x8] sm:$0xff] %vm288, %v5121
    %5198 = vst.msk [vmem:[%s5 + $0x10] sm:$0xff] %vm288, %v5193
    %vm5199 = vcmask 516096
    %5200 = vst.msk [vmem:[%s5 + $0x18] sm:$0x1] %vm5199, %v5032
    // Predicated region
    $region45: #{tpu_custom_call.1} parent=1 // pred_check
      _
    $region46: #{tpu_custom_call.1} parent=1 // pred_check_branch
      %5202 = sbr.rel (0) target = $region48
    $region47: #{tpu_custom_call.1} parent=1 // pred_region
      _
    $region48: #{tpu_custom_call.1} parent=1 // pred_fallthru
      _
    // Predicated region
    $region49: #{tpu_custom_call.1} parent=1 // pred_check
      _
    $region50: #{tpu_custom_call.1} parent=1 // pred_check_branch
      %5204 = sbr.rel (0) target = $region52
    $region51: #{tpu_custom_call.1} parent=1 // pred_region
      _
    $region52: #{tpu_custom_call.1} parent=1 // pred_fallthru
      _
    %5205 = vsyncpa [#allocation5], 1
    %5206 = vsyncpa [#allocation7], 1
    %5207 = vsyncpa [#allocation10], 1

</llo_original>
